<compile_context>
chip_gen: v6e
topology: v6e:2x2x1
jax: 0.10.0
libtpu: 0.0.40
codegen_flags: <defaults>
</compile_context>

<pallas_src>
import functools
import math

import jax
import jax.numpy as jnp
from jax.experimental import pallas as pl
from jax.experimental.pallas import tpu as pltpu


_NEG_INF = -1e30


# ----------------------------------------------------------------------------
# In-kernel helpers
# ----------------------------------------------------------------------------
def _layer_norm(x, g, b, eps=1e-5):
    mu = jnp.mean(x, axis=-1, keepdims=True)
    var = jnp.mean((x - mu) ** 2, axis=-1, keepdims=True)
    return (x - mu) * jax.lax.rsqrt(var + eps) * g + b


def _gelu_tanh(x):
    # TODO(synk): exact erf-GELU replaced with the tanh approximation.
    c = math.sqrt(2.0 / math.pi)
    return 0.5 * x * (1.0 + jnp.tanh(c * (x + 0.044715 * x * x * x)))


def _mm(a, b):
    """MXU matmul, bf16 operands, f32 accumulation."""
    return jnp.dot(a.astype(jnp.bfloat16), b.astype(jnp.bfloat16),
                   preferred_element_type=jnp.float32)


def _mm_nt(a, b):
    """a @ b.T (contract last dims), bf16 operands, f32 accumulation."""
    return jax.lax.dot_general(
        a.astype(jnp.bfloat16), b.astype(jnp.bfloat16),
        dimension_numbers=(((1,), (1,)), ((), ())),
        preferred_element_type=jnp.float32)


def _encoder_layer(z, wattn_ref, battn_ref, ln_ref, w1_ref, b1_ref, w2_ref,
                   b2_ref, head_mask, seq_bias, *, nheads):
    """One post-norm nn.TransformerEncoderLayer (eval mode).

    z:         (M, C) activations, f32 (M = all positions of one batch elem)
    wattn_ref: (4, C, C) stacked [Wq, Wk, Wv, Wo]
    battn_ref: (4, C)    stacked [bq, bk, bv, bo]
    ln_ref:    (4, C)    stacked [ln1_g, ln1_b, ln2_g, ln2_b]
    head_mask: (H*M, C)  row h*M+m selects the channels of head h
    seq_bias:  (H*M, M)  0 within a sequence, -1e30 across sequences
    """
    M, C = z.shape
    dh = C // nheads
    scale = 1.0 / math.sqrt(dh)

    battn = battn_ref[...]                               # (4, C)
    q = _mm(z, wattn_ref[0]) + battn[0:1]                # (M, C)
    k = _mm(z, wattn_ref[1]) + battn[1:2]
    v = _mm(z, wattn_ref[2]) + battn[2:3]

    # Block-diagonal multi-head scores:
    #   scores[h*M+i, j] = sum_{c in head h} q[i, c] * k[j, c]
    q_rep = jnp.concatenate([q] * nheads, axis=0) * head_mask      # (H*M, C)
    scores = _mm_nt(q_rep, k) * scale + seq_bias                   # (H*M, M)
    scores = scores - jnp.max(scores, axis=-1, keepdims=True)
    p = jnp.exp(scores)
    p = p / jnp.sum(p, axis=-1, keepdims=True)

    # Per-head attention output, kept in the original channel layout.
    o_all = _mm(p, v) * head_mask                                  # (H*M, C)
    attn = o_all[0:M]
    for h in range(1, nheads):                                     # static, aligned
        attn = attn + o_all[h * M:(h + 1) * M]                     # (M, C)
    attn = _mm(attn, wattn_ref[3]) + battn[3:4]                    # Wo: one matmul

    ln = ln_ref[...]                                               # (4, C)
    h1 = _layer_norm(z + attn, ln[0:1], ln[1:2])
    ff = _gelu_tanh(_mm(h1, w1_ref[...]) + b1_ref[...])
    ff = _mm(ff, w2_ref[...]) + b2_ref[...]
    return _layer_norm(h1 + ff, ln[2:3], ln[3:4])


# ----------------------------------------------------------------------------
# Fused ResidualBlock kernel (one batch element per grid step)
# ----------------------------------------------------------------------------
def _residual_block_kernel(
        x_ref, emb_ref, cond_ref,
        wd_ref, bd_ref,
        t_wattn, t_battn, t_ln, t_w1, t_b1, t_w2, t_b2,
        f_wattn, f_battn, f_ln, f_w1, f_b1, f_w2, f_b2,
        head_mask_ref, time_bias_ref, feat_bias_ref,
        wmc_ref, bmc_ref, wout_ref, bout_ref,
        res_ref, skip_ref,
        *, nheads, apply_time, apply_feature):
    x = x_ref[0]                                         # (C, M)
    C, M = x.shape
    inv_sqrt2 = 1.0 / math.sqrt(2.0)

    # y = x + diffusion_projection(emb)[:, None]
    proj = _mm(wd_ref[...], emb_ref[0]) + bd_ref[...]    # (C, 1)
    y = x + proj                                         # broadcast over M

    # Transformers run position-major: (M, C)
    z = y.T
    head_mask = head_mask_ref[...]
    if apply_time:
        z = _encoder_layer(z, t_wattn, t_battn, t_ln, t_w1, t_b1, t_w2, t_b2,
                           head_mask, time_bias_ref[...], nheads=nheads)
    if apply_feature:
        z = _encoder_layer(z, f_wattn, f_battn, f_ln, f_w1, f_b1, f_w2, f_b2,
                           head_mask, feat_bias_ref[...], nheads=nheads)
    y_cm = z.T                                           # back to (C, M)

    # Fused mid + cond projection: [Wmid | Wcond] @ [y ; cond]
    stacked = jnp.concatenate([y_cm, cond_ref[0]], axis=0)         # (C+side, M)
    zmix = _mm(wmc_ref[...], stacked) + bmc_ref[...]               # (2C, M)
    gate = zmix[:C]
    filt = zmix[C:]
    g = jax.nn.sigmoid(gate) * jnp.tanh(filt)                      # (C, M)

    out = _mm(wout_ref[...], g) + bout_ref[...]                    # (2C, M)
    res_ref[0] = ((x + out[:C]) * inv_sqrt2).astype(res_ref.dtype)
    skip_ref[0] = out[C:].astype(skip_ref.dtype)


# ----------------------------------------------------------------------------
# Wrapper
# ----------------------------------------------------------------------------
def residual_block_forward(x, cond_info, diffusion_emb, params, nheads):
    B, C, K, L = x.shape
    M = K * L
    side = cond_info.shape[1]
    H = nheads
    dh = C // H
    D = diffusion_emb.shape[-1]
    F = params["time"]["w1"].shape[1]

    xf = x.reshape(B, C, M)
    cond_f = cond_info.reshape(B, side, M)
    emb = diffusion_emb.reshape(B, D, 1)

    apply_time = L > 1
    apply_feature = K > 1

    # Head-channel selection mask, shared by both transformer layers.
    head_sel = (jnp.arange(C)[None, :] // dh
                == jnp.arange(H)[:, None]).astype(jnp.float32)      # (H, C)
    head_mask = jnp.repeat(head_sel, M, axis=0)                     # (H*M, C)

    # Additive sequence masks: 0 within a sequence, -1e30 across sequences.
    pos = jnp.arange(M)
    same_time = (pos[:, None] // L) == (pos[None, :] // L)          # same k
    same_feat = (pos[:, None] % L) == (pos[None, :] % L)            # same l
    time_bias = jnp.tile(
        jnp.where(same_time, 0.0, _NEG_INF).astype(jnp.float32), (H, 1))
    feat_bias = jnp.tile(
        jnp.where(same_feat, 0.0, _NEG_INF).astype(jnp.float32), (H, 1))

    # Fuse mid_projection and cond_projection weights.
    wmc = jnp.concatenate([params["wmid"], params["wcond"]], axis=1)  # (2C, C+side)
    bmc = params["bmid"] + params["bcond"]                            # (2C, 1)

    def layer_args(p):
        return (jnp.stack([p["wq"], p["wk"], p["wv"], p["wo"]]),      # (4, C, C)
                jnp.stack([p["bq"], p["bk"], p["bv"], p["bo"]]),      # (4, C)
                jnp.stack([p["ln1_g"], p["ln1_b"], p["ln2_g"], p["ln2_b"]]),
                p["w1"], p["b1"], p["w2"], p["b2"])

    t_args = layer_args(params["time"])
    f_args = layer_args(params["feature"])

    kernel = functools.partial(
        _residual_block_kernel, nheads=H,
        apply_time=apply_time, apply_feature=apply_feature)

    def inv(shape):
        # Grid-invariant operand: one full-extent block, fetched once.
        return pl.BlockSpec(shape, lambda b, _s=shape: tuple(0 for _ in _s))

    layer_specs = [inv((4, C, C)), inv((4, C)), inv((4, C)),
                   inv((C, F)), inv((1, F)), inv((F, C)), inv((1, C))]
    in_specs = (
        [pl.BlockSpec((1, C, M), lambda b: (b, 0, 0)),       # x
         pl.BlockSpec((1, D, 1), lambda b: (b, 0, 0)),       # diffusion emb
         pl.BlockSpec((1, side, M), lambda b: (b, 0, 0)),    # cond
         inv((C, D)), inv((C, 1))]                           # wd, bd
        + layer_specs + layer_specs
        + [inv((H * M, C)), inv((H * M, M)), inv((H * M, M))]
        + [inv((2 * C, C + side)), inv((2 * C, 1)),
           inv((2 * C, C)), inv((2 * C, 1))])

    out_spec = pl.BlockSpec((1, C, M), lambda b: (b, 0, 0))

    res, skip = pl.pallas_call(
        kernel,
        out_shape=(jax.ShapeDtypeStruct((B, C, M), x.dtype),
                   jax.ShapeDtypeStruct((B, C, M), x.dtype)),
        grid=(B,),
        in_specs=in_specs,
        out_specs=(out_spec, out_spec),
        compiler_params=pltpu.CompilerParams(
            dimension_semantics=("parallel",)),
    )(xf, emb, cond_f,
      params["wd"], params["bd"],
      *t_args, *f_args,
      head_mask, time_bias, feat_bias,
      wmc, bmc, params["wout"], params["bout"])

    return res.reshape(B, C, K, L), skip.reshape(B, C, K, L)


# ----------------------------------------------------------------------------
# Deterministic synthetic parameters
# ----------------------------------------------------------------------------
def init_transformer_params(key, C, F):
    ks = jax.random.split(key, 8)
    s = 1.0 / math.sqrt(C)
    return {
        "wq": jax.random.normal(ks[0], (C, C), jnp.float32) * s,
        "wk": jax.random.normal(ks[1], (C, C), jnp.float32) * s,
        "wv": jax.random.normal(ks[2], (C, C), jnp.float32) * s,
        "wo": jax.random.normal(ks[3], (C, C), jnp.float32) * s,
        "bq": jnp.zeros((C,), jnp.float32),
        "bk": jnp.zeros((C,), jnp.float32),
        "bv": jnp.zeros((C,), jnp.float32),
        "bo": jnp.zeros((C,), jnp.float32),
        "ln1_g": jnp.ones((C,), jnp.float32),
        "ln1_b": jnp.zeros((C,), jnp.float32),
        "ln2_g": jnp.ones((C,), jnp.float32),
        "ln2_b": jnp.zeros((C,), jnp.float32),
        "w1": jax.random.normal(ks[4], (C, F), jnp.float32) * s,
        "b1": 0.01 * jax.random.normal(ks[5], (1, F), jnp.float32),
        "w2": jax.random.normal(ks[6], (F, C), jnp.float32) / math.sqrt(F),
        "b2": 0.01 * jax.random.normal(ks[7], (1, C), jnp.float32),
    }


def init_params(key, side_dim, channels, diffusion_embedding_dim, dim_ff=64):
    C = channels
    keys = jax.random.split(key, 9)
    return {
        # nn.Linear(diff_dim, C) stored as (out, in) = (C, D)
        "wd": jax.random.normal(keys[0], (C, diffusion_embedding_dim),
                                jnp.float32) / math.sqrt(diffusion_embedding_dim),
        "bd": jnp.zeros((C, 1), jnp.float32),
        # Conv1d(C, 2C, 1), Conv1d(side, 2C, 1), Conv1d(C, 2C, 1)
        "wmid": jax.random.normal(keys[1], (2 * C, C), jnp.float32) * math.sqrt(2.0 / C),
        "bmid": 0.01 * jax.random.normal(keys[2], (2 * C, 1), jnp.float32),
        "wcond": jax.random.normal(keys[3], (2 * C, side_dim), jnp.float32)
                 * math.sqrt(2.0 / side_dim),
        "bcond": 0.01 * jax.random.normal(keys[4], (2 * C, 1), jnp.float32),
        "wout": jax.random.normal(keys[5], (2 * C, C), jnp.float32) * math.sqrt(2.0 / C),
        "bout": 0.01 * jax.random.normal(keys[6], (2 * C, 1), jnp.float32),
        "time": init_transformer_params(keys[7], C, dim_ff),
        "feature": init_transformer_params(keys[8], C, dim_ff),
    }


if __name__ == "__main__":
    B, channels, K, L = 2, 16, 4, 8
    side_dim, diffusion_embedding_dim, nheads = 8, 16, 4

    key = jax.random.PRNGKey(0)
    kx, kc, ke, kp = jax.random.split(key, 4)
    x = jax.random.normal(kx, (B, channels, K, L), jnp.float32)
    cond_info = jax.random.normal(kc, (B, side_dim, K, L), jnp.float32)
    diffusion_emb = jax.random.normal(ke, (B, diffusion_embedding_dim), jnp.float32)

    params = init_params(kp, side_dim, channels, diffusion_embedding_dim)

    fwd = jax.jit(functools.partial(residual_block_forward, nheads=nheads))
    res, skip = fwd(x, cond_info, diffusion_emb, params)
    jax.block_until_ready((res, skip))
    assert res.shape == (B, channels, K, L) and skip.shape == (B, channels, K, L)
    print("KERNEL_OK")
</pallas_src>

<mosaic_0001>
module attributes {stable_mosaic.version = 11 : i64} {
  func.func @_residual_block_kernel(%arg0: i32, %arg1: memref<1x16x32xf32, #tpu.memory_space<vmem>>, %arg2: memref<1x16x1xf32, #tpu.memory_space<vmem>>, %arg3: memref<1x8x32xf32, #tpu.memory_space<vmem>>, %arg4: memref<16x16xf32, #tpu.memory_space<vmem>>, %arg5: memref<16x1xf32, #tpu.memory_space<vmem>>, %arg6: memref<4x16x16xf32, #tpu.memory_space<vmem>>, %arg7: memref<4x16xf32, #tpu.memory_space<vmem>>, %arg8: memref<4x16xf32, #tpu.memory_space<vmem>>, %arg9: memref<16x64xf32, #tpu.memory_space<vmem>>, %arg10: memref<1x64xf32, #tpu.memory_space<vmem>>, %arg11: memref<64x16xf32, #tpu.memory_space<vmem>>, %arg12: memref<1x16xf32, #tpu.memory_space<vmem>>, %arg13: memref<4x16x16xf32, #tpu.memory_space<vmem>>, %arg14: memref<4x16xf32, #tpu.memory_space<vmem>>, %arg15: memref<4x16xf32, #tpu.memory_space<vmem>>, %arg16: memref<16x64xf32, #tpu.memory_space<vmem>>, %arg17: memref<1x64xf32, #tpu.memory_space<vmem>>, %arg18: memref<64x16xf32, #tpu.memory_space<vmem>>, %arg19: memref<1x16xf32, #tpu.memory_space<vmem>>, %arg20: memref<128x16xf32, #tpu.memory_space<vmem>>, %arg21: memref<128x32xf32, #tpu.memory_space<vmem>>, %arg22: memref<128x32xf32, #tpu.memory_space<vmem>>, %arg23: memref<32x24xf32, #tpu.memory_space<vmem>>, %arg24: memref<32x1xf32, #tpu.memory_space<vmem>>, %arg25: memref<32x16xf32, #tpu.memory_space<vmem>>, %arg26: memref<32x1xf32, #tpu.memory_space<vmem>>, %arg27: memref<1x16x32xf32, #tpu.memory_space<vmem>>, %arg28: memref<1x16x32xf32, #tpu.memory_space<vmem>>) attributes {dimension_semantics = [#tpu.dimension_semantics<parallel>], iteration_bounds = array<i64: 2>, scalar_prefetch = 0 : i64, scratch_operands = 0 : i64, tpu.core_type = #tpu.core_type<tc>, window_params = [{transform_indices = @transform_0, window_bounds = array<i64: 1, 16, 32>}, {transform_indices = @transform_1, window_bounds = array<i64: 1, 16, 1>}, {transform_indices = @transform_2, window_bounds = array<i64: 1, 8, 32>}, {pipeline_mode = #tpu.pipeline_mode<synchronous>, transform_indices = @transform_3, window_bounds = array<i64: 16, 16>}, {pipeline_mode = #tpu.pipeline_mode<synchronous>, transform_indices = @transform_4, window_bounds = array<i64: 16, 1>}, {pipeline_mode = #tpu.pipeline_mode<synchronous>, transform_indices = @transform_5, window_bounds = array<i64: 4, 16, 16>}, {pipeline_mode = #tpu.pipeline_mode<synchronous>, transform_indices = @transform_6, window_bounds = array<i64: 4, 16>}, {pipeline_mode = #tpu.pipeline_mode<synchronous>, transform_indices = @transform_7, window_bounds = array<i64: 4, 16>}, {pipeline_mode = #tpu.pipeline_mode<synchronous>, transform_indices = @transform_8, window_bounds = array<i64: 16, 64>}, {pipeline_mode = #tpu.pipeline_mode<synchronous>, transform_indices = @transform_9, window_bounds = array<i64: 1, 64>}, {pipeline_mode = #tpu.pipeline_mode<synchronous>, transform_indices = @transform_10, window_bounds = array<i64: 64, 16>}, {pipeline_mode = #tpu.pipeline_mode<synchronous>, transform_indices = @transform_11, window_bounds = array<i64: 1, 16>}, {pipeline_mode = #tpu.pipeline_mode<synchronous>, transform_indices = @transform_12, window_bounds = array<i64: 4, 16, 16>}, {pipeline_mode = #tpu.pipeline_mode<synchronous>, transform_indices = @transform_13, window_bounds = array<i64: 4, 16>}, {pipeline_mode = #tpu.pipeline_mode<synchronous>, transform_indices = @transform_14, window_bounds = array<i64: 4, 16>}, {pipeline_mode = #tpu.pipeline_mode<synchronous>, transform_indices = @transform_15, window_bounds = array<i64: 16, 64>}, {pipeline_mode = #tpu.pipeline_mode<synchronous>, transform_indices = @transform_16, window_bounds = array<i64: 1, 64>}, {pipeline_mode = #tpu.pipeline_mode<synchronous>, transform_indices = @transform_17, window_bounds = array<i64: 64, 16>}, {pipeline_mode = #tpu.pipeline_mode<synchronous>, transform_indices = @transform_18, window_bounds = array<i64: 1, 16>}, {pipeline_mode = #tpu.pipeline_mode<synchronous>, transform_indices = @transform_19, window_bounds = array<i64: 128, 16>}, {pipeline_mode = #tpu.pipeline_mode<synchronous>, transform_indices = @transform_20, window_bounds = array<i64: 128, 32>}, {pipeline_mode = #tpu.pipeline_mode<synchronous>, transform_indices = @transform_21, window_bounds = array<i64: 128, 32>}, {pipeline_mode = #tpu.pipeline_mode<synchronous>, transform_indices = @transform_22, window_bounds = array<i64: 32, 24>}, {pipeline_mode = #tpu.pipeline_mode<synchronous>, transform_indices = @transform_23, window_bounds = array<i64: 32, 1>}, {pipeline_mode = #tpu.pipeline_mode<synchronous>, transform_indices = @transform_24, window_bounds = array<i64: 32, 16>}, {pipeline_mode = #tpu.pipeline_mode<synchronous>, transform_indices = @transform_25, window_bounds = array<i64: 32, 1>}, {transform_indices = @transform_26, window_bounds = array<i64: 1, 16, 32>}, {transform_indices = @transform_27, window_bounds = array<i64: 1, 16, 32>}]} {
    %c0 = arith.constant 0 : index
    %c0_0 = arith.constant 0 : index
    %c0_1 = arith.constant 0 : index
    %0 = vector.load %arg1[%c0, %c0_0, %c0_1] : memref<1x16x32xf32, #tpu.memory_space<vmem>>, vector<1x16x32xf32>
    %1 = vector.shape_cast %0 : vector<1x16x32xf32> to vector<16x32xf32>
    %c0_2 = arith.constant 0 : index
    %c0_3 = arith.constant 0 : index
    %2 = vector.load %arg4[%c0_2, %c0_3] : memref<16x16xf32, #tpu.memory_space<vmem>>, vector<16x16xf32>
    %c0_4 = arith.constant 0 : index
    %c0_5 = arith.constant 0 : index
    %c0_6 = arith.constant 0 : index
    %3 = vector.load %arg2[%c0_4, %c0_5, %c0_6] : memref<1x16x1xf32, #tpu.memory_space<vmem>>, vector<1x16x1xf32>
    %4 = vector.shape_cast %3 : vector<1x16x1xf32> to vector<16x1xf32>
    %5 = arith.truncf %2 : vector<16x16xf32> to vector<16x16xbf16>
    %6 = arith.truncf %4 : vector<16x1xf32> to vector<16x1xbf16>
    %cst = arith.constant dense<0.000000e+00> : vector<16x1xf32>
    %7 = tpu.matmul %5, %6, %cst {dimension_numbers = #tpu.dot_dimension_numbers<[1], [0], [0], [1], [0, 0, 1, 1], [], []>} : vector<16x16xbf16>, vector<16x1xbf16>, vector<16x1xf32> -> vector<16x1xf32>
    %c0_7 = arith.constant 0 : index
    %c0_8 = arith.constant 0 : index
    %8 = vector.load %arg5[%c0_7, %c0_8] : memref<16x1xf32, #tpu.memory_space<vmem>>, vector<16x1xf32>
    %9 = arith.addf %7, %8 : vector<16x1xf32>
    %10 = vector.broadcast %9 : vector<16x1xf32> to vector<16x32xf32>
    %11 = arith.addf %1, %10 : vector<16x32xf32>
    %12 = tpu.transpose %11, [1, 0] : vector<16x32xf32> -> vector<32x16xf32>
    %c0_9 = arith.constant 0 : index
    %c0_10 = arith.constant 0 : index
    %13 = vector.load %arg20[%c0_9, %c0_10] : memref<128x16xf32, #tpu.memory_space<vmem>>, vector<128x16xf32>
    %c0_11 = arith.constant 0 : index
    %c0_12 = arith.constant 0 : index
    %14 = vector.load %arg21[%c0_11, %c0_12] : memref<128x32xf32, #tpu.memory_space<vmem>>, vector<128x32xf32>
    %c0_13 = arith.constant 0 : index
    %c0_14 = arith.constant 0 : index
    %15 = vector.load %arg7[%c0_13, %c0_14] : memref<4x16xf32, #tpu.memory_space<vmem>>, vector<4x16xf32>
    %c0_15 = arith.constant 0 : index
    %c0_16 = arith.constant 0 : index
    %c0_17 = arith.constant 0 : index
    %16 = vector.load %arg6[%c0_15, %c0_16, %c0_17] : memref<4x16x16xf32, #tpu.memory_space<vmem>>, vector<1x16x16xf32>
    %17 = vector.shape_cast %16 : vector<1x16x16xf32> to vector<16x16xf32>
    %18 = arith.truncf %12 : vector<32x16xf32> to vector<32x16xbf16>
    %19 = arith.truncf %17 : vector<16x16xf32> to vector<16x16xbf16>
    %cst_18 = arith.constant dense<0.000000e+00> : vector<32x16xf32>
    %20 = tpu.matmul %18, %19, %cst_18 {dimension_numbers = #tpu.dot_dimension_numbers<[1], [0], [0], [1], [0, 0, 1, 1], [], []>} : vector<32x16xbf16>, vector<16x16xbf16>, vector<32x16xf32> -> vector<32x16xf32>
    %21 = vector.extract_strided_slice %15 {offsets = [0, 0], sizes = [1, 16], strides = [1, 1]} : vector<4x16xf32> to vector<1x16xf32>
    %22 = vector.broadcast %21 : vector<1x16xf32> to vector<32x16xf32>
    %23 = arith.addf %20, %22 : vector<32x16xf32>
    %c1 = arith.constant 1 : index
    %c0_19 = arith.constant 0 : index
    %c0_20 = arith.constant 0 : index
    %24 = vector.load %arg6[%c1, %c0_19, %c0_20] : memref<4x16x16xf32, #tpu.memory_space<vmem>>, vector<1x16x16xf32>
    %25 = vector.shape_cast %24 : vector<1x16x16xf32> to vector<16x16xf32>
    %26 = arith.truncf %12 : vector<32x16xf32> to vector<32x16xbf16>
    %27 = arith.truncf %25 : vector<16x16xf32> to vector<16x16xbf16>
    %cst_21 = arith.constant dense<0.000000e+00> : vector<32x16xf32>
    %28 = tpu.matmul %26, %27, %cst_21 {dimension_numbers = #tpu.dot_dimension_numbers<[1], [0], [0], [1], [0, 0, 1, 1], [], []>} : vector<32x16xbf16>, vector<16x16xbf16>, vector<32x16xf32> -> vector<32x16xf32>
    %29 = vector.extract_strided_slice %15 {offsets = [1, 0], sizes = [1, 16], strides = [1, 1]} : vector<4x16xf32> to vector<1x16xf32>
    %30 = vector.broadcast %29 : vector<1x16xf32> to vector<32x16xf32>
    %31 = arith.addf %28, %30 : vector<32x16xf32>
    %c2 = arith.constant 2 : index
    %c0_22 = arith.constant 0 : index
    %c0_23 = arith.constant 0 : index
    %32 = vector.load %arg6[%c2, %c0_22, %c0_23] : memref<4x16x16xf32, #tpu.memory_space<vmem>>, vector<1x16x16xf32>
    %33 = vector.shape_cast %32 : vector<1x16x16xf32> to vector<16x16xf32>
    %34 = arith.truncf %12 : vector<32x16xf32> to vector<32x16xbf16>
    %35 = arith.truncf %33 : vector<16x16xf32> to vector<16x16xbf16>
    %cst_24 = arith.constant dense<0.000000e+00> : vector<32x16xf32>
    %36 = tpu.matmul %34, %35, %cst_24 {dimension_numbers = #tpu.dot_dimension_numbers<[1], [0], [0], [1], [0, 0, 1, 1], [], []>} : vector<32x16xbf16>, vector<16x16xbf16>, vector<32x16xf32> -> vector<32x16xf32>
    %37 = vector.extract_strided_slice %15 {offsets = [2, 0], sizes = [1, 16], strides = [1, 1]} : vector<4x16xf32> to vector<1x16xf32>
    %38 = vector.broadcast %37 : vector<1x16xf32> to vector<32x16xf32>
    %39 = arith.addf %36, %38 : vector<32x16xf32>
    %40 = tpu.concatenate %23, %23, %23, %23 in 0 : vector<32x16xf32>, vector<32x16xf32>, vector<32x16xf32>, vector<32x16xf32> -> vector<128x16xf32>
    %41 = arith.mulf %40, %13 : vector<128x16xf32>
    %42 = arith.truncf %41 : vector<128x16xf32> to vector<128x16xbf16>
    %43 = arith.truncf %31 : vector<32x16xf32> to vector<32x16xbf16>
    %cst_25 = arith.constant dense<0.000000e+00> : vector<128x32xf32>
    %44 = tpu.matmul %42, %43, %cst_25 {dimension_numbers = #tpu.dot_dimension_numbers<[1], [1], [0], [0], [0, 0, 1, 0], [], []>} : vector<128x16xbf16>, vector<32x16xbf16>, vector<128x32xf32> -> vector<128x32xf32>
    %cst_26 = arith.constant 5.000000e-01 : f32
    %45 = vector.broadcast %cst_26 : f32 to vector<128x32xf32>
    %46 = arith.mulf %44, %45 : vector<128x32xf32>
    %47 = arith.addf %46, %14 : vector<128x32xf32>
    %cst_27 = arith.constant dense<0xFF800000> : vector<128xf32>
    %48 = vector.multi_reduction <maximumf>, %47, %cst_27 [1] : vector<128x32xf32> to vector<128xf32>
    %49 = vector.shape_cast %48 : vector<128xf32> to vector<128x1xf32>
    %50 = vector.broadcast %49 : vector<128x1xf32> to vector<128x32xf32>
    %51 = arith.subf %47, %50 : vector<128x32xf32>
    %52 = math.exp %51 : vector<128x32xf32>
    %cst_28 = arith.constant dense<0.000000e+00> : vector<128xf32>
    %53 = vector.multi_reduction <add>, %52, %cst_28 [1] : vector<128x32xf32> to vector<128xf32>
    %54 = vector.shape_cast %53 : vector<128xf32> to vector<128x1xf32>
    %55 = vector.broadcast %54 : vector<128x1xf32> to vector<128x32xf32>
    %56 = arith.divf %52, %55 : vector<128x32xf32>
    %57 = arith.truncf %56 : vector<128x32xf32> to vector<128x32xbf16>
    %58 = arith.truncf %39 : vector<32x16xf32> to vector<32x16xbf16>
    %cst_29 = arith.constant dense<0.000000e+00> : vector<128x16xf32>
    %59 = tpu.matmul %57, %58, %cst_29 {dimension_numbers = #tpu.dot_dimension_numbers<[1], [0], [0], [1], [0, 0, 1, 1], [], []>} : vector<128x32xbf16>, vector<32x16xbf16>, vector<128x16xf32> -> vector<128x16xf32>
    %60 = arith.mulf %59, %13 : vector<128x16xf32>
    %61 = vector.extract_strided_slice %60 {offsets = [0, 0], sizes = [32, 16], strides = [1, 1]} : vector<128x16xf32> to vector<32x16xf32>
    %62 = vector.extract_strided_slice %60 {offsets = [32, 0], sizes = [32, 16], strides = [1, 1]} : vector<128x16xf32> to vector<32x16xf32>
    %63 = arith.addf %61, %62 : vector<32x16xf32>
    %64 = vector.extract_strided_slice %60 {offsets = [64, 0], sizes = [32, 16], strides = [1, 1]} : vector<128x16xf32> to vector<32x16xf32>
    %65 = arith.addf %63, %64 : vector<32x16xf32>
    %66 = vector.extract_strided_slice %60 {offsets = [96, 0], sizes = [32, 16], strides = [1, 1]} : vector<128x16xf32> to vector<32x16xf32>
    %67 = arith.addf %65, %66 : vector<32x16xf32>
    %c3 = arith.constant 3 : index
    %c0_30 = arith.constant 0 : index
    %c0_31 = arith.constant 0 : index
    %68 = vector.load %arg6[%c3, %c0_30, %c0_31] : memref<4x16x16xf32, #tpu.memory_space<vmem>>, vector<1x16x16xf32>
    %69 = vector.shape_cast %68 : vector<1x16x16xf32> to vector<16x16xf32>
    %70 = arith.truncf %67 : vector<32x16xf32> to vector<32x16xbf16>
    %71 = arith.truncf %69 : vector<16x16xf32> to vector<16x16xbf16>
    %cst_32 = arith.constant dense<0.000000e+00> : vector<32x16xf32>
    %72 = tpu.matmul %70, %71, %cst_32 {dimension_numbers = #tpu.dot_dimension_numbers<[1], [0], [0], [1], [0, 0, 1, 1], [], []>} : vector<32x16xbf16>, vector<16x16xbf16>, vector<32x16xf32> -> vector<32x16xf32>
    %73 = vector.extract_strided_slice %15 {offsets = [3, 0], sizes = [1, 16], strides = [1, 1]} : vector<4x16xf32> to vector<1x16xf32>
    %74 = vector.broadcast %73 : vector<1x16xf32> to vector<32x16xf32>
    %75 = arith.addf %72, %74 : vector<32x16xf32>
    %c0_33 = arith.constant 0 : index
    %c0_34 = arith.constant 0 : index
    %76 = vector.load %arg8[%c0_33, %c0_34] : memref<4x16xf32, #tpu.memory_space<vmem>>, vector<4x16xf32>
    %77 = arith.addf %12, %75 : vector<32x16xf32>
    %78 = vector.extract_strided_slice %76 {offsets = [0, 0], sizes = [1, 16], strides = [1, 1]} : vector<4x16xf32> to vector<1x16xf32>
    %79 = vector.extract_strided_slice %76 {offsets = [1, 0], sizes = [1, 16], strides = [1, 1]} : vector<4x16xf32> to vector<1x16xf32>
    %cst_35 = arith.constant dense<0.000000e+00> : vector<32xf32>
    %80 = vector.multi_reduction <add>, %77, %cst_35 [1] : vector<32x16xf32> to vector<32xf32>
    %81 = vector.shape_cast %80 : vector<32xf32> to vector<32x1xf32>
    %cst_36 = arith.constant 1.600000e+01 : f32
    %82 = vector.broadcast %cst_36 : f32 to vector<32x1xf32>
    %83 = arith.divf %81, %82 : vector<32x1xf32>
    %84 = vector.broadcast %83 : vector<32x1xf32> to vector<32x16xf32>
    %85 = arith.subf %77, %84 : vector<32x16xf32>
    %86 = arith.mulf %85, %85 : vector<32x16xf32>
    %cst_37 = arith.constant dense<0.000000e+00> : vector<32xf32>
    %87 = vector.multi_reduction <add>, %86, %cst_37 [1] : vector<32x16xf32> to vector<32xf32>
    %88 = vector.shape_cast %87 : vector<32xf32> to vector<32x1xf32>
    %cst_38 = arith.constant 1.600000e+01 : f32
    %89 = vector.broadcast %cst_38 : f32 to vector<32x1xf32>
    %90 = arith.divf %88, %89 : vector<32x1xf32>
    %91 = vector.broadcast %83 : vector<32x1xf32> to vector<32x16xf32>
    %92 = arith.subf %77, %91 : vector<32x16xf32>
    %cst_39 = arith.constant 9.99999974E-6 : f32
    %93 = vector.broadcast %cst_39 : f32 to vector<32x1xf32>
    %94 = arith.addf %90, %93 : vector<32x1xf32>
    %95 = math.rsqrt %94 : vector<32x1xf32>
    %96 = vector.broadcast %95 : vector<32x1xf32> to vector<32x16xf32>
    %97 = arith.mulf %92, %96 : vector<32x16xf32>
    %98 = vector.broadcast %78 : vector<1x16xf32> to vector<32x16xf32>
    %99 = arith.mulf %97, %98 : vector<32x16xf32>
    %100 = vector.broadcast %79 : vector<1x16xf32> to vector<32x16xf32>
    %101 = arith.addf %99, %100 : vector<32x16xf32>
    %c0_40 = arith.constant 0 : index
    %c0_41 = arith.constant 0 : index
    %102 = vector.load %arg9[%c0_40, %c0_41] : memref<16x64xf32, #tpu.memory_space<vmem>>, vector<16x64xf32>
    %103 = arith.truncf %101 : vector<32x16xf32> to vector<32x16xbf16>
    %104 = arith.truncf %102 : vector<16x64xf32> to vector<16x64xbf16>
    %cst_42 = arith.constant dense<0.000000e+00> : vector<32x64xf32>
    %105 = tpu.matmul %103, %104, %cst_42 {dimension_numbers = #tpu.dot_dimension_numbers<[1], [0], [0], [1], [0, 0, 1, 1], [], []>} : vector<32x16xbf16>, vector<16x64xbf16>, vector<32x64xf32> -> vector<32x64xf32>
    %c0_43 = arith.constant 0 : index
    %c0_44 = arith.constant 0 : index
    %106 = vector.load %arg10[%c0_43, %c0_44] : memref<1x64xf32, #tpu.memory_space<vmem>>, vector<1x64xf32>
    %107 = vector.broadcast %106 : vector<1x64xf32> to vector<32x64xf32>
    %108 = arith.addf %105, %107 : vector<32x64xf32>
    %cst_45 = arith.constant 5.000000e-01 : f32
    %109 = vector.broadcast %cst_45 : f32 to vector<32x64xf32>
    %110 = arith.mulf %109, %108 : vector<32x64xf32>
    %cst_46 = arith.constant 4.471500e-02 : f32
    %111 = vector.broadcast %cst_46 : f32 to vector<32x64xf32>
    %112 = arith.mulf %111, %108 : vector<32x64xf32>
    %113 = arith.mulf %112, %108 : vector<32x64xf32>
    %114 = arith.mulf %113, %108 : vector<32x64xf32>
    %115 = arith.addf %108, %114 : vector<32x64xf32>
    %cst_47 = arith.constant 0.797884583 : f32
    %116 = vector.broadcast %cst_47 : f32 to vector<32x64xf32>
    %117 = arith.mulf %116, %115 : vector<32x64xf32>
    %118 = math.tanh %117 : vector<32x64xf32>
    %cst_48 = arith.constant 1.000000e+00 : f32
    %119 = vector.broadcast %cst_48 : f32 to vector<32x64xf32>
    %120 = arith.addf %119, %118 : vector<32x64xf32>
    %121 = arith.mulf %110, %120 : vector<32x64xf32>
    %c0_49 = arith.constant 0 : index
    %c0_50 = arith.constant 0 : index
    %122 = vector.load %arg11[%c0_49, %c0_50] : memref<64x16xf32, #tpu.memory_space<vmem>>, vector<64x16xf32>
    %123 = arith.truncf %121 : vector<32x64xf32> to vector<32x64xbf16>
    %124 = arith.truncf %122 : vector<64x16xf32> to vector<64x16xbf16>
    %cst_51 = arith.constant dense<0.000000e+00> : vector<32x16xf32>
    %125 = tpu.matmul %123, %124, %cst_51 {dimension_numbers = #tpu.dot_dimension_numbers<[1], [0], [0], [1], [0, 0, 1, 1], [], []>} : vector<32x64xbf16>, vector<64x16xbf16>, vector<32x16xf32> -> vector<32x16xf32>
    %c0_52 = arith.constant 0 : index
    %c0_53 = arith.constant 0 : index
    %126 = vector.load %arg12[%c0_52, %c0_53] : memref<1x16xf32, #tpu.memory_space<vmem>>, vector<1x16xf32>
    %127 = vector.broadcast %126 : vector<1x16xf32> to vector<32x16xf32>
    %128 = arith.addf %125, %127 : vector<32x16xf32>
    %129 = arith.addf %101, %128 : vector<32x16xf32>
    %130 = vector.extract_strided_slice %76 {offsets = [2, 0], sizes = [1, 16], strides = [1, 1]} : vector<4x16xf32> to vector<1x16xf32>
    %131 = vector.extract_strided_slice %76 {offsets = [3, 0], sizes = [1, 16], strides = [1, 1]} : vector<4x16xf32> to vector<1x16xf32>
    %cst_54 = arith.constant dense<0.000000e+00> : vector<32xf32>
    %132 = vector.multi_reduction <add>, %129, %cst_54 [1] : vector<32x16xf32> to vector<32xf32>
    %133 = vector.shape_cast %132 : vector<32xf32> to vector<32x1xf32>
    %cst_55 = arith.constant 1.600000e+01 : f32
    %134 = vector.broadcast %cst_55 : f32 to vector<32x1xf32>
    %135 = arith.divf %133, %134 : vector<32x1xf32>
    %136 = vector.broadcast %135 : vector<32x1xf32> to vector<32x16xf32>
    %137 = arith.subf %129, %136 : vector<32x16xf32>
    %138 = arith.mulf %137, %137 : vector<32x16xf32>
    %cst_56 = arith.constant dense<0.000000e+00> : vector<32xf32>
    %139 = vector.multi_reduction <add>, %138, %cst_56 [1] : vector<32x16xf32> to vector<32xf32>
    %140 = vector.shape_cast %139 : vector<32xf32> to vector<32x1xf32>
    %cst_57 = arith.constant 1.600000e+01 : f32
    %141 = vector.broadcast %cst_57 : f32 to vector<32x1xf32>
    %142 = arith.divf %140, %141 : vector<32x1xf32>
    %143 = vector.broadcast %135 : vector<32x1xf32> to vector<32x16xf32>
    %144 = arith.subf %129, %143 : vector<32x16xf32>
    %cst_58 = arith.constant 9.99999974E-6 : f32
    %145 = vector.broadcast %cst_58 : f32 to vector<32x1xf32>
    %146 = arith.addf %142, %145 : vector<32x1xf32>
    %147 = math.rsqrt %146 : vector<32x1xf32>
    %148 = vector.broadcast %147 : vector<32x1xf32> to vector<32x16xf32>
    %149 = arith.mulf %144, %148 : vector<32x16xf32>
    %150 = vector.broadcast %130 : vector<1x16xf32> to vector<32x16xf32>
    %151 = arith.mulf %149, %150 : vector<32x16xf32>
    %152 = vector.broadcast %131 : vector<1x16xf32> to vector<32x16xf32>
    %153 = arith.addf %151, %152 : vector<32x16xf32>
    %c0_59 = arith.constant 0 : index
    %c0_60 = arith.constant 0 : index
    %154 = vector.load %arg22[%c0_59, %c0_60] : memref<128x32xf32, #tpu.memory_space<vmem>>, vector<128x32xf32>
    %c0_61 = arith.constant 0 : index
    %c0_62 = arith.constant 0 : index
    %155 = vector.load %arg14[%c0_61, %c0_62] : memref<4x16xf32, #tpu.memory_space<vmem>>, vector<4x16xf32>
    %c0_63 = arith.constant 0 : index
    %c0_64 = arith.constant 0 : index
    %c0_65 = arith.constant 0 : index
    %156 = vector.load %arg13[%c0_63, %c0_64, %c0_65] : memref<4x16x16xf32, #tpu.memory_space<vmem>>, vector<1x16x16xf32>
    %157 = vector.shape_cast %156 : vector<1x16x16xf32> to vector<16x16xf32>
    %158 = arith.truncf %153 : vector<32x16xf32> to vector<32x16xbf16>
    %159 = arith.truncf %157 : vector<16x16xf32> to vector<16x16xbf16>
    %cst_66 = arith.constant dense<0.000000e+00> : vector<32x16xf32>
    %160 = tpu.matmul %158, %159, %cst_66 {dimension_numbers = #tpu.dot_dimension_numbers<[1], [0], [0], [1], [0, 0, 1, 1], [], []>} : vector<32x16xbf16>, vector<16x16xbf16>, vector<32x16xf32> -> vector<32x16xf32>
    %161 = vector.extract_strided_slice %155 {offsets = [0, 0], sizes = [1, 16], strides = [1, 1]} : vector<4x16xf32> to vector<1x16xf32>
    %162 = vector.broadcast %161 : vector<1x16xf32> to vector<32x16xf32>
    %163 = arith.addf %160, %162 : vector<32x16xf32>
    %c1_67 = arith.constant 1 : index
    %c0_68 = arith.constant 0 : index
    %c0_69 = arith.constant 0 : index
    %164 = vector.load %arg13[%c1_67, %c0_68, %c0_69] : memref<4x16x16xf32, #tpu.memory_space<vmem>>, vector<1x16x16xf32>
    %165 = vector.shape_cast %164 : vector<1x16x16xf32> to vector<16x16xf32>
    %166 = arith.truncf %153 : vector<32x16xf32> to vector<32x16xbf16>
    %167 = arith.truncf %165 : vector<16x16xf32> to vector<16x16xbf16>
    %cst_70 = arith.constant dense<0.000000e+00> : vector<32x16xf32>
    %168 = tpu.matmul %166, %167, %cst_70 {dimension_numbers = #tpu.dot_dimension_numbers<[1], [0], [0], [1], [0, 0, 1, 1], [], []>} : vector<32x16xbf16>, vector<16x16xbf16>, vector<32x16xf32> -> vector<32x16xf32>
    %169 = vector.extract_strided_slice %155 {offsets = [1, 0], sizes = [1, 16], strides = [1, 1]} : vector<4x16xf32> to vector<1x16xf32>
    %170 = vector.broadcast %169 : vector<1x16xf32> to vector<32x16xf32>
    %171 = arith.addf %168, %170 : vector<32x16xf32>
    %c2_71 = arith.constant 2 : index
    %c0_72 = arith.constant 0 : index
    %c0_73 = arith.constant 0 : index
    %172 = vector.load %arg13[%c2_71, %c0_72, %c0_73] : memref<4x16x16xf32, #tpu.memory_space<vmem>>, vector<1x16x16xf32>
    %173 = vector.shape_cast %172 : vector<1x16x16xf32> to vector<16x16xf32>
    %174 = arith.truncf %153 : vector<32x16xf32> to vector<32x16xbf16>
    %175 = arith.truncf %173 : vector<16x16xf32> to vector<16x16xbf16>
    %cst_74 = arith.constant dense<0.000000e+00> : vector<32x16xf32>
    %176 = tpu.matmul %174, %175, %cst_74 {dimension_numbers = #tpu.dot_dimension_numbers<[1], [0], [0], [1], [0, 0, 1, 1], [], []>} : vector<32x16xbf16>, vector<16x16xbf16>, vector<32x16xf32> -> vector<32x16xf32>
    %177 = vector.extract_strided_slice %155 {offsets = [2, 0], sizes = [1, 16], strides = [1, 1]} : vector<4x16xf32> to vector<1x16xf32>
    %178 = vector.broadcast %177 : vector<1x16xf32> to vector<32x16xf32>
    %179 = arith.addf %176, %178 : vector<32x16xf32>
    %180 = tpu.concatenate %163, %163, %163, %163 in 0 : vector<32x16xf32>, vector<32x16xf32>, vector<32x16xf32>, vector<32x16xf32> -> vector<128x16xf32>
    %181 = arith.mulf %180, %13 : vector<128x16xf32>
    %182 = arith.truncf %181 : vector<128x16xf32> to vector<128x16xbf16>
    %183 = arith.truncf %171 : vector<32x16xf32> to vector<32x16xbf16>
    %cst_75 = arith.constant dense<0.000000e+00> : vector<128x32xf32>
    %184 = tpu.matmul %182, %183, %cst_75 {dimension_numbers = #tpu.dot_dimension_numbers<[1], [1], [0], [0], [0, 0, 1, 0], [], []>} : vector<128x16xbf16>, vector<32x16xbf16>, vector<128x32xf32> -> vector<128x32xf32>
    %cst_76 = arith.constant 5.000000e-01 : f32
    %185 = vector.broadcast %cst_76 : f32 to vector<128x32xf32>
    %186 = arith.mulf %184, %185 : vector<128x32xf32>
    %187 = arith.addf %186, %154 : vector<128x32xf32>
    %cst_77 = arith.constant dense<0xFF800000> : vector<128xf32>
    %188 = vector.multi_reduction <maximumf>, %187, %cst_77 [1] : vector<128x32xf32> to vector<128xf32>
    %189 = vector.shape_cast %188 : vector<128xf32> to vector<128x1xf32>
    %190 = vector.broadcast %189 : vector<128x1xf32> to vector<128x32xf32>
    %191 = arith.subf %187, %190 : vector<128x32xf32>
    %192 = math.exp %191 : vector<128x32xf32>
    %cst_78 = arith.constant dense<0.000000e+00> : vector<128xf32>
    %193 = vector.multi_reduction <add>, %192, %cst_78 [1] : vector<128x32xf32> to vector<128xf32>
    %194 = vector.shape_cast %193 : vector<128xf32> to vector<128x1xf32>
    %195 = vector.broadcast %194 : vector<128x1xf32> to vector<128x32xf32>
    %196 = arith.divf %192, %195 : vector<128x32xf32>
    %197 = arith.truncf %196 : vector<128x32xf32> to vector<128x32xbf16>
    %198 = arith.truncf %179 : vector<32x16xf32> to vector<32x16xbf16>
    %cst_79 = arith.constant dense<0.000000e+00> : vector<128x16xf32>
    %199 = tpu.matmul %197, %198, %cst_79 {dimension_numbers = #tpu.dot_dimension_numbers<[1], [0], [0], [1], [0, 0, 1, 1], [], []>} : vector<128x32xbf16>, vector<32x16xbf16>, vector<128x16xf32> -> vector<128x16xf32>
    %200 = arith.mulf %199, %13 : vector<128x16xf32>
    %201 = vector.extract_strided_slice %200 {offsets = [0, 0], sizes = [32, 16], strides = [1, 1]} : vector<128x16xf32> to vector<32x16xf32>
    %202 = vector.extract_strided_slice %200 {offsets = [32, 0], sizes = [32, 16], strides = [1, 1]} : vector<128x16xf32> to vector<32x16xf32>
    %203 = arith.addf %201, %202 : vector<32x16xf32>
    %204 = vector.extract_strided_slice %200 {offsets = [64, 0], sizes = [32, 16], strides = [1, 1]} : vector<128x16xf32> to vector<32x16xf32>
    %205 = arith.addf %203, %204 : vector<32x16xf32>
    %206 = vector.extract_strided_slice %200 {offsets = [96, 0], sizes = [32, 16], strides = [1, 1]} : vector<128x16xf32> to vector<32x16xf32>
    %207 = arith.addf %205, %206 : vector<32x16xf32>
    %c3_80 = arith.constant 3 : index
    %c0_81 = arith.constant 0 : index
    %c0_82 = arith.constant 0 : index
    %208 = vector.load %arg13[%c3_80, %c0_81, %c0_82] : memref<4x16x16xf32, #tpu.memory_space<vmem>>, vector<1x16x16xf32>
    %209 = vector.shape_cast %208 : vector<1x16x16xf32> to vector<16x16xf32>
    %210 = arith.truncf %207 : vector<32x16xf32> to vector<32x16xbf16>
    %211 = arith.truncf %209 : vector<16x16xf32> to vector<16x16xbf16>
    %cst_83 = arith.constant dense<0.000000e+00> : vector<32x16xf32>
    %212 = tpu.matmul %210, %211, %cst_83 {dimension_numbers = #tpu.dot_dimension_numbers<[1], [0], [0], [1], [0, 0, 1, 1], [], []>} : vector<32x16xbf16>, vector<16x16xbf16>, vector<32x16xf32> -> vector<32x16xf32>
    %213 = vector.extract_strided_slice %155 {offsets = [3, 0], sizes = [1, 16], strides = [1, 1]} : vector<4x16xf32> to vector<1x16xf32>
    %214 = vector.broadcast %213 : vector<1x16xf32> to vector<32x16xf32>
    %215 = arith.addf %212, %214 : vector<32x16xf32>
    %c0_84 = arith.constant 0 : index
    %c0_85 = arith.constant 0 : index
    %216 = vector.load %arg15[%c0_84, %c0_85] : memref<4x16xf32, #tpu.memory_space<vmem>>, vector<4x16xf32>
    %217 = arith.addf %153, %215 : vector<32x16xf32>
    %218 = vector.extract_strided_slice %216 {offsets = [0, 0], sizes = [1, 16], strides = [1, 1]} : vector<4x16xf32> to vector<1x16xf32>
    %219 = vector.extract_strided_slice %216 {offsets = [1, 0], sizes = [1, 16], strides = [1, 1]} : vector<4x16xf32> to vector<1x16xf32>
    %cst_86 = arith.constant dense<0.000000e+00> : vector<32xf32>
    %220 = vector.multi_reduction <add>, %217, %cst_86 [1] : vector<32x16xf32> to vector<32xf32>
    %221 = vector.shape_cast %220 : vector<32xf32> to vector<32x1xf32>
    %cst_87 = arith.constant 1.600000e+01 : f32
    %222 = vector.broadcast %cst_87 : f32 to vector<32x1xf32>
    %223 = arith.divf %221, %222 : vector<32x1xf32>
    %224 = vector.broadcast %223 : vector<32x1xf32> to vector<32x16xf32>
    %225 = arith.subf %217, %224 : vector<32x16xf32>
    %226 = arith.mulf %225, %225 : vector<32x16xf32>
    %cst_88 = arith.constant dense<0.000000e+00> : vector<32xf32>
    %227 = vector.multi_reduction <add>, %226, %cst_88 [1] : vector<32x16xf32> to vector<32xf32>
    %228 = vector.shape_cast %227 : vector<32xf32> to vector<32x1xf32>
    %cst_89 = arith.constant 1.600000e+01 : f32
    %229 = vector.broadcast %cst_89 : f32 to vector<32x1xf32>
    %230 = arith.divf %228, %229 : vector<32x1xf32>
    %231 = vector.broadcast %223 : vector<32x1xf32> to vector<32x16xf32>
    %232 = arith.subf %217, %231 : vector<32x16xf32>
    %cst_90 = arith.constant 9.99999974E-6 : f32
    %233 = vector.broadcast %cst_90 : f32 to vector<32x1xf32>
    %234 = arith.addf %230, %233 : vector<32x1xf32>
    %235 = math.rsqrt %234 : vector<32x1xf32>
    %236 = vector.broadcast %235 : vector<32x1xf32> to vector<32x16xf32>
    %237 = arith.mulf %232, %236 : vector<32x16xf32>
    %238 = vector.broadcast %218 : vector<1x16xf32> to vector<32x16xf32>
    %239 = arith.mulf %237, %238 : vector<32x16xf32>
    %240 = vector.broadcast %219 : vector<1x16xf32> to vector<32x16xf32>
    %241 = arith.addf %239, %240 : vector<32x16xf32>
    %c0_91 = arith.constant 0 : index
    %c0_92 = arith.constant 0 : index
    %242 = vector.load %arg16[%c0_91, %c0_92] : memref<16x64xf32, #tpu.memory_space<vmem>>, vector<16x64xf32>
    %243 = arith.truncf %241 : vector<32x16xf32> to vector<32x16xbf16>
    %244 = arith.truncf %242 : vector<16x64xf32> to vector<16x64xbf16>
    %cst_93 = arith.constant dense<0.000000e+00> : vector<32x64xf32>
    %245 = tpu.matmul %243, %244, %cst_93 {dimension_numbers = #tpu.dot_dimension_numbers<[1], [0], [0], [1], [0, 0, 1, 1], [], []>} : vector<32x16xbf16>, vector<16x64xbf16>, vector<32x64xf32> -> vector<32x64xf32>
    %c0_94 = arith.constant 0 : index
    %c0_95 = arith.constant 0 : index
    %246 = vector.load %arg17[%c0_94, %c0_95] : memref<1x64xf32, #tpu.memory_space<vmem>>, vector<1x64xf32>
    %247 = vector.broadcast %246 : vector<1x64xf32> to vector<32x64xf32>
    %248 = arith.addf %245, %247 : vector<32x64xf32>
    %cst_96 = arith.constant 5.000000e-01 : f32
    %249 = vector.broadcast %cst_96 : f32 to vector<32x64xf32>
    %250 = arith.mulf %249, %248 : vector<32x64xf32>
    %cst_97 = arith.constant 4.471500e-02 : f32
    %251 = vector.broadcast %cst_97 : f32 to vector<32x64xf32>
    %252 = arith.mulf %251, %248 : vector<32x64xf32>
    %253 = arith.mulf %252, %248 : vector<32x64xf32>
    %254 = arith.mulf %253, %248 : vector<32x64xf32>
    %255 = arith.addf %248, %254 : vector<32x64xf32>
    %cst_98 = arith.constant 0.797884583 : f32
    %256 = vector.broadcast %cst_98 : f32 to vector<32x64xf32>
    %257 = arith.mulf %256, %255 : vector<32x64xf32>
    %258 = math.tanh %257 : vector<32x64xf32>
    %cst_99 = arith.constant 1.000000e+00 : f32
    %259 = vector.broadcast %cst_99 : f32 to vector<32x64xf32>
    %260 = arith.addf %259, %258 : vector<32x64xf32>
    %261 = arith.mulf %250, %260 : vector<32x64xf32>
    %c0_100 = arith.constant 0 : index
    %c0_101 = arith.constant 0 : index
    %262 = vector.load %arg18[%c0_100, %c0_101] : memref<64x16xf32, #tpu.memory_space<vmem>>, vector<64x16xf32>
    %263 = arith.truncf %261 : vector<32x64xf32> to vector<32x64xbf16>
    %264 = arith.truncf %262 : vector<64x16xf32> to vector<64x16xbf16>
    %cst_102 = arith.constant dense<0.000000e+00> : vector<32x16xf32>
    %265 = tpu.matmul %263, %264, %cst_102 {dimension_numbers = #tpu.dot_dimension_numbers<[1], [0], [0], [1], [0, 0, 1, 1], [], []>} : vector<32x64xbf16>, vector<64x16xbf16>, vector<32x16xf32> -> vector<32x16xf32>
    %c0_103 = arith.constant 0 : index
    %c0_104 = arith.constant 0 : index
    %266 = vector.load %arg19[%c0_103, %c0_104] : memref<1x16xf32, #tpu.memory_space<vmem>>, vector<1x16xf32>
    %267 = vector.broadcast %266 : vector<1x16xf32> to vector<32x16xf32>
    %268 = arith.addf %265, %267 : vector<32x16xf32>
    %269 = arith.addf %241, %268 : vector<32x16xf32>
    %270 = vector.extract_strided_slice %216 {offsets = [2, 0], sizes = [1, 16], strides = [1, 1]} : vector<4x16xf32> to vector<1x16xf32>
    %271 = vector.extract_strided_slice %216 {offsets = [3, 0], sizes = [1, 16], strides = [1, 1]} : vector<4x16xf32> to vector<1x16xf32>
    %cst_105 = arith.constant dense<0.000000e+00> : vector<32xf32>
    %272 = vector.multi_reduction <add>, %269, %cst_105 [1] : vector<32x16xf32> to vector<32xf32>
    %273 = vector.shape_cast %272 : vector<32xf32> to vector<32x1xf32>
    %cst_106 = arith.constant 1.600000e+01 : f32
    %274 = vector.broadcast %cst_106 : f32 to vector<32x1xf32>
    %275 = arith.divf %273, %274 : vector<32x1xf32>
    %276 = vector.broadcast %275 : vector<32x1xf32> to vector<32x16xf32>
    %277 = arith.subf %269, %276 : vector<32x16xf32>
    %278 = arith.mulf %277, %277 : vector<32x16xf32>
    %cst_107 = arith.constant dense<0.000000e+00> : vector<32xf32>
    %279 = vector.multi_reduction <add>, %278, %cst_107 [1] : vector<32x16xf32> to vector<32xf32>
    %280 = vector.shape_cast %279 : vector<32xf32> to vector<32x1xf32>
    %cst_108 = arith.constant 1.600000e+01 : f32
    %281 = vector.broadcast %cst_108 : f32 to vector<32x1xf32>
    %282 = arith.divf %280, %281 : vector<32x1xf32>
    %283 = vector.broadcast %275 : vector<32x1xf32> to vector<32x16xf32>
    %284 = arith.subf %269, %283 : vector<32x16xf32>
    %cst_109 = arith.constant 9.99999974E-6 : f32
    %285 = vector.broadcast %cst_109 : f32 to vector<32x1xf32>
    %286 = arith.addf %282, %285 : vector<32x1xf32>
    %287 = math.rsqrt %286 : vector<32x1xf32>
    %288 = vector.broadcast %287 : vector<32x1xf32> to vector<32x16xf32>
    %289 = arith.mulf %284, %288 : vector<32x16xf32>
    %290 = vector.broadcast %270 : vector<1x16xf32> to vector<32x16xf32>
    %291 = arith.mulf %289, %290 : vector<32x16xf32>
    %292 = vector.broadcast %271 : vector<1x16xf32> to vector<32x16xf32>
    %293 = arith.addf %291, %292 : vector<32x16xf32>
    %294 = tpu.transpose %293, [1, 0] : vector<32x16xf32> -> vector<16x32xf32>
    %c0_110 = arith.constant 0 : index
    %c0_111 = arith.constant 0 : index
    %c0_112 = arith.constant 0 : index
    %295 = vector.load %arg3[%c0_110, %c0_111, %c0_112] : memref<1x8x32xf32, #tpu.memory_space<vmem>>, vector<1x8x32xf32>
    %296 = vector.shape_cast %295 : vector<1x8x32xf32> to vector<8x32xf32>
    %297 = tpu.concatenate %294, %296 in 0 : vector<16x32xf32>, vector<8x32xf32> -> vector<24x32xf32>
    %c0_113 = arith.constant 0 : index
    %c0_114 = arith.constant 0 : index
    %298 = vector.load %arg23[%c0_113, %c0_114] : memref<32x24xf32, #tpu.memory_space<vmem>>, vector<32x24xf32>
    %299 = arith.truncf %298 : vector<32x24xf32> to vector<32x24xbf16>
    %300 = arith.truncf %297 : vector<24x32xf32> to vector<24x32xbf16>
    %cst_115 = arith.constant dense<0.000000e+00> : vector<32x32xf32>
    %301 = tpu.matmul %299, %300, %cst_115 {dimension_numbers = #tpu.dot_dimension_numbers<[1], [0], [0], [1], [0, 0, 1, 1], [], []>} : vector<32x24xbf16>, vector<24x32xbf16>, vector<32x32xf32> -> vector<32x32xf32>
    %c0_116 = arith.constant 0 : index
    %c0_117 = arith.constant 0 : index
    %302 = vector.load %arg24[%c0_116, %c0_117] : memref<32x1xf32, #tpu.memory_space<vmem>>, vector<32x1xf32>
    %303 = vector.broadcast %302 : vector<32x1xf32> to vector<32x32xf32>
    %304 = arith.addf %301, %303 : vector<32x32xf32>
    %305 = vector.extract_strided_slice %304 {offsets = [0, 0], sizes = [16, 32], strides = [1, 1]} : vector<32x32xf32> to vector<16x32xf32>
    %306 = vector.extract_strided_slice %304 {offsets = [16, 0], sizes = [16, 32], strides = [1, 1]} : vector<32x32xf32> to vector<16x32xf32>
    %307 = arith.negf %305 : vector<16x32xf32>
    %308 = math.exp %307 : vector<16x32xf32>
    %cst_118 = arith.constant 1.000000e+00 : f32
    %309 = vector.broadcast %cst_118 : f32 to vector<16x32xf32>
    %310 = arith.addf %309, %308 : vector<16x32xf32>
    %311 = arith.divf %309, %310 : vector<16x32xf32>
    %312 = math.tanh %306 : vector<16x32xf32>
    %313 = arith.mulf %311, %312 : vector<16x32xf32>
    %c0_119 = arith.constant 0 : index
    %c0_120 = arith.constant 0 : index
    %314 = vector.load %arg25[%c0_119, %c0_120] : memref<32x16xf32, #tpu.memory_space<vmem>>, vector<32x16xf32>
    %315 = arith.truncf %314 : vector<32x16xf32> to vector<32x16xbf16>
    %316 = arith.truncf %313 : vector<16x32xf32> to vector<16x32xbf16>
    %cst_121 = arith.constant dense<0.000000e+00> : vector<32x32xf32>
    %317 = tpu.matmul %315, %316, %cst_121 {dimension_numbers = #tpu.dot_dimension_numbers<[1], [0], [0], [1], [0, 0, 1, 1], [], []>} : vector<32x16xbf16>, vector<16x32xbf16>, vector<32x32xf32> -> vector<32x32xf32>
    %c0_122 = arith.constant 0 : index
    %c0_123 = arith.constant 0 : index
    %318 = vector.load %arg26[%c0_122, %c0_123] : memref<32x1xf32, #tpu.memory_space<vmem>>, vector<32x1xf32>
    %319 = vector.broadcast %318 : vector<32x1xf32> to vector<32x32xf32>
    %320 = arith.addf %317, %319 : vector<32x32xf32>
    %321 = vector.extract_strided_slice %320 {offsets = [0, 0], sizes = [16, 32], strides = [1, 1]} : vector<32x32xf32> to vector<16x32xf32>
    %322 = arith.addf %1, %321 : vector<16x32xf32>
    %cst_124 = arith.constant 0.707106769 : f32
    %323 = vector.broadcast %cst_124 : f32 to vector<16x32xf32>
    %324 = arith.mulf %322, %323 : vector<16x32xf32>
    %c0_125 = arith.constant 0 : index
    %c0_126 = arith.constant 0 : index
    %c0_127 = arith.constant 0 : index
    %325 = vector.load %arg27[%c0_125, %c0_126, %c0_127] : memref<1x16x32xf32, #tpu.memory_space<vmem>>, vector<1x16x32xf32>
    %326 = vector.shape_cast %325 : vector<1x16x32xf32> to vector<16x32xf32>
    %327 = vector.shape_cast %324 : vector<16x32xf32> to vector<1x16x32xf32>
    tpu.vector_store %arg27[%c0_125, %c0_126, %c0_127], %327 {strides = array<i32>} : memref<1x16x32xf32, #tpu.memory_space<vmem>>, vector<1x16x32xf32>,
    %328 = vector.extract_strided_slice %320 {offsets = [16, 0], sizes = [16, 32], strides = [1, 1]} : vector<32x32xf32> to vector<16x32xf32>
    %c0_128 = arith.constant 0 : index
    %c0_129 = arith.constant 0 : index
    %c0_130 = arith.constant 0 : index
    %329 = vector.load %arg28[%c0_128, %c0_129, %c0_130] : memref<1x16x32xf32, #tpu.memory_space<vmem>>, vector<1x16x32xf32>
    %330 = vector.shape_cast %329 : vector<1x16x32xf32> to vector<16x32xf32>
    %331 = vector.shape_cast %328 : vector<16x32xf32> to vector<1x16x32xf32>
    tpu.vector_store %arg28[%c0_128, %c0_129, %c0_130], %331 {strides = array<i32>} : memref<1x16x32xf32, #tpu.memory_space<vmem>>, vector<1x16x32xf32>,
    return
  }
  func.func @transform_0(%arg0: i32) -> (i32, i32, i32) {
    %c0_i32 = arith.constant 0 : i32
    %c0_i32_0 = arith.constant 0 : i32
    %c0_i32_1 = arith.constant 0 : i32
    return %arg0, %c0_i32, %c0_i32_0 : i32, i32, i32
  }
  func.func @transform_1(%arg0: i32) -> (i32, i32, i32) {
    %c0_i32 = arith.constant 0 : i32
    %c0_i32_0 = arith.constant 0 : i32
    %c0_i32_1 = arith.constant 0 : i32
    return %arg0, %c0_i32, %c0_i32_0 : i32, i32, i32
  }
  func.func @transform_2(%arg0: i32) -> (i32, i32, i32) {
    %c0_i32 = arith.constant 0 : i32
    %c0_i32_0 = arith.constant 0 : i32
    %c0_i32_1 = arith.constant 0 : i32
    return %arg0, %c0_i32, %c0_i32_0 : i32, i32, i32
  }
  func.func @transform_3(%arg0: i32) -> (i32, i32) {
    %c0_i32 = arith.constant 0 : i32
    %c0_i32_0 = arith.constant 0 : i32
    %c0_i32_1 = arith.constant 0 : i32
    return %c0_i32, %c0_i32_0 : i32, i32
  }
  func.func @transform_4(%arg0: i32) -> (i32, i32) {
    %c0_i32 = arith.constant 0 : i32
    %c0_i32_0 = arith.constant 0 : i32
    %c0_i32_1 = arith.constant 0 : i32
    return %c0_i32, %c0_i32_0 : i32, i32
  }
  func.func @transform_5(%arg0: i32) -> (i32, i32, i32) {
    %c0_i32 = arith.constant 0 : i32
    %c0_i32_0 = arith.constant 0 : i32
    %c0_i32_1 = arith.constant 0 : i32
    %c0_i32_2 = arith.constant 0 : i32
    return %c0_i32, %c0_i32_0, %c0_i32_1 : i32, i32, i32
  }
  func.func @transform_6(%arg0: i32) -> (i32, i32) {
    %c0_i32 = arith.constant 0 : i32
    %c0_i32_0 = arith.constant 0 : i32
    %c0_i32_1 = arith.constant 0 : i32
    return %c0_i32, %c0_i32_0 : i32, i32
  }
  func.func @transform_7(%arg0: i32) -> (i32, i32) {
    %c0_i32 = arith.constant 0 : i32
    %c0_i32_0 = arith.constant 0 : i32
    %c0_i32_1 = arith.constant 0 : i32
    return %c0_i32, %c0_i32_0 : i32, i32
  }
  func.func @transform_8(%arg0: i32) -> (i32, i32) {
    %c0_i32 = arith.constant 0 : i32
    %c0_i32_0 = arith.constant 0 : i32
    %c0_i32_1 = arith.constant 0 : i32
    return %c0_i32, %c0_i32_0 : i32, i32
  }
  func.func @transform_9(%arg0: i32) -> (i32, i32) {
    %c0_i32 = arith.constant 0 : i32
    %c0_i32_0 = arith.constant 0 : i32
    %c0_i32_1 = arith.constant 0 : i32
    return %c0_i32, %c0_i32_0 : i32, i32
  }
  func.func @transform_10(%arg0: i32) -> (i32, i32) {
    %c0_i32 = arith.constant 0 : i32
    %c0_i32_0 = arith.constant 0 : i32
    %c0_i32_1 = arith.constant 0 : i32
    return %c0_i32, %c0_i32_0 : i32, i32
  }
  func.func @transform_11(%arg0: i32) -> (i32, i32) {
    %c0_i32 = arith.constant 0 : i32
    %c0_i32_0 = arith.constant 0 : i32
    %c0_i32_1 = arith.constant 0 : i32
    return %c0_i32, %c0_i32_0 : i32, i32
  }
  func.func @transform_12(%arg0: i32) -> (i32, i32, i32) {
    %c0_i32 = arith.constant 0 : i32
    %c0_i32_0 = arith.constant 0 : i32
    %c0_i32_1 = arith.constant 0 : i32
    %c0_i32_2 = arith.constant 0 : i32
    return %c0_i32, %c0_i32_0, %c0_i32_1 : i32, i32, i32
  }
  func.func @transform_13(%arg0: i32) -> (i32, i32) {
    %c0_i32 = arith.constant 0 : i32
    %c0_i32_0 = arith.constant 0 : i32
    %c0_i32_1 = arith.constant 0 : i32
    return %c0_i32, %c0_i32_0 : i32, i32
  }
  func.func @transform_14(%arg0: i32) -> (i32, i32) {
    %c0_i32 = arith.constant 0 : i32
    %c0_i32_0 = arith.constant 0 : i32
    %c0_i32_1 = arith.constant 0 : i32
    return %c0_i32, %c0_i32_0 : i32, i32
  }
  func.func @transform_15(%arg0: i32) -> (i32, i32) {
    %c0_i32 = arith.constant 0 : i32
    %c0_i32_0 = arith.constant 0 : i32
    %c0_i32_1 = arith.constant 0 : i32
    return %c0_i32, %c0_i32_0 : i32, i32
  }
  func.func @transform_16(%arg0: i32) -> (i32, i32) {
    %c0_i32 = arith.constant 0 : i32
    %c0_i32_0 = arith.constant 0 : i32
    %c0_i32_1 = arith.constant 0 : i32
    return %c0_i32, %c0_i32_0 : i32, i32
  }
  func.func @transform_17(%arg0: i32) -> (i32, i32) {
    %c0_i32 = arith.constant 0 : i32
    %c0_i32_0 = arith.constant 0 : i32
    %c0_i32_1 = arith.constant 0 : i32
    return %c0_i32, %c0_i32_0 : i32, i32
  }
  func.func @transform_18(%arg0: i32) -> (i32, i32) {
    %c0_i32 = arith.constant 0 : i32
    %c0_i32_0 = arith.constant 0 : i32
    %c0_i32_1 = arith.constant 0 : i32
    return %c0_i32, %c0_i32_0 : i32, i32
  }
  func.func @transform_19(%arg0: i32) -> (i32, i32) {
    %c0_i32 = arith.constant 0 : i32
    %c0_i32_0 = arith.constant 0 : i32
    %c0_i32_1 = arith.constant 0 : i32
    return %c0_i32, %c0_i32_0 : i32, i32
  }
  func.func @transform_20(%arg0: i32) -> (i32, i32) {
    %c0_i32 = arith.constant 0 : i32
    %c0_i32_0 = arith.constant 0 : i32
    %c0_i32_1 = arith.constant 0 : i32
    return %c0_i32, %c0_i32_0 : i32, i32
  }
  func.func @transform_21(%arg0: i32) -> (i32, i32) {
    %c0_i32 = arith.constant 0 : i32
    %c0_i32_0 = arith.constant 0 : i32
    %c0_i32_1 = arith.constant 0 : i32
    return %c0_i32, %c0_i32_0 : i32, i32
  }
  func.func @transform_22(%arg0: i32) -> (i32, i32) {
    %c0_i32 = arith.constant 0 : i32
    %c0_i32_0 = arith.constant 0 : i32
    %c0_i32_1 = arith.constant 0 : i32
    return %c0_i32, %c0_i32_0 : i32, i32
  }
  func.func @transform_23(%arg0: i32) -> (i32, i32) {
    %c0_i32 = arith.constant 0 : i32
    %c0_i32_0 = arith.constant 0 : i32
    %c0_i32_1 = arith.constant 0 : i32
    return %c0_i32, %c0_i32_0 : i32, i32
  }
  func.func @transform_24(%arg0: i32) -> (i32, i32) {
    %c0_i32 = arith.constant 0 : i32
    %c0_i32_0 = arith.constant 0 : i32
    %c0_i32_1 = arith.constant 0 : i32
    return %c0_i32, %c0_i32_0 : i32, i32
  }
  func.func @transform_25(%arg0: i32) -> (i32, i32) {
    %c0_i32 = arith.constant 0 : i32
    %c0_i32_0 = arith.constant 0 : i32
    %c0_i32_1 = arith.constant 0 : i32
    return %c0_i32, %c0_i32_0 : i32, i32
  }
  func.func @transform_26(%arg0: i32) -> (i32, i32, i32) {
    %c0_i32 = arith.constant 0 : i32
    %c0_i32_0 = arith.constant 0 : i32
    %c0_i32_1 = arith.constant 0 : i32
    return %arg0, %c0_i32, %c0_i32_0 : i32, i32, i32
  }
  func.func @transform_27(%arg0: i32) -> (i32, i32, i32) {
    %c0_i32 = arith.constant 0 : i32
    %c0_i32_0 = arith.constant 0 : i32
    %c0_i32_1 = arith.constant 0 : i32
    return %arg0, %c0_i32, %c0_i32_0 : i32, i32, i32
  }
}

</mosaic_0001>

<llo_original>
// kernel: residual_block_forward.1
$region0: #{residual_block_forward.1}
  #allocation0 [shape = 'u32[]', space=smem, size = 0x4, offset = 0x4, fixed_abs, tag = 'smem constant byte address 0x4 - core index']
  #allocation1 [shape = 'u32[144,128]{1,0:T(1,128)}', space=vmem, size = 0x12000, scoped, tag = 'internal scratch']
  %s0 = inlined_call_operand.vmem [shape: f32[2,16,32], index: 0, kind: input, shape index: {}]
  %s1 = inlined_call_operand.vmem [shape: f32[2,16,1], index: 1, kind: input, shape index: {}]
  %s2 = inlined_call_operand.vmem [shape: f32[2,8,32], index: 2, kind: input, shape index: {}]
  %s3 = inlined_call_operand.vmem [shape: f32[16,16], index: 3, kind: input, shape index: {}]
  %s4 = inlined_call_operand.vmem [shape: f32[16,1], index: 4, kind: input, shape index: {}]
  %s5 = inlined_call_operand.vmem [shape: f32[4,16,16], index: 5, kind: input, shape index: {}]
  %s6 = inlined_call_operand.vmem [shape: f32[4,16], index: 6, kind: input, shape index: {}]
  %s7 = inlined_call_operand.vmem [shape: f32[4,16], index: 7, kind: input, shape index: {}]
  %s8 = inlined_call_operand.vmem [shape: f32[16,64], index: 8, kind: input, shape index: {}]
  %s9 = inlined_call_operand.vmem [shape: f32[1,64], index: 9, kind: input, shape index: {}]
  %s10 = inlined_call_operand.vmem [shape: f32[64,16], index: 10, kind: input, shape index: {}]
  %s11 = inlined_call_operand.vmem [shape: f32[1,16], index: 11, kind: input, shape index: {}]
  %s12 = inlined_call_operand.vmem [shape: f32[4,16,16], index: 12, kind: input, shape index: {}]
  %s13 = inlined_call_operand.vmem [shape: f32[4,16], index: 13, kind: input, shape index: {}]
  %s14 = inlined_call_operand.vmem [shape: f32[4,16], index: 14, kind: input, shape index: {}]
  %s15 = inlined_call_operand.vmem [shape: f32[16,64], index: 15, kind: input, shape index: {}]
  %s16 = inlined_call_operand.vmem [shape: f32[1,64], index: 16, kind: input, shape index: {}]
  %s17 = inlined_call_operand.vmem [shape: f32[64,16], index: 17, kind: input, shape index: {}]
  %s18 = inlined_call_operand.vmem [shape: f32[1,16], index: 18, kind: input, shape index: {}]
  %s19 = inlined_call_operand.vmem [shape: f32[128,16], index: 19, kind: input, shape index: {}]
  %s20 = inlined_call_operand.vmem [shape: f32[128,32], index: 20, kind: input, shape index: {}]
  %s21 = inlined_call_operand.vmem [shape: f32[128,32], index: 21, kind: input, shape index: {}]
  %s22 = inlined_call_operand.vmem [shape: f32[32,24], index: 22, kind: input, shape index: {}]
  %s23 = inlined_call_operand.vmem [shape: f32[32,1], index: 23, kind: input, shape index: {}]
  %s24 = inlined_call_operand.vmem [shape: f32[32,16], index: 24, kind: input, shape index: {}]
  %s25 = inlined_call_operand.vmem [shape: f32[32,1], index: 25, kind: input, shape index: {}]
  %s26 = inlined_call_operand.vmem [shape: f32[2,16,32], index: 26, kind: output, shape index: {0}]
  %s27 = inlined_call_operand.vmem [shape: f32[2,16,32], index: 27, kind: output, shape index: {1}]
  %28 = xla_tuple %s26, %s27
  %s29 = sld [smem:[#allocation0]]
  $region145: #{residual_block_forward.1} parent=0
    _
  %s31 = ssub.s32 1, %s29
  %s32 = scalar_select 0, %s31, %s29
  loop: start=0, step=1, limit=4
  $region2: #{residual_block_forward.1} parent=0 // loop_pre_header
    _
  $region3: #{residual_block_forward.1} parent=0 // loop_header
    %s34 = sphi 0, %s38
    %p35 = scmp.ge.s32.totalorder %s34, 4
    %s44 = sphi 0, %s46
    %s47 = sphi 0, %s44
    %s48 = sphi 0, %s47
    %s64 = sphi 0, %s48
    %s70 = sphi 0, %s72
    %s73 = sphi 0, %s70
    %s74 = sphi 0, %s73
    %s90 = sphi 0, %s74
    %s96 = sphi 0, %s98
    %s99 = sphi 0, %s96
    %s100 = sphi 0, %s99
    %s116 = sphi 0, %s100
    %s120 = sphi 0, %s120
    %s122 = sphi 0, %s120
    %s123 = sphi 0, %s122
    %s137 = sphi 0, %s123
    %s141 = sphi 0, %s141
    %s143 = sphi 0, %s141
    %s144 = sphi 0, %s143
    %s158 = sphi 0, %s144
    %s162 = sphi 0, %s162
    %s164 = sphi 0, %s162
    %s165 = sphi 0, %s164
    %s179 = sphi 0, %s165
    %s183 = sphi 0, %s183
    %s185 = sphi 0, %s183
    %s186 = sphi 0, %s185
    %s200 = sphi 0, %s186
    %s204 = sphi 0, %s204
    %s206 = sphi 0, %s204
    %s207 = sphi 0, %s206
    %s221 = sphi 0, %s207
    %s225 = sphi 0, %s225
    %s227 = sphi 0, %s225
    %s228 = sphi 0, %s227
    %s242 = sphi 0, %s228
    %s246 = sphi 0, %s246
    %s248 = sphi 0, %s246
    %s249 = sphi 0, %s248
    %s263 = sphi 0, %s249
    %s267 = sphi 0, %s267
    %s269 = sphi 0, %s267
    %s270 = sphi 0, %s269
    %s284 = sphi 0, %s270
    %s288 = sphi 0, %s288
    %s290 = sphi 0, %s288
    %s291 = sphi 0, %s290
    %s305 = sphi 0, %s291
    %s309 = sphi 0, %s309
    %s311 = sphi 0, %s309
    %s312 = sphi 0, %s311
    %s326 = sphi 0, %s312
    %s330 = sphi 0, %s330
    %s332 = sphi 0, %s330
    %s333 = sphi 0, %s332
    %s347 = sphi 0, %s333
    %s351 = sphi 0, %s351
    %s353 = sphi 0, %s351
    %s354 = sphi 0, %s353
    %s368 = sphi 0, %s354
    %s372 = sphi 0, %s372
    %s374 = sphi 0, %s372
    %s375 = sphi 0, %s374
    %s389 = sphi 0, %s375
    %s393 = sphi 0, %s393
    %s395 = sphi 0, %s393
    %s396 = sphi 0, %s395
    %s410 = sphi 0, %s396
    %s414 = sphi 0, %s414
    %s416 = sphi 0, %s414
    %s417 = sphi 0, %s416
    %s431 = sphi 0, %s417
    %s435 = sphi 0, %s435
    %s437 = sphi 0, %s435
    %s438 = sphi 0, %s437
    %s452 = sphi 0, %s438
    %s456 = sphi 0, %s456
    %s458 = sphi 0, %s456
    %s459 = sphi 0, %s458
    %s473 = sphi 0, %s459
    %s477 = sphi 0, %s477
    %s479 = sphi 0, %s477
    %s480 = sphi 0, %s479
    %s494 = sphi 0, %s480
    %s498 = sphi 0, %s498
    %s500 = sphi 0, %s498
    %s501 = sphi 0, %s500
    %s515 = sphi 0, %s501
    %s519 = sphi 0, %s519
    %s521 = sphi 0, %s519
    %s522 = sphi 0, %s521
    %s536 = sphi 0, %s522
    %s540 = sphi 0, %s540
    %s542 = sphi 0, %s540
    %s543 = sphi 0, %s542
    %s557 = sphi 0, %s543
    %s561 = sphi 0, %s561
    %s563 = sphi 0, %s561
    %s564 = sphi 0, %s563
    %s578 = sphi 0, %s564
    %s582 = sphi 0, %s582
    %s584 = sphi 0, %s582
    %s585 = sphi 0, %s584
    %s599 = sphi 0, %s585
    %s605 = sphi 0, %s607
    %s608 = sphi 0, %s605
    %s609 = sphi 0, %s608
    %s625 = sphi 0, %s609
    %s631 = sphi 0, %s633
    %s634 = sphi 0, %s631
    %s635 = sphi 0, %s634
    %s651 = sphi 0, %s635
  $region4: #{residual_block_forward.1} parent=0 // loop_header_branch
    %37 = sbr.rel (%p35) target = $region8
  $region5: #{residual_block_forward.1} parent=0 // loop_body
    %s39 = ssub.s32 %s34, 1
    %s40 = ssub.s32 %s34, 2
    %s41 = sadd.s32 %s34, 1
    %s42 = ssub.s32 %s34, %s41
    %p43 = scmp.eq.s32.totalorder %s42, 0
    %s45 = sadd.s32 %s44, 1
    %s46 = scalar_select %p43, %s44, %s45
    %p49 = pneg %p43
    %p50 = scmp.eq.s32.totalorder %s34, 1
    %p51 = por %p49, %p50
    %p52 = scmp.ne.s32.totalorder %s44, %s47
    %p53 = scmp.eq.s32.totalorder %s34, 0
    %p54 = por %p52, %p53
    %p55 = scmp.ne.s32.totalorder %s44, %s47
    %p56 = scmp.eq.s32.totalorder %s39, 1
    %p57 = por %p55, %p56
    %p58 = scmp.ne.s32.totalorder %s47, %s48
    %p59 = scmp.eq.s32.totalorder %s39, 0
    %p60 = por %p58, %p59
    %p61 = scmp.ne.s32.totalorder %s47, %s48
    %p62 = scmp.eq.s32.totalorder %s40, 1
    %p63 = por %p61, %p62
    %p65 = scmp.ne.s32.totalorder %s48, %s64
    %p66 = scmp.eq.s32.totalorder %s40, 0
    %p67 = por %p65, %p66
    %s68 = ssub.s32 %s34, %s41
    %p69 = scmp.eq.s32.totalorder %s68, 0
    %s71 = sadd.s32 %s70, 1
    %s72 = scalar_select %p69, %s70, %s71
    %p75 = pneg %p69
    %p76 = scmp.eq.s32.totalorder %s34, 1
    %p77 = por %p75, %p76
    %p78 = scmp.ne.s32.totalorder %s70, %s73
    %p79 = scmp.eq.s32.totalorder %s34, 0
    %p80 = por %p78, %p79
    %p81 = scmp.ne.s32.totalorder %s70, %s73
    %p82 = scmp.eq.s32.totalorder %s39, 1
    %p83 = por %p81, %p82
    %p84 = scmp.ne.s32.totalorder %s73, %s74
    %p85 = scmp.eq.s32.totalorder %s39, 0
    %p86 = por %p84, %p85
    %p87 = scmp.ne.s32.totalorder %s73, %s74
    %p88 = scmp.eq.s32.totalorder %s40, 1
    %p89 = por %p87, %p88
    %p91 = scmp.ne.s32.totalorder %s74, %s90
    %p92 = scmp.eq.s32.totalorder %s40, 0
    %p93 = por %p91, %p92
    %s94 = ssub.s32 %s34, %s41
    %p95 = scmp.eq.s32.totalorder %s94, 0
    %s97 = sadd.s32 %s96, 1
    %s98 = scalar_select %p95, %s96, %s97
    %p101 = pneg %p95
    %p102 = scmp.eq.s32.totalorder %s34, 1
    %p103 = por %p101, %p102
    %p104 = scmp.ne.s32.totalorder %s96, %s99
    %p105 = scmp.eq.s32.totalorder %s34, 0
    %p106 = por %p104, %p105
    %p107 = scmp.ne.s32.totalorder %s96, %s99
    %p108 = scmp.eq.s32.totalorder %s39, 1
    %p109 = por %p107, %p108
    %p110 = scmp.ne.s32.totalorder %s99, %s100
    %p111 = scmp.eq.s32.totalorder %s39, 0
    %p112 = por %p110, %p111
    %p113 = scmp.ne.s32.totalorder %s99, %s100
    %p114 = scmp.eq.s32.totalorder %s40, 1
    %p115 = por %p113, %p114
    %p117 = scmp.ne.s32.totalorder %s100, %s116
    %p118 = scmp.eq.s32.totalorder %s40, 0
    %p119 = por %p117, %p118
    %s121 = sadd.s32 %s120, 1
    %p124 = scmp.eq.s32.totalorder %s34, 1
    %p125 = scmp.ne.s32.totalorder %s120, %s122
    %p126 = scmp.eq.s32.totalorder %s34, 0
    %p127 = por %p125, %p126
    %p128 = scmp.ne.s32.totalorder %s120, %s122
    %p129 = scmp.eq.s32.totalorder %s39, 1
    %p130 = por %p128, %p129
    %p131 = scmp.ne.s32.totalorder %s122, %s123
    %p132 = scmp.eq.s32.totalorder %s39, 0
    %p133 = por %p131, %p132
    %p134 = scmp.ne.s32.totalorder %s122, %s123
    %p135 = scmp.eq.s32.totalorder %s40, 1
    %p136 = por %p134, %p135
    %p138 = scmp.ne.s32.totalorder %s123, %s137
    %p139 = scmp.eq.s32.totalorder %s40, 0
    %p140 = por %p138, %p139
    %s142 = sadd.s32 %s141, 1
    %p145 = scmp.eq.s32.totalorder %s34, 1
    %p146 = scmp.ne.s32.totalorder %s141, %s143
    %p147 = scmp.eq.s32.totalorder %s34, 0
    %p148 = por %p146, %p147
    %p149 = scmp.ne.s32.totalorder %s141, %s143
    %p150 = scmp.eq.s32.totalorder %s39, 1
    %p151 = por %p149, %p150
    %p152 = scmp.ne.s32.totalorder %s143, %s144
    %p153 = scmp.eq.s32.totalorder %s39, 0
    %p154 = por %p152, %p153
    %p155 = scmp.ne.s32.totalorder %s143, %s144
    %p156 = scmp.eq.s32.totalorder %s40, 1
    %p157 = por %p155, %p156
    %p159 = scmp.ne.s32.totalorder %s144, %s158
    %p160 = scmp.eq.s32.totalorder %s40, 0
    %p161 = por %p159, %p160
    %s163 = sadd.s32 %s162, 1
    %p166 = scmp.eq.s32.totalorder %s34, 1
    %p167 = scmp.ne.s32.totalorder %s162, %s164
    %p168 = scmp.eq.s32.totalorder %s34, 0
    %p169 = por %p167, %p168
    %p170 = scmp.ne.s32.totalorder %s162, %s164
    %p171 = scmp.eq.s32.totalorder %s39, 1
    %p172 = por %p170, %p171
    %p173 = scmp.ne.s32.totalorder %s164, %s165
    %p174 = scmp.eq.s32.totalorder %s39, 0
    %p175 = por %p173, %p174
    %p176 = scmp.ne.s32.totalorder %s164, %s165
    %p177 = scmp.eq.s32.totalorder %s40, 1
    %p178 = por %p176, %p177
    %p180 = scmp.ne.s32.totalorder %s165, %s179
    %p181 = scmp.eq.s32.totalorder %s40, 0
    %p182 = por %p180, %p181
    %s184 = sadd.s32 %s183, 1
    %p187 = scmp.eq.s32.totalorder %s34, 1
    %p188 = scmp.ne.s32.totalorder %s183, %s185
    %p189 = scmp.eq.s32.totalorder %s34, 0
    %p190 = por %p188, %p189
    %p191 = scmp.ne.s32.totalorder %s183, %s185
    %p192 = scmp.eq.s32.totalorder %s39, 1
    %p193 = por %p191, %p192
    %p194 = scmp.ne.s32.totalorder %s185, %s186
    %p195 = scmp.eq.s32.totalorder %s39, 0
    %p196 = por %p194, %p195
    %p197 = scmp.ne.s32.totalorder %s185, %s186
    %p198 = scmp.eq.s32.totalorder %s40, 1
    %p199 = por %p197, %p198
    %p201 = scmp.ne.s32.totalorder %s186, %s200
    %p202 = scmp.eq.s32.totalorder %s40, 0
    %p203 = por %p201, %p202
    %s205 = sadd.s32 %s204, 1
    %p208 = scmp.eq.s32.totalorder %s34, 1
    %p209 = scmp.ne.s32.totalorder %s204, %s206
    %p210 = scmp.eq.s32.totalorder %s34, 0
    %p211 = por %p209, %p210
    %p212 = scmp.ne.s32.totalorder %s204, %s206
    %p213 = scmp.eq.s32.totalorder %s39, 1
    %p214 = por %p212, %p213
    %p215 = scmp.ne.s32.totalorder %s206, %s207
    %p216 = scmp.eq.s32.totalorder %s39, 0
    %p217 = por %p215, %p216
    %p218 = scmp.ne.s32.totalorder %s206, %s207
    %p219 = scmp.eq.s32.totalorder %s40, 1
    %p220 = por %p218, %p219
    %p222 = scmp.ne.s32.totalorder %s207, %s221
    %p223 = scmp.eq.s32.totalorder %s40, 0
    %p224 = por %p222, %p223
    %s226 = sadd.s32 %s225, 1
    %p229 = scmp.eq.s32.totalorder %s34, 1
    %p230 = scmp.ne.s32.totalorder %s225, %s227
    %p231 = scmp.eq.s32.totalorder %s34, 0
    %p232 = por %p230, %p231
    %p233 = scmp.ne.s32.totalorder %s225, %s227
    %p234 = scmp.eq.s32.totalorder %s39, 1
    %p235 = por %p233, %p234
    %p236 = scmp.ne.s32.totalorder %s227, %s228
    %p237 = scmp.eq.s32.totalorder %s39, 0
    %p238 = por %p236, %p237
    %p239 = scmp.ne.s32.totalorder %s227, %s228
    %p240 = scmp.eq.s32.totalorder %s40, 1
    %p241 = por %p239, %p240
    %p243 = scmp.ne.s32.totalorder %s228, %s242
    %p244 = scmp.eq.s32.totalorder %s40, 0
    %p245 = por %p243, %p244
    %s247 = sadd.s32 %s246, 1
    %p250 = scmp.eq.s32.totalorder %s34, 1
    %p251 = scmp.ne.s32.totalorder %s246, %s248
    %p252 = scmp.eq.s32.totalorder %s34, 0
    %p253 = por %p251, %p252
    %p254 = scmp.ne.s32.totalorder %s246, %s248
    %p255 = scmp.eq.s32.totalorder %s39, 1
    %p256 = por %p254, %p255
    %p257 = scmp.ne.s32.totalorder %s248, %s249
    %p258 = scmp.eq.s32.totalorder %s39, 0
    %p259 = por %p257, %p258
    %p260 = scmp.ne.s32.totalorder %s248, %s249
    %p261 = scmp.eq.s32.totalorder %s40, 1
    %p262 = por %p260, %p261
    %p264 = scmp.ne.s32.totalorder %s249, %s263
    %p265 = scmp.eq.s32.totalorder %s40, 0
    %p266 = por %p264, %p265
    %s268 = sadd.s32 %s267, 1
    %p271 = scmp.eq.s32.totalorder %s34, 1
    %p272 = scmp.ne.s32.totalorder %s267, %s269
    %p273 = scmp.eq.s32.totalorder %s34, 0
    %p274 = por %p272, %p273
    %p275 = scmp.ne.s32.totalorder %s267, %s269
    %p276 = scmp.eq.s32.totalorder %s39, 1
    %p277 = por %p275, %p276
    %p278 = scmp.ne.s32.totalorder %s269, %s270
    %p279 = scmp.eq.s32.totalorder %s39, 0
    %p280 = por %p278, %p279
    %p281 = scmp.ne.s32.totalorder %s269, %s270
    %p282 = scmp.eq.s32.totalorder %s40, 1
    %p283 = por %p281, %p282
    %p285 = scmp.ne.s32.totalorder %s270, %s284
    %p286 = scmp.eq.s32.totalorder %s40, 0
    %p287 = por %p285, %p286
    %s289 = sadd.s32 %s288, 1
    %p292 = scmp.eq.s32.totalorder %s34, 1
    %p293 = scmp.ne.s32.totalorder %s288, %s290
    %p294 = scmp.eq.s32.totalorder %s34, 0
    %p295 = por %p293, %p294
    %p296 = scmp.ne.s32.totalorder %s288, %s290
    %p297 = scmp.eq.s32.totalorder %s39, 1
    %p298 = por %p296, %p297
    %p299 = scmp.ne.s32.totalorder %s290, %s291
    %p300 = scmp.eq.s32.totalorder %s39, 0
    %p301 = por %p299, %p300
    %p302 = scmp.ne.s32.totalorder %s290, %s291
    %p303 = scmp.eq.s32.totalorder %s40, 1
    %p304 = por %p302, %p303
    %p306 = scmp.ne.s32.totalorder %s291, %s305
    %p307 = scmp.eq.s32.totalorder %s40, 0
    %p308 = por %p306, %p307
    %s310 = sadd.s32 %s309, 1
    %p313 = scmp.eq.s32.totalorder %s34, 1
    %p314 = scmp.ne.s32.totalorder %s309, %s311
    %p315 = scmp.eq.s32.totalorder %s34, 0
    %p316 = por %p314, %p315
    %p317 = scmp.ne.s32.totalorder %s309, %s311
    %p318 = scmp.eq.s32.totalorder %s39, 1
    %p319 = por %p317, %p318
    %p320 = scmp.ne.s32.totalorder %s311, %s312
    %p321 = scmp.eq.s32.totalorder %s39, 0
    %p322 = por %p320, %p321
    %p323 = scmp.ne.s32.totalorder %s311, %s312
    %p324 = scmp.eq.s32.totalorder %s40, 1
    %p325 = por %p323, %p324
    %p327 = scmp.ne.s32.totalorder %s312, %s326
    %p328 = scmp.eq.s32.totalorder %s40, 0
    %p329 = por %p327, %p328
    %s331 = sadd.s32 %s330, 1
    %p334 = scmp.eq.s32.totalorder %s34, 1
    %p335 = scmp.ne.s32.totalorder %s330, %s332
    %p336 = scmp.eq.s32.totalorder %s34, 0
    %p337 = por %p335, %p336
    %p338 = scmp.ne.s32.totalorder %s330, %s332
    %p339 = scmp.eq.s32.totalorder %s39, 1
    %p340 = por %p338, %p339
    %p341 = scmp.ne.s32.totalorder %s332, %s333
    %p342 = scmp.eq.s32.totalorder %s39, 0
    %p343 = por %p341, %p342
    %p344 = scmp.ne.s32.totalorder %s332, %s333
    %p345 = scmp.eq.s32.totalorder %s40, 1
    %p346 = por %p344, %p345
    %p348 = scmp.ne.s32.totalorder %s333, %s347
    %p349 = scmp.eq.s32.totalorder %s40, 0
    %p350 = por %p348, %p349
    %s352 = sadd.s32 %s351, 1
    %p355 = scmp.eq.s32.totalorder %s34, 1
    %p356 = scmp.ne.s32.totalorder %s351, %s353
    %p357 = scmp.eq.s32.totalorder %s34, 0
    %p358 = por %p356, %p357
    %p359 = scmp.ne.s32.totalorder %s351, %s353
    %p360 = scmp.eq.s32.totalorder %s39, 1
    %p361 = por %p359, %p360
    %p362 = scmp.ne.s32.totalorder %s353, %s354
    %p363 = scmp.eq.s32.totalorder %s39, 0
    %p364 = por %p362, %p363
    %p365 = scmp.ne.s32.totalorder %s353, %s354
    %p366 = scmp.eq.s32.totalorder %s40, 1
    %p367 = por %p365, %p366
    %p369 = scmp.ne.s32.totalorder %s354, %s368
    %p370 = scmp.eq.s32.totalorder %s40, 0
    %p371 = por %p369, %p370
    %s373 = sadd.s32 %s372, 1
    %p376 = scmp.eq.s32.totalorder %s34, 1
    %p377 = scmp.ne.s32.totalorder %s372, %s374
    %p378 = scmp.eq.s32.totalorder %s34, 0
    %p379 = por %p377, %p378
    %p380 = scmp.ne.s32.totalorder %s372, %s374
    %p381 = scmp.eq.s32.totalorder %s39, 1
    %p382 = por %p380, %p381
    %p383 = scmp.ne.s32.totalorder %s374, %s375
    %p384 = scmp.eq.s32.totalorder %s39, 0
    %p385 = por %p383, %p384
    %p386 = scmp.ne.s32.totalorder %s374, %s375
    %p387 = scmp.eq.s32.totalorder %s40, 1
    %p388 = por %p386, %p387
    %p390 = scmp.ne.s32.totalorder %s375, %s389
    %p391 = scmp.eq.s32.totalorder %s40, 0
    %p392 = por %p390, %p391
    %s394 = sadd.s32 %s393, 1
    %p397 = scmp.eq.s32.totalorder %s34, 1
    %p398 = scmp.ne.s32.totalorder %s393, %s395
    %p399 = scmp.eq.s32.totalorder %s34, 0
    %p400 = por %p398, %p399
    %p401 = scmp.ne.s32.totalorder %s393, %s395
    %p402 = scmp.eq.s32.totalorder %s39, 1
    %p403 = por %p401, %p402
    %p404 = scmp.ne.s32.totalorder %s395, %s396
    %p405 = scmp.eq.s32.totalorder %s39, 0
    %p406 = por %p404, %p405
    %p407 = scmp.ne.s32.totalorder %s395, %s396
    %p408 = scmp.eq.s32.totalorder %s40, 1
    %p409 = por %p407, %p408
    %p411 = scmp.ne.s32.totalorder %s396, %s410
    %p412 = scmp.eq.s32.totalorder %s40, 0
    %p413 = por %p411, %p412
    %s415 = sadd.s32 %s414, 1
    %p418 = scmp.eq.s32.totalorder %s34, 1
    %p419 = scmp.ne.s32.totalorder %s414, %s416
    %p420 = scmp.eq.s32.totalorder %s34, 0
    %p421 = por %p419, %p420
    %p422 = scmp.ne.s32.totalorder %s414, %s416
    %p423 = scmp.eq.s32.totalorder %s39, 1
    %p424 = por %p422, %p423
    %p425 = scmp.ne.s32.totalorder %s416, %s417
    %p426 = scmp.eq.s32.totalorder %s39, 0
    %p427 = por %p425, %p426
    %p428 = scmp.ne.s32.totalorder %s416, %s417
    %p429 = scmp.eq.s32.totalorder %s40, 1
    %p430 = por %p428, %p429
    %p432 = scmp.ne.s32.totalorder %s417, %s431
    %p433 = scmp.eq.s32.totalorder %s40, 0
    %p434 = por %p432, %p433
    %s436 = sadd.s32 %s435, 1
    %p439 = scmp.eq.s32.totalorder %s34, 1
    %p440 = scmp.ne.s32.totalorder %s435, %s437
    %p441 = scmp.eq.s32.totalorder %s34, 0
    %p442 = por %p440, %p441
    %p443 = scmp.ne.s32.totalorder %s435, %s437
    %p444 = scmp.eq.s32.totalorder %s39, 1
    %p445 = por %p443, %p444
    %p446 = scmp.ne.s32.totalorder %s437, %s438
    %p447 = scmp.eq.s32.totalorder %s39, 0
    %p448 = por %p446, %p447
    %p449 = scmp.ne.s32.totalorder %s437, %s438
    %p450 = scmp.eq.s32.totalorder %s40, 1
    %p451 = por %p449, %p450
    %p453 = scmp.ne.s32.totalorder %s438, %s452
    %p454 = scmp.eq.s32.totalorder %s40, 0
    %p455 = por %p453, %p454
    %s457 = sadd.s32 %s456, 1
    %p460 = scmp.eq.s32.totalorder %s34, 1
    %p461 = scmp.ne.s32.totalorder %s456, %s458
    %p462 = scmp.eq.s32.totalorder %s34, 0
    %p463 = por %p461, %p462
    %p464 = scmp.ne.s32.totalorder %s456, %s458
    %p465 = scmp.eq.s32.totalorder %s39, 1
    %p466 = por %p464, %p465
    %p467 = scmp.ne.s32.totalorder %s458, %s459
    %p468 = scmp.eq.s32.totalorder %s39, 0
    %p469 = por %p467, %p468
    %p470 = scmp.ne.s32.totalorder %s458, %s459
    %p471 = scmp.eq.s32.totalorder %s40, 1
    %p472 = por %p470, %p471
    %p474 = scmp.ne.s32.totalorder %s459, %s473
    %p475 = scmp.eq.s32.totalorder %s40, 0
    %p476 = por %p474, %p475
    %s478 = sadd.s32 %s477, 1
    %p481 = scmp.eq.s32.totalorder %s34, 1
    %p482 = scmp.ne.s32.totalorder %s477, %s479
    %p483 = scmp.eq.s32.totalorder %s34, 0
    %p484 = por %p482, %p483
    %p485 = scmp.ne.s32.totalorder %s477, %s479
    %p486 = scmp.eq.s32.totalorder %s39, 1
    %p487 = por %p485, %p486
    %p488 = scmp.ne.s32.totalorder %s479, %s480
    %p489 = scmp.eq.s32.totalorder %s39, 0
    %p490 = por %p488, %p489
    %p491 = scmp.ne.s32.totalorder %s479, %s480
    %p492 = scmp.eq.s32.totalorder %s40, 1
    %p493 = por %p491, %p492
    %p495 = scmp.ne.s32.totalorder %s480, %s494
    %p496 = scmp.eq.s32.totalorder %s40, 0
    %p497 = por %p495, %p496
    %s499 = sadd.s32 %s498, 1
    %p502 = scmp.eq.s32.totalorder %s34, 1
    %p503 = scmp.ne.s32.totalorder %s498, %s500
    %p504 = scmp.eq.s32.totalorder %s34, 0
    %p505 = por %p503, %p504
    %p506 = scmp.ne.s32.totalorder %s498, %s500
    %p507 = scmp.eq.s32.totalorder %s39, 1
    %p508 = por %p506, %p507
    %p509 = scmp.ne.s32.totalorder %s500, %s501
    %p510 = scmp.eq.s32.totalorder %s39, 0
    %p511 = por %p509, %p510
    %p512 = scmp.ne.s32.totalorder %s500, %s501
    %p513 = scmp.eq.s32.totalorder %s40, 1
    %p514 = por %p512, %p513
    %p516 = scmp.ne.s32.totalorder %s501, %s515
    %p517 = scmp.eq.s32.totalorder %s40, 0
    %p518 = por %p516, %p517
    %s520 = sadd.s32 %s519, 1
    %p523 = scmp.eq.s32.totalorder %s34, 1
    %p524 = scmp.ne.s32.totalorder %s519, %s521
    %p525 = scmp.eq.s32.totalorder %s34, 0
    %p526 = por %p524, %p525
    %p527 = scmp.ne.s32.totalorder %s519, %s521
    %p528 = scmp.eq.s32.totalorder %s39, 1
    %p529 = por %p527, %p528
    %p530 = scmp.ne.s32.totalorder %s521, %s522
    %p531 = scmp.eq.s32.totalorder %s39, 0
    %p532 = por %p530, %p531
    %p533 = scmp.ne.s32.totalorder %s521, %s522
    %p534 = scmp.eq.s32.totalorder %s40, 1
    %p535 = por %p533, %p534
    %p537 = scmp.ne.s32.totalorder %s522, %s536
    %p538 = scmp.eq.s32.totalorder %s40, 0
    %p539 = por %p537, %p538
    %s541 = sadd.s32 %s540, 1
    %p544 = scmp.eq.s32.totalorder %s34, 1
    %p545 = scmp.ne.s32.totalorder %s540, %s542
    %p546 = scmp.eq.s32.totalorder %s34, 0
    %p547 = por %p545, %p546
    %p548 = scmp.ne.s32.totalorder %s540, %s542
    %p549 = scmp.eq.s32.totalorder %s39, 1
    %p550 = por %p548, %p549
    %p551 = scmp.ne.s32.totalorder %s542, %s543
    %p552 = scmp.eq.s32.totalorder %s39, 0
    %p553 = por %p551, %p552
    %p554 = scmp.ne.s32.totalorder %s542, %s543
    %p555 = scmp.eq.s32.totalorder %s40, 1
    %p556 = por %p554, %p555
    %p558 = scmp.ne.s32.totalorder %s543, %s557
    %p559 = scmp.eq.s32.totalorder %s40, 0
    %p560 = por %p558, %p559
    %s562 = sadd.s32 %s561, 1
    %p565 = scmp.eq.s32.totalorder %s34, 1
    %p566 = scmp.ne.s32.totalorder %s561, %s563
    %p567 = scmp.eq.s32.totalorder %s34, 0
    %p568 = por %p566, %p567
    %p569 = scmp.ne.s32.totalorder %s561, %s563
    %p570 = scmp.eq.s32.totalorder %s39, 1
    %p571 = por %p569, %p570
    %p572 = scmp.ne.s32.totalorder %s563, %s564
    %p573 = scmp.eq.s32.totalorder %s39, 0
    %p574 = por %p572, %p573
    %p575 = scmp.ne.s32.totalorder %s563, %s564
    %p576 = scmp.eq.s32.totalorder %s40, 1
    %p577 = por %p575, %p576
    %p579 = scmp.ne.s32.totalorder %s564, %s578
    %p580 = scmp.eq.s32.totalorder %s40, 0
    %p581 = por %p579, %p580
    %s583 = sadd.s32 %s582, 1
    %p586 = scmp.eq.s32.totalorder %s34, 1
    %p587 = scmp.ne.s32.totalorder %s582, %s584
    %p588 = scmp.eq.s32.totalorder %s34, 0
    %p589 = por %p587, %p588
    %p590 = scmp.ne.s32.totalorder %s582, %s584
    %p591 = scmp.eq.s32.totalorder %s39, 1
    %p592 = por %p590, %p591
    %p593 = scmp.ne.s32.totalorder %s584, %s585
    %p594 = scmp.eq.s32.totalorder %s39, 0
    %p595 = por %p593, %p594
    %p596 = scmp.ne.s32.totalorder %s584, %s585
    %p597 = scmp.eq.s32.totalorder %s40, 1
    %p598 = por %p596, %p597
    %p600 = scmp.ne.s32.totalorder %s585, %s599
    %p601 = scmp.eq.s32.totalorder %s40, 0
    %p602 = por %p600, %p601
    %s603 = ssub.s32 %s34, %s41
    %p604 = scmp.eq.s32.totalorder %s603, 0
    %s606 = sadd.s32 %s605, 1
    %s607 = scalar_select %p604, %s605, %s606
    %p610 = pneg %p604
    %p611 = scmp.eq.s32.totalorder %s34, 1
    %p612 = por %p610, %p611
    %p613 = scmp.ne.s32.totalorder %s605, %s608
    %p614 = scmp.eq.s32.totalorder %s34, 0
    %p615 = por %p613, %p614
    %p616 = scmp.ne.s32.totalorder %s605, %s608
    %p617 = scmp.eq.s32.totalorder %s39, 1
    %p618 = por %p616, %p617
    %p619 = scmp.ne.s32.totalorder %s608, %s609
    %p620 = scmp.eq.s32.totalorder %s39, 0
    %p621 = por %p619, %p620
    %p622 = scmp.ne.s32.totalorder %s608, %s609
    %p623 = scmp.eq.s32.totalorder %s40, 1
    %p624 = por %p622, %p623
    %p626 = scmp.ne.s32.totalorder %s609, %s625
    %p627 = scmp.eq.s32.totalorder %s40, 0
    %p628 = por %p626, %p627
    %s629 = ssub.s32 %s34, %s41
    %p630 = scmp.eq.s32.totalorder %s629, 0
    %s632 = sadd.s32 %s631, 1
    %s633 = scalar_select %p630, %s631, %s632
    %p636 = pneg %p630
    %p637 = scmp.eq.s32.totalorder %s34, 1
    %p638 = por %p636, %p637
    %p639 = scmp.ne.s32.totalorder %s631, %s634
    %p640 = scmp.eq.s32.totalorder %s34, 0
    %p641 = por %p639, %p640
    %p642 = scmp.ne.s32.totalorder %s631, %s634
    %p643 = scmp.eq.s32.totalorder %s39, 1
    %p644 = por %p642, %p643
    %p645 = scmp.ne.s32.totalorder %s634, %s635
    %p646 = scmp.eq.s32.totalorder %s39, 0
    %p647 = por %p645, %p646
    %p648 = scmp.ne.s32.totalorder %s634, %s635
    %p649 = scmp.eq.s32.totalorder %s40, 1
    %p650 = por %p648, %p649
    %p652 = scmp.ne.s32.totalorder %s635, %s651
    %p653 = scmp.eq.s32.totalorder %s40, 0
    %p654 = por %p652, %p653
    %p655 = scmp.le.s32.totalorder 1, %s34
    %p656 = scmp.lt.s32.totalorder %s34, 3
    %p657 = pnand %p655, %p656
    %p658 = pneg %p657
    // Predicated region
    $region9: #{residual_block_forward.1} parent=5 // pred_check
      _
    $region10: #{residual_block_forward.1} parent=5 // pred_check_branch
      %660 = sbr.rel (%p657) target = $region12
    $region11: #{residual_block_forward.1} parent=5 // pred_region
      %s661 = ssub.s32 %s34, 1
      // Predicated region
      $region13: #{residual_block_forward.1} parent=11 // pred_check
        %p662 = pneg %p133
      $region14: #{residual_block_forward.1} parent=11 // pred_check_branch
        %664 = sbr.rel (%p662) target = $region16
      $region15: #{residual_block_forward.1} parent=11 // pred_region
        _
      $region16: #{residual_block_forward.1} parent=11 // pred_fallthru
        _
      // Predicated region
      $region17: #{residual_block_forward.1} parent=11 // pred_check
        %p665 = pneg %p154
      $region18: #{residual_block_forward.1} parent=11 // pred_check_branch
        %667 = sbr.rel (%p665) target = $region20
      $region19: #{residual_block_forward.1} parent=11 // pred_region
        _
      $region20: #{residual_block_forward.1} parent=11 // pred_fallthru
        _
      // Predicated region
      $region21: #{residual_block_forward.1} parent=11 // pred_check
        %p668 = pneg %p175
      $region22: #{residual_block_forward.1} parent=11 // pred_check_branch
        %670 = sbr.rel (%p668) target = $region24
      $region23: #{residual_block_forward.1} parent=11 // pred_region
        _
      $region24: #{residual_block_forward.1} parent=11 // pred_fallthru
        _
      // Predicated region
      $region25: #{residual_block_forward.1} parent=11 // pred_check
        %p671 = pneg %p196
      $region26: #{residual_block_forward.1} parent=11 // pred_check_branch
        %673 = sbr.rel (%p671) target = $region28
      $region27: #{residual_block_forward.1} parent=11 // pred_region
        _
      $region28: #{residual_block_forward.1} parent=11 // pred_fallthru
        _
      // Predicated region
      $region29: #{residual_block_forward.1} parent=11 // pred_check
        %p674 = pneg %p217
      $region30: #{residual_block_forward.1} parent=11 // pred_check_branch
        %676 = sbr.rel (%p674) target = $region32
      $region31: #{residual_block_forward.1} parent=11 // pred_region
        _
      $region32: #{residual_block_forward.1} parent=11 // pred_fallthru
        _
      // Predicated region
      $region33: #{residual_block_forward.1} parent=11 // pred_check
        %p677 = pneg %p238
      $region34: #{residual_block_forward.1} parent=11 // pred_check_branch
        %679 = sbr.rel (%p677) target = $region36
      $region35: #{residual_block_forward.1} parent=11 // pred_region
        _
      $region36: #{residual_block_forward.1} parent=11 // pred_fallthru
        _
      // Predicated region
      $region37: #{residual_block_forward.1} parent=11 // pred_check
        %p680 = pneg %p259
      $region38: #{residual_block_forward.1} parent=11 // pred_check_branch
        %682 = sbr.rel (%p680) target = $region40
      $region39: #{residual_block_forward.1} parent=11 // pred_region
        _
      $region40: #{residual_block_forward.1} parent=11 // pred_fallthru
        _
      // Predicated region
      $region41: #{residual_block_forward.1} parent=11 // pred_check
        %p683 = pneg %p280
      $region42: #{residual_block_forward.1} parent=11 // pred_check_branch
        %685 = sbr.rel (%p683) target = $region44
      $region43: #{residual_block_forward.1} parent=11 // pred_region
        _
      $region44: #{residual_block_forward.1} parent=11 // pred_fallthru
        _
      // Predicated region
      $region45: #{residual_block_forward.1} parent=11 // pred_check
        %p686 = pneg %p301
      $region46: #{residual_block_forward.1} parent=11 // pred_check_branch
        %688 = sbr.rel (%p686) target = $region48
      $region47: #{residual_block_forward.1} parent=11 // pred_region
        _
      $region48: #{residual_block_forward.1} parent=11 // pred_fallthru
        _
      // Predicated region
      $region49: #{residual_block_forward.1} parent=11 // pred_check
        %p689 = pneg %p322
      $region50: #{residual_block_forward.1} parent=11 // pred_check_branch
        %691 = sbr.rel (%p689) target = $region52
      $region51: #{residual_block_forward.1} parent=11 // pred_region
        _
      $region52: #{residual_block_forward.1} parent=11 // pred_fallthru
        _
      // Predicated region
      $region53: #{residual_block_forward.1} parent=11 // pred_check
        %p692 = pneg %p343
      $region54: #{residual_block_forward.1} parent=11 // pred_check_branch
        %694 = sbr.rel (%p692) target = $region56
      $region55: #{residual_block_forward.1} parent=11 // pred_region
        _
      $region56: #{residual_block_forward.1} parent=11 // pred_fallthru
        _
      // Predicated region
      $region57: #{residual_block_forward.1} parent=11 // pred_check
        %p695 = pneg %p364
      $region58: #{residual_block_forward.1} parent=11 // pred_check_branch
        %697 = sbr.rel (%p695) target = $region60
      $region59: #{residual_block_forward.1} parent=11 // pred_region
        _
      $region60: #{residual_block_forward.1} parent=11 // pred_fallthru
        _
      // Predicated region
      $region61: #{residual_block_forward.1} parent=11 // pred_check
        %p698 = pneg %p385
      $region62: #{residual_block_forward.1} parent=11 // pred_check_branch
        %700 = sbr.rel (%p698) target = $region64
      $region63: #{residual_block_forward.1} parent=11 // pred_region
        _
      $region64: #{residual_block_forward.1} parent=11 // pred_fallthru
        _
      // Predicated region
      $region65: #{residual_block_forward.1} parent=11 // pred_check
        %p701 = pneg %p406
      $region66: #{residual_block_forward.1} parent=11 // pred_check_branch
        %703 = sbr.rel (%p701) target = $region68
      $region67: #{residual_block_forward.1} parent=11 // pred_region
        _
      $region68: #{residual_block_forward.1} parent=11 // pred_fallthru
        _
      // Predicated region
      $region69: #{residual_block_forward.1} parent=11 // pred_check
        %p704 = pneg %p427
      $region70: #{residual_block_forward.1} parent=11 // pred_check_branch
        %706 = sbr.rel (%p704) target = $region72
      $region71: #{residual_block_forward.1} parent=11 // pred_region
        _
      $region72: #{residual_block_forward.1} parent=11 // pred_fallthru
        _
      // Predicated region
      $region73: #{residual_block_forward.1} parent=11 // pred_check
        %p707 = pneg %p448
      $region74: #{residual_block_forward.1} parent=11 // pred_check_branch
        %709 = sbr.rel (%p707) target = $region76
      $region75: #{residual_block_forward.1} parent=11 // pred_region
        _
      $region76: #{residual_block_forward.1} parent=11 // pred_fallthru
        _
      // Predicated region
      $region77: #{residual_block_forward.1} parent=11 // pred_check
        %p710 = pneg %p469
      $region78: #{residual_block_forward.1} parent=11 // pred_check_branch
        %712 = sbr.rel (%p710) target = $region80
      $region79: #{residual_block_forward.1} parent=11 // pred_region
        _
      $region80: #{residual_block_forward.1} parent=11 // pred_fallthru
        _
      // Predicated region
      $region81: #{residual_block_forward.1} parent=11 // pred_check
        %p713 = pneg %p490
      $region82: #{residual_block_forward.1} parent=11 // pred_check_branch
        %715 = sbr.rel (%p713) target = $region84
      $region83: #{residual_block_forward.1} parent=11 // pred_region
        _
      $region84: #{residual_block_forward.1} parent=11 // pred_fallthru
        _
      // Predicated region
      $region85: #{residual_block_forward.1} parent=11 // pred_check
        %p716 = pneg %p511
      $region86: #{residual_block_forward.1} parent=11 // pred_check_branch
        %718 = sbr.rel (%p716) target = $region88
      $region87: #{residual_block_forward.1} parent=11 // pred_region
        _
      $region88: #{residual_block_forward.1} parent=11 // pred_fallthru
        _
      // Predicated region
      $region89: #{residual_block_forward.1} parent=11 // pred_check
        %p719 = pneg %p532
      $region90: #{residual_block_forward.1} parent=11 // pred_check_branch
        %721 = sbr.rel (%p719) target = $region92
      $region91: #{residual_block_forward.1} parent=11 // pred_region
        _
      $region92: #{residual_block_forward.1} parent=11 // pred_fallthru
        _
      // Predicated region
      $region93: #{residual_block_forward.1} parent=11 // pred_check
        %p722 = pneg %p553
      $region94: #{residual_block_forward.1} parent=11 // pred_check_branch
        %724 = sbr.rel (%p722) target = $region96
      $region95: #{residual_block_forward.1} parent=11 // pred_region
        _
      $region96: #{residual_block_forward.1} parent=11 // pred_fallthru
        _
      // Predicated region
      $region97: #{residual_block_forward.1} parent=11 // pred_check
        %p725 = pneg %p574
      $region98: #{residual_block_forward.1} parent=11 // pred_check_branch
        %727 = sbr.rel (%p725) target = $region100
      $region99: #{residual_block_forward.1} parent=11 // pred_region
        _
      $region100: #{residual_block_forward.1} parent=11 // pred_fallthru
        _
      // Predicated region
      $region101: #{residual_block_forward.1} parent=11 // pred_check
        %p728 = pneg %p595
      $region102: #{residual_block_forward.1} parent=11 // pred_check_branch
        %730 = sbr.rel (%p728) target = $region104
      $region103: #{residual_block_forward.1} parent=11 // pred_region
        _
      $region104: #{residual_block_forward.1} parent=11 // pred_fallthru
        _
    $region12: #{residual_block_forward.1} parent=5 // pred_fallthru
      _
    %p731 = scmp.lt.s32.totalorder %s34, 2
    // Predicated region
    $region105: #{residual_block_forward.1} parent=5 // pred_check
      %p732 = pneg %p731
    $region106: #{residual_block_forward.1} parent=5 // pred_check_branch
      %734 = sbr.rel (%p732) target = $region108
    $region107: #{residual_block_forward.1} parent=5 // pred_region
      // Predicated region
      $region109: #{residual_block_forward.1} parent=107 // pred_check
        %p735 = pneg %p54
      $region110: #{residual_block_forward.1} parent=107 // pred_check_branch
        %737 = sbr.rel (%p735) target = $region112
      $region111: #{residual_block_forward.1} parent=107 // pred_region
        %p738 = scmp.lt.s32.totalorder %s34, 1
        %s739 = scalar_select %p738, %s34, 1
        %s740 = smul.addr %s739, 2
        %s741 = smul.addr %s740, 8
        %s742 = scalar_lea.vmem %s0, %s741
      $region112: #{residual_block_forward.1} parent=107 // pred_fallthru
        _
      // Predicated region
      $region113: #{residual_block_forward.1} parent=107 // pred_check
        %p743 = pneg %p80
      $region114: #{residual_block_forward.1} parent=107 // pred_check_branch
        %745 = sbr.rel (%p743) target = $region116
      $region115: #{residual_block_forward.1} parent=107 // pred_region
        %p746 = scmp.lt.s32.totalorder %s34, 1
        %s747 = scalar_select %p746, %s34, 1
        %s748 = smul.addr %s747, 2
        %s749 = smul.addr %s748, 8
        %s750 = scalar_lea.vmem %s1, %s749
      $region116: #{residual_block_forward.1} parent=107 // pred_fallthru
        _
      // Predicated region
      $region117: #{residual_block_forward.1} parent=107 // pred_check
        %p751 = pneg %p106
      $region118: #{residual_block_forward.1} parent=107 // pred_check_branch
        %753 = sbr.rel (%p751) target = $region120
      $region119: #{residual_block_forward.1} parent=107 // pred_region
        %p754 = scmp.lt.s32.totalorder %s34, 1
        %s755 = scalar_select %p754, %s34, 1
        %s756 = smul.addr %s755, 8
        %s757 = scalar_lea.vmem %s2, %s756
      $region120: #{residual_block_forward.1} parent=107 // pred_fallthru
        _
    $region108: #{residual_block_forward.1} parent=5 // pred_fallthru
      _
    %p758 = scmp.le.s32.totalorder 1, %s34
    %p759 = scmp.lt.s32.totalorder %s34, 3
    %p760 = pnand %p758, %p759
    %p761 = pneg %p760
    // Predicated region
    $region121: #{residual_block_forward.1} parent=5 // pred_check
      _
    $region122: #{residual_block_forward.1} parent=5 // pred_check_branch
      %763 = sbr.rel (%p760) target = $region124
    $region123: #{residual_block_forward.1} parent=5 // pred_region
      %s764 = ssub.s32 %s34, 1
      %p765 = scmp.lt.s32.totalorder %s39, 1
      %s766 = scalar_select %p765, %s39, 1
      %s767 = smul.addr %s766, 2
      %s768 = smul.addr %s767, 8
      %s769 = scalar_lea.vmem %s0, %s768
      %p770 = pneg %p60
      %p771 = pneg %p57
      %p772 = scmp.lt.s32.totalorder %s39, 1
      %s773 = scalar_select %p772, %s39, 1
      %s774 = smul.addr %s773, 2
      %s775 = smul.addr %s774, 8
      %s776 = scalar_lea.vmem %s1, %s775
      %p777 = pneg %p86
      %p778 = pneg %p83
      %p779 = scmp.lt.s32.totalorder %s39, 1
      %s780 = scalar_select %p779, %s39, 1
      %s781 = smul.addr %s780, 8
      %s782 = scalar_lea.vmem %s2, %s781
      %p783 = pneg %p112
      %p784 = pneg %p109
      %p785 = pneg %p133
      %p786 = pneg %p130
      %p787 = pneg %p154
      %p788 = pneg %p151
      %p789 = pneg %p175
      %p790 = pneg %p172
      %p791 = pneg %p196
      %p792 = pneg %p193
      %p793 = pneg %p217
      %p794 = pneg %p214
      %p795 = pneg %p238
      %p796 = pneg %p235
      %p797 = pneg %p259
      %p798 = pneg %p256
      %p799 = pneg %p280
      %p800 = pneg %p277
      %p801 = pneg %p301
      %p802 = pneg %p298
      %p803 = pneg %p322
      %p804 = pneg %p319
      %p805 = pneg %p343
      %p806 = pneg %p340
      %p807 = pneg %p364
      %p808 = pneg %p361
      %p809 = pneg %p385
      %p810 = pneg %p382
      %p811 = pneg %p406
      %p812 = pneg %p403
      %p813 = pneg %p427
      %p814 = pneg %p424
      %p815 = pneg %p448
      %p816 = pneg %p445
      %p817 = pneg %p469
      %p818 = pneg %p466
      %p819 = pneg %p490
      %p820 = pneg %p487
      %p821 = pneg %p511
      %p822 = pneg %p508
      %p823 = pneg %p532
      %p824 = pneg %p529
      %p825 = pneg %p553
      %p826 = pneg %p550
      %p827 = pneg %p574
      %p828 = pneg %p571
      %p829 = pneg %p595
      %p830 = pneg %p592
      %p831 = pneg %p621
      %p832 = pneg %p618
      %p833 = scmp.lt.s32.totalorder %s39, 1
      %s834 = scalar_select %p833, %s39, 1
      %s835 = smul.addr %s834, 2
      %s836 = smul.addr %s835, 8
      %s837 = scalar_lea.vmem %s26, %s836
      %p838 = pneg %p647
      %p839 = pneg %p644
      %p840 = scmp.lt.s32.totalorder %s39, 1
      %s841 = scalar_select %p840, %s39, 1
      %s842 = smul.addr %s841, 2
      %s843 = smul.addr %s842, 8
      %s844 = scalar_lea.vmem %s27, %s843
      %p845 = scmp.lt.s32.totalorder %s39, 1
      %s846 = scalar_select %p845, %s39, 1
      %s847 = smul.addr %s846, 2
      %s848 = smul.addr %s847, 8
      %s849 = scalar_lea.vmem %s0, %s848
      %p850 = scmp.lt.s32.totalorder %s39, 1
      %s851 = scalar_select %p850, %s39, 1
      %s852 = smul.addr %s851, 2
      %s853 = smul.addr %s852, 8
      %s854 = scalar_lea.vmem %s1, %s853
      %p855 = scmp.lt.s32.totalorder %s39, 1
      %s856 = scalar_select %p855, %s39, 1
      %s857 = smul.addr %s856, 8
      %s858 = scalar_lea.vmem %s2, %s857
      %p859 = scmp.lt.s32.totalorder %s39, 1
      %s860 = scalar_select %p859, %s39, 1
      %s861 = smul.addr %s860, 2
      %s862 = smul.addr %s861, 8
      %s863 = scalar_lea.vmem %s26, %s862
      %p864 = scmp.lt.s32.totalorder %s39, 1
      %s865 = scalar_select %p864, %s39, 1
      %s866 = smul.addr %s865, 2
      %s867 = smul.addr %s866, 8
      %s868 = scalar_lea.vmem %s27, %s867
      %v870 = vld [vmem:[%s849] sm:$0xff]
      %v871 = vld [vmem:[%s849 + $0x8] sm:$0xff]
      %v872 = vld [vmem:[%s3] sm:$0xff]
      %v873 = vld [vmem:[%s3 + $0x8] sm:$0xff]
      %v874 = vld [vmem:[%s854] sm:$0xff]
      %v875 = vld [vmem:[%s854 + $0x8] sm:$0xff]
      %v876 = vpack.c.bf16 %v873, %v872
      %v877 = vpack.c.bf16 %v875, %v874
      %v878 = vld [vmem:[%s4] sm:$0xff]
      %v879 = vld [vmem:[%s4 + $0x8] sm:$0xff]
      %vm880 = vcmask 130048
      %v882 = vsel %vm880, %v876, 0
      %884 = vmatprep.subr.bf16.mxu0 0
      %885 = vmatpush1.bf16.msra.mxu0 0
      %886 = vmatprep.subr.bf16.mxu0 0
      %887 = vmatpush1.bf16.msra.mxu0 0
      %888 = vmatprep.subr.bf16.mxu0 0
      %889 = vmatpush1.bf16.msra.mxu0 0
      %890 = vmatprep.subr.bf16.mxu0 0
      %891 = vmatpush1.bf16.msra.mxu0 0
      %892 = vmatprep.subr.bf16.mxu0 0
      %893 = vmatpush1.bf16.msra.mxu0 0
      %894 = vmatprep.subr.bf16.mxu0 0
      %895 = vmatpush1.bf16.msra.mxu0 0
      %896 = vmatprep.subr.bf16.mxu0 0
      %897 = vmatpush1.bf16.msra.mxu0 0
      %898 = vmatprep.subr.bf16.mxu0 0
      %899 = vmatpush1.bf16.msra.mxu0 %v877
      %900 = vmatprep.subr.bf16.mxu0 0
      %901 = vmatpush2.bf16.msra.mxu0 0
      %902 = vmatprep.subr.bf16.mxu0 0
      %903 = vmatpush2.bf16.msra.mxu0 0
      %904 = vmatprep.subr.bf16.mxu0 0
      %905 = vmatpush2.bf16.msra.mxu0 0
      %906 = vmatprep.subr.bf16.mxu0 0
      %907 = vmatpush2.bf16.msra.mxu0 0
      %908 = vmatprep.subr.bf16.mxu0 0
      %909 = vmatpush2.bf16.msra.mxu0 0
      %910 = vmatprep.subr.bf16.mxu0 0
      %911 = vmatpush2.bf16.msra.mxu0 0
      %912 = vmatprep.subr.bf16.mxu0 0
      %913 = vmatpush2.bf16.msra.mxu0 0
      %914 = vmatprep.subr.bf16.mxu0 0
      %915 = vmatpush2.bf16.msra.mxu0 0
      %916 = vmatprep.mubr.bf16.mxu0 0
      %917 = vmatmul.mubr.bf16.gmra.mxu0 %v882
      %v918 = vpop.f32.mrf.mxu0
      %v919 = vadd.f32 %v878, %v918
      %v920 = vpop.f32.mrf.mxu0
      %v921 = vpop.f32.mrf.mxu0
      %v922 = vadd.f32 %v879, %v921
      %v923 = vpop.f32.mrf.mxu0
      %924 = vdwg.mxu0
      %926 = vset.pattern.permute.xlu0 0
      %927 = vperm.xlu0 %926, %v919
      %v928 = vpop.permute.xlu0 %927
      %931 = vset.pattern.permute.xlu0 0
      %932 = vperm.xlu0 %931, %v922
      %v933 = vpop.permute.xlu0 %932
      %v935 = vadd.f32 %v870, %v928
      %v936 = vadd.f32 %v871, %v933
      %937 = vxpose.xlu0.b32.start [1/16] %v935, 128
      %938 = vxpose.xlu0.b32.cont [2/16] %v936, 128
      %939 = vxpose.xlu0.b32.cont [3/16] 0.0, 128
      %940 = vxpose.xlu0.b32.cont [4/16] 0.0, 128
      %941 = vxpose.xlu0.b32.cont [5/16] 0.0, 128
      %942 = vxpose.xlu0.b32.cont [6/16] 0.0, 128
      %943 = vxpose.xlu0.b32.cont [7/16] 0.0, 128
      %944 = vxpose.xlu0.b32.cont [8/16] 0.0, 128
      %945 = vxpose.xlu0.b32.cont [9/16] 0.0, 128
      %946 = vxpose.xlu0.b32.cont [10/16] 0.0, 128
      %947 = vxpose.xlu0.b32.cont [11/16] 0.0, 128
      %948 = vxpose.xlu0.b32.cont [12/16] 0.0, 128
      %949 = vxpose.xlu0.b32.cont [13/16] 0.0, 128
      %950 = vxpose.xlu0.b32.cont [14/16] 0.0, 128
      %951 = vxpose.xlu0.b32.cont [15/16] 0.0, 128
      %952 = vxpose.xlu0.b32.end [16/16] 0.0, 128
      %v953 = vpop.trf.xlu0
      %v954 = vpop.trf.xlu0
      %v955 = vpop.trf.xlu0
      %v956 = vpop.trf.xlu0
      %v957 = vpop.trf.xlu0
      %v958 = vpop.trf.xlu0
      %v959 = vpop.trf.xlu0
      %v960 = vpop.trf.xlu0
      %v961 = vpop.trf.xlu0
      %v962 = vpop.trf.xlu0
      %v963 = vpop.trf.xlu0
      %v964 = vpop.trf.xlu0
      %v965 = vpop.trf.xlu0
      %v966 = vpop.trf.xlu0
      %v967 = vpop.trf.xlu0
      %v968 = vpop.trf.xlu0
      %v969 = vld [vmem:[%s19] sm:$0xff]
      %v970 = vld [vmem:[%s19 + $0x8] sm:$0xff]
      %v971 = vld [vmem:[%s19 + $0x10] sm:$0xff]
      %v972 = vld [vmem:[%s19 + $0x18] sm:$0xff]
      %v973 = vld [vmem:[%s19 + $0x20] sm:$0xff]
      %v974 = vld [vmem:[%s19 + $0x28] sm:$0xff]
      %v975 = vld [vmem:[%s19 + $0x30] sm:$0xff]
      %v976 = vld [vmem:[%s19 + $0x38] sm:$0xff]
      %v977 = vld [vmem:[%s19 + $0x40] sm:$0xff]
      %v978 = vld [vmem:[%s19 + $0x48] sm:$0xff]
      %v979 = vld [vmem:[%s19 + $0x50] sm:$0xff]
      %v980 = vld [vmem:[%s19 + $0x58] sm:$0xff]
      %v981 = vld [vmem:[%s19 + $0x60] sm:$0xff]
      %v982 = vld [vmem:[%s19 + $0x68] sm:$0xff]
      %v983 = vld [vmem:[%s19 + $0x70] sm:$0xff]
      %v984 = vld [vmem:[%s19 + $0x78] sm:$0xff]
      %v985 = vld [vmem:[%s20] sm:$0xff]
      %v986 = vld [vmem:[%s20 + $0x8] sm:$0xff]
      %v987 = vld [vmem:[%s20 + $0x10] sm:$0xff]
      %v988 = vld [vmem:[%s20 + $0x18] sm:$0xff]
      %v989 = vld [vmem:[%s20 + $0x20] sm:$0xff]
      %v990 = vld [vmem:[%s20 + $0x28] sm:$0xff]
      %v991 = vld [vmem:[%s20 + $0x30] sm:$0xff]
      %v992 = vld [vmem:[%s20 + $0x38] sm:$0xff]
      %v993 = vld [vmem:[%s20 + $0x40] sm:$0xff]
      %v994 = vld [vmem:[%s20 + $0x48] sm:$0xff]
      %v995 = vld [vmem:[%s20 + $0x50] sm:$0xff]
      %v996 = vld [vmem:[%s20 + $0x58] sm:$0xff]
      %v997 = vld [vmem:[%s20 + $0x60] sm:$0xff]
      %v998 = vld [vmem:[%s20 + $0x68] sm:$0xff]
      %v999 = vld [vmem:[%s20 + $0x70] sm:$0xff]
      %v1000 = vld [vmem:[%s20 + $0x78] sm:$0xff]
      %v1001 = vld [vmem:[%s6] sm:$0xf]
      %v1002 = vld [vmem:[%s5] sm:$0xff]
      %v1003 = vld [vmem:[%s5 + $0x8] sm:$0xff]
      %v1004 = vpack.c.bf16 %v954, %v953
      %v1005 = vpack.c.bf16 %v956, %v955
      %v1006 = vpack.c.bf16 %v1003, %v1002
      %v1007 = vlaneseq
      %v1008 = vshrl.u32 %v1007, 7
      %v1009 = vsub.s32 0, %v1008
      %v1010 = vrot.slane %v1001, %v1009
      %v1012 = vsel %vm880, %v1004, 0
      %v1015 = vsel %vm880, %v1005, 0
      %1017 = vmatprep.subr.bf16.mxu0 0
      %1018 = vmatpush1.bf16.msra.mxu0 0
      %1019 = vmatprep.subr.bf16.mxu0 0
      %1020 = vmatpush1.bf16.msra.mxu0 0
      %1021 = vmatprep.subr.bf16.mxu0 0
      %1022 = vmatpush1.bf16.msra.mxu0 0
      %1023 = vmatprep.subr.bf16.mxu0 0
      %1024 = vmatpush1.bf16.msra.mxu0 0
      %1025 = vmatprep.subr.bf16.mxu0 0
      %1026 = vmatpush1.bf16.msra.mxu0 0
      %1027 = vmatprep.subr.bf16.mxu0 0
      %1028 = vmatpush1.bf16.msra.mxu0 0
      %1029 = vmatprep.subr.bf16.mxu0 0
      %1030 = vmatpush1.bf16.msra.mxu0 0
      %1031 = vmatprep.subr.bf16.mxu0 0
      %1032 = vmatpush1.bf16.msra.mxu0 %v1006
      %1033 = vmatprep.subr.bf16.mxu0 0
      %1034 = vmatpush2.bf16.msra.mxu0 0
      %1035 = vmatprep.subr.bf16.mxu0 0
      %1036 = vmatpush2.bf16.msra.mxu0 0
      %1037 = vmatprep.subr.bf16.mxu0 0
      %1038 = vmatpush2.bf16.msra.mxu0 0
      %1039 = vmatprep.subr.bf16.mxu0 0
      %1040 = vmatpush2.bf16.msra.mxu0 0
      %1041 = vmatprep.subr.bf16.mxu0 0
      %1042 = vmatpush2.bf16.msra.mxu0 0
      %1043 = vmatprep.subr.bf16.mxu0 0
      %1044 = vmatpush2.bf16.msra.mxu0 0
      %1045 = vmatprep.subr.bf16.mxu0 0
      %1046 = vmatpush2.bf16.msra.mxu0 0
      %1047 = vmatprep.subr.bf16.mxu0 0
      %1048 = vmatpush2.bf16.msra.mxu0 0
      %1049 = vmatprep.mubr.bf16.mxu0 0
      %1050 = vmatmul.mubr.bf16.gmra.mxu0 %v1012
      %v1051 = vpop.f32.mrf.mxu0
      %v1052 = vadd.f32 %v1010, %v1051
      %v1053 = vpop.f32.mrf.mxu0
      %v1054 = vpop.f32.mrf.mxu0
      %v1055 = vadd.f32 %v1010, %v1054
      %v1056 = vpop.f32.mrf.mxu0
      %1057 = vmatprep.mubr.bf16.mxu0 0
      %1058 = vmatmul.mubr.bf16.gmra.mxu0 %v1015
      %v1059 = vpop.f32.mrf.mxu0
      %v1060 = vadd.f32 %v1010, %v1059
      %v1061 = vpop.f32.mrf.mxu0
      %v1062 = vpop.f32.mrf.mxu0
      %v1063 = vadd.f32 %v1010, %v1062
      %v1064 = vpop.f32.mrf.mxu0
      %1065 = vdwg.mxu0
      %s1066 = scalar_lea.vmem %s5, 16
      %v1067 = vld [vmem:[%s1066] sm:$0xff]
      %v1068 = vld [vmem:[%s1066 + $0x8] sm:$0xff]
      %v1069 = vpack.c.bf16 %v1068, %v1067
      %v1070 = vlaneseq
      %v1071 = vshrl.u32 %v1070, 7
      %v1072 = vsub.s32 1, %v1071
      %v1073 = vrot.slane %v1001, %v1072
      %1074 = vmatprep.subr.bf16.mxu0 0
      %1075 = vmatpush1.bf16.msra.mxu0 0
      %1076 = vmatprep.subr.bf16.mxu0 0
      %1077 = vmatpush1.bf16.msra.mxu0 0
      %1078 = vmatprep.subr.bf16.mxu0 0
      %1079 = vmatpush1.bf16.msra.mxu0 0
      %1080 = vmatprep.subr.bf16.mxu0 0
      %1081 = vmatpush1.bf16.msra.mxu0 0
      %1082 = vmatprep.subr.bf16.mxu0 0
      %1083 = vmatpush1.bf16.msra.mxu0 0
      %1084 = vmatprep.subr.bf16.mxu0 0
      %1085 = vmatpush1.bf16.msra.mxu0 0
      %1086 = vmatprep.subr.bf16.mxu0 0
      %1087 = vmatpush1.bf16.msra.mxu0 0
      %1088 = vmatprep.subr.bf16.mxu0 0
      %1089 = vmatpush1.bf16.msra.mxu0 %v1069
      %1090 = vmatprep.subr.bf16.mxu0 0
      %1091 = vmatpush2.bf16.msra.mxu0 0
      %1092 = vmatprep.subr.bf16.mxu0 0
      %1093 = vmatpush2.bf16.msra.mxu0 0
      %1094 = vmatprep.subr.bf16.mxu0 0
      %1095 = vmatpush2.bf16.msra.mxu0 0
      %1096 = vmatprep.subr.bf16.mxu0 0
      %1097 = vmatpush2.bf16.msra.mxu0 0
      %1098 = vmatprep.subr.bf16.mxu0 0
      %1099 = vmatpush2.bf16.msra.mxu0 0
      %1100 = vmatprep.subr.bf16.mxu0 0
      %1101 = vmatpush2.bf16.msra.mxu0 0
      %1102 = vmatprep.subr.bf16.mxu0 0
      %1103 = vmatpush2.bf16.msra.mxu0 0
      %1104 = vmatprep.subr.bf16.mxu0 0
      %1105 = vmatpush2.bf16.msra.mxu0 0
      %1106 = vmatprep.mubr.bf16.mxu0 0
      %1107 = vmatmul.mubr.bf16.gmra.mxu0 %v1012
      %v1108 = vpop.f32.mrf.mxu0
      %v1109 = vadd.f32 %v1073, %v1108
      %v1110 = vpop.f32.mrf.mxu0
      %v1111 = vpop.f32.mrf.mxu0
      %v1112 = vadd.f32 %v1073, %v1111
      %v1113 = vpop.f32.mrf.mxu0
      %1114 = vmatprep.mubr.bf16.mxu0 0
      %1115 = vmatmul.mubr.bf16.gmra.mxu0 %v1015
      %v1116 = vpop.f32.mrf.mxu0
      %v1117 = vadd.f32 %v1073, %v1116
      %v1118 = vpop.f32.mrf.mxu0
      %v1119 = vpop.f32.mrf.mxu0
      %v1120 = vadd.f32 %v1073, %v1119
      %v1121 = vpop.f32.mrf.mxu0
      %1122 = vdwg.mxu0
      %s1123 = scalar_lea.vmem %s5, 32
      %v1124 = vld [vmem:[%s1123] sm:$0xff]
      %v1125 = vld [vmem:[%s1123 + $0x8] sm:$0xff]
      %v1126 = vpack.c.bf16 %v1125, %v1124
      %v1127 = vlaneseq
      %v1128 = vshrl.u32 %v1127, 7
      %v1129 = vsub.s32 2, %v1128
      %v1130 = vrot.slane %v1001, %v1129
      %1131 = vmatprep.subr.bf16.mxu0 0
      %1132 = vmatpush1.bf16.msra.mxu0 0
      %1133 = vmatprep.subr.bf16.mxu0 0
      %1134 = vmatpush1.bf16.msra.mxu0 0
      %1135 = vmatprep.subr.bf16.mxu0 0
      %1136 = vmatpush1.bf16.msra.mxu0 0
      %1137 = vmatprep.subr.bf16.mxu0 0
      %1138 = vmatpush1.bf16.msra.mxu0 0
      %1139 = vmatprep.subr.bf16.mxu0 0
      %1140 = vmatpush1.bf16.msra.mxu0 0
      %1141 = vmatprep.subr.bf16.mxu0 0
      %1142 = vmatpush1.bf16.msra.mxu0 0
      %1143 = vmatprep.subr.bf16.mxu0 0
      %1144 = vmatpush1.bf16.msra.mxu0 0
      %1145 = vmatprep.subr.bf16.mxu0 0
      %1146 = vmatpush1.bf16.msra.mxu0 %v1126
      %1147 = vmatprep.subr.bf16.mxu0 0
      %1148 = vmatpush2.bf16.msra.mxu0 0
      %1149 = vmatprep.subr.bf16.mxu0 0
      %1150 = vmatpush2.bf16.msra.mxu0 0
      %1151 = vmatprep.subr.bf16.mxu0 0
      %1152 = vmatpush2.bf16.msra.mxu0 0
      %1153 = vmatprep.subr.bf16.mxu0 0
      %1154 = vmatpush2.bf16.msra.mxu0 0
      %1155 = vmatprep.subr.bf16.mxu0 0
      %1156 = vmatpush2.bf16.msra.mxu0 0
      %1157 = vmatprep.subr.bf16.mxu0 0
      %1158 = vmatpush2.bf16.msra.mxu0 0
      %1159 = vmatprep.subr.bf16.mxu0 0
      %1160 = vmatpush2.bf16.msra.mxu0 0
      %1161 = vmatprep.subr.bf16.mxu0 0
      %1162 = vmatpush2.bf16.msra.mxu0 0
      %1163 = vmatprep.mubr.bf16.mxu0 0
      %1164 = vmatmul.mubr.bf16.gmra.mxu0 %v1012
      %v1165 = vpop.f32.mrf.mxu0
      %v1166 = vadd.f32 %v1130, %v1165
      %v1167 = vpop.f32.mrf.mxu0
      %v1168 = vpop.f32.mrf.mxu0
      %v1169 = vadd.f32 %v1130, %v1168
      %v1170 = vpop.f32.mrf.mxu0
      %1171 = vmatprep.mubr.bf16.mxu0 0
      %1172 = vmatmul.mubr.bf16.gmra.mxu0 %v1015
      %v1173 = vpop.f32.mrf.mxu0
      %v1174 = vadd.f32 %v1130, %v1173
      %v1175 = vpop.f32.mrf.mxu0
      %v1176 = vpop.f32.mrf.mxu0
      %v1177 = vadd.f32 %v1130, %v1176
      %v1178 = vpop.f32.mrf.mxu0
      %1179 = vdwg.mxu0
      %v1180 = vmul.f32 %v1052, %v969
      %v1181 = vmul.f32 %v1055, %v970
      %v1182 = vmul.f32 %v1060, %v971
      %v1183 = vmul.f32 %v1063, %v972
      %v1184 = vmul.f32 %v1052, %v973
      %v1185 = vmul.f32 %v1055, %v974
      %v1186 = vmul.f32 %v1060, %v975
      %v1187 = vmul.f32 %v1063, %v976
      %v1188 = vmul.f32 %v1052, %v977
      %v1189 = vmul.f32 %v1055, %v978
      %v1190 = vmul.f32 %v1060, %v979
      %v1191 = vmul.f32 %v1063, %v980
      %v1192 = vmul.f32 %v1052, %v981
      %v1193 = vmul.f32 %v1055, %v982
      %v1194 = vmul.f32 %v1060, %v983
      %v1195 = vmul.f32 %v1063, %v984
      %v1196 = vpack.c.bf16 %v1181, %v1180
      %v1197 = vpack.c.bf16 %v1183, %v1182
      %v1198 = vpack.c.bf16 %v1185, %v1184
      %v1199 = vpack.c.bf16 %v1187, %v1186
      %v1200 = vpack.c.bf16 %v1189, %v1188
      %v1201 = vpack.c.bf16 %v1191, %v1190
      %v1202 = vpack.c.bf16 %v1193, %v1192
      %v1203 = vpack.c.bf16 %v1195, %v1194
      %v1204 = vpack.c.bf16 %v1112, %v1109
      %v1205 = vpack.c.bf16 %v1120, %v1117
      %v1207 = vsel %vm880, %v1196, 0
      %v1210 = vsel %vm880, %v1197, 0
      %v1213 = vsel %vm880, %v1198, 0
      %v1216 = vsel %vm880, %v1199, 0
      %v1219 = vsel %vm880, %v1200, 0
      %v1222 = vsel %vm880, %v1201, 0
      %v1225 = vsel %vm880, %v1202, 0
      %v1228 = vsel %vm880, %v1203, 0
      %v1231 = vsel %vm880, %v1204, 0
      %v1234 = vsel %vm880, %v1205, 0
      %1236 = vmatprep.subr.bf16.mxu0 0
      %1237 = vmatpush1.bf16.xpose.msra.mxu0 0
      %1238 = vmatprep.subr.bf16.mxu0 0
      %1239 = vmatpush1.bf16.xpose.msra.mxu0 0
      %1240 = vmatprep.subr.bf16.mxu0 0
      %1241 = vmatpush1.bf16.xpose.msra.mxu0 0
      %1242 = vmatprep.subr.bf16.mxu0 0
      %1243 = vmatpush1.bf16.xpose.msra.mxu0 0
      %1244 = vmatprep.subr.bf16.mxu0 0
      %1245 = vmatpush1.bf16.xpose.msra.mxu0 0
      %1246 = vmatprep.subr.bf16.mxu0 0
      %1247 = vmatpush1.bf16.xpose.msra.mxu0 0
      %1248 = vmatprep.subr.bf16.mxu0 0
      %1249 = vmatpush1.bf16.xpose.msra.mxu0 %v1234
      %1250 = vmatprep.subr.bf16.mxu0 0
      %1251 = vmatpush1.bf16.xpose.msra.mxu0 %v1231
      %1252 = vmatprep.subr.bf16.mxu0 0
      %1253 = vmatpush2.bf16.xpose.msra.mxu0 0
      %1254 = vmatprep.subr.bf16.mxu0 0
      %1255 = vmatpush2.bf16.xpose.msra.mxu0 0
      %1256 = vmatprep.subr.bf16.mxu0 0
      %1257 = vmatpush2.bf16.xpose.msra.mxu0 0
      %1258 = vmatprep.subr.bf16.mxu0 0
      %1259 = vmatpush2.bf16.xpose.msra.mxu0 0
      %1260 = vmatprep.subr.bf16.mxu0 0
      %1261 = vmatpush2.bf16.xpose.msra.mxu0 0
      %1262 = vmatprep.subr.bf16.mxu0 0
      %1263 = vmatpush2.bf16.xpose.msra.mxu0 0
      %1264 = vmatprep.subr.bf16.mxu0 0
      %1265 = vmatpush2.bf16.xpose.msra.mxu0 0
      %1266 = vmatprep.subr.bf16.mxu0 0
      %1267 = vmatpush2.bf16.xpose.msra.mxu0 0
      %1268 = vmatprep.mubr.bf16.mxu0 0
      %1269 = vmatmul.mubr.bf16.gmra.mxu0 %v1207
      %v1270 = vpop.f32.mrf.mxu0
      %v1271 = vadd.f32 0.0, %v1270
      %v1272 = vpop.f32.mrf.mxu0
      %v1273 = vpop.f32.mrf.mxu0
      %v1274 = vadd.f32 0.0, %v1273
      %v1275 = vpop.f32.mrf.mxu0
      %1276 = vmatprep.mubr.bf16.mxu0 0
      %1277 = vmatmul.mubr.bf16.gmra.mxu0 %v1210
      %v1278 = vpop.f32.mrf.mxu0
      %v1279 = vadd.f32 0.0, %v1278
      %v1280 = vpop.f32.mrf.mxu0
      %v1281 = vpop.f32.mrf.mxu0
      %v1282 = vadd.f32 0.0, %v1281
      %v1283 = vpop.f32.mrf.mxu0
      %1284 = vmatprep.mubr.bf16.mxu0 0
      %1285 = vmatmul.mubr.bf16.gmra.mxu0 %v1213
      %v1286 = vpop.f32.mrf.mxu0
      %v1287 = vadd.f32 0.0, %v1286
      %v1288 = vpop.f32.mrf.mxu0
      %v1289 = vpop.f32.mrf.mxu0
      %v1290 = vadd.f32 0.0, %v1289
      %v1291 = vpop.f32.mrf.mxu0
      %1292 = vmatprep.mubr.bf16.mxu0 0
      %1293 = vmatmul.mubr.bf16.gmra.mxu0 %v1216
      %v1294 = vpop.f32.mrf.mxu0
      %v1295 = vadd.f32 0.0, %v1294
      %v1296 = vpop.f32.mrf.mxu0
      %v1297 = vpop.f32.mrf.mxu0
      %v1298 = vadd.f32 0.0, %v1297
      %v1299 = vpop.f32.mrf.mxu0
      %1300 = vmatprep.mubr.bf16.mxu0 0
      %1301 = vmatmul.mubr.bf16.gmra.mxu0 %v1219
      %v1302 = vpop.f32.mrf.mxu0
      %v1303 = vadd.f32 0.0, %v1302
      %v1304 = vpop.f32.mrf.mxu0
      %v1305 = vpop.f32.mrf.mxu0
      %v1306 = vadd.f32 0.0, %v1305
      %v1307 = vpop.f32.mrf.mxu0
      %1308 = vmatprep.mubr.bf16.mxu0 0
      %1309 = vmatmul.mubr.bf16.gmra.mxu0 %v1222
      %v1310 = vpop.f32.mrf.mxu0
      %v1311 = vadd.f32 0.0, %v1310
      %v1312 = vpop.f32.mrf.mxu0
      %v1313 = vpop.f32.mrf.mxu0
      %v1314 = vadd.f32 0.0, %v1313
      %v1315 = vpop.f32.mrf.mxu0
      %1316 = vmatprep.mubr.bf16.mxu0 0
      %1317 = vmatmul.mubr.bf16.gmra.mxu0 %v1225
      %v1318 = vpop.f32.mrf.mxu0
      %v1319 = vadd.f32 0.0, %v1318
      %v1320 = vpop.f32.mrf.mxu0
      %v1321 = vpop.f32.mrf.mxu0
      %v1322 = vadd.f32 0.0, %v1321
      %v1323 = vpop.f32.mrf.mxu0
      %1324 = vmatprep.mubr.bf16.mxu0 0
      %1325 = vmatmul.mubr.bf16.gmra.mxu0 %v1228
      %v1326 = vpop.f32.mrf.mxu0
      %v1327 = vadd.f32 0.0, %v1326
      %v1328 = vpop.f32.mrf.mxu0
      %v1329 = vpop.f32.mrf.mxu0
      %v1330 = vadd.f32 0.0, %v1329
      %v1331 = vpop.f32.mrf.mxu0
      %1332 = vdwg.mxu0
      %v1333 = vmul.f32 %v1271, 0.5
      %v1334 = vmul.f32 %v1274, 0.5
      %v1335 = vmul.f32 %v1279, 0.5
      %v1336 = vmul.f32 %v1282, 0.5
      %v1337 = vmul.f32 %v1287, 0.5
      %v1338 = vmul.f32 %v1290, 0.5
      %v1339 = vmul.f32 %v1295, 0.5
      %v1340 = vmul.f32 %v1298, 0.5
      %v1341 = vmul.f32 %v1303, 0.5
      %v1342 = vmul.f32 %v1306, 0.5
      %v1343 = vmul.f32 %v1311, 0.5
      %v1344 = vmul.f32 %v1314, 0.5
      %v1345 = vmul.f32 %v1319, 0.5
      %v1346 = vmul.f32 %v1322, 0.5
      %v1347 = vmul.f32 %v1327, 0.5
      %v1348 = vmul.f32 %v1330, 0.5
      %v1349 = vadd.f32 %v1333, %v985
      %v1350 = vadd.f32 %v1334, %v986
      %v1351 = vadd.f32 %v1335, %v987
      %v1352 = vadd.f32 %v1336, %v988
      %v1353 = vadd.f32 %v1337, %v989
      %v1354 = vadd.f32 %v1338, %v990
      %v1355 = vadd.f32 %v1339, %v991
      %v1356 = vadd.f32 %v1340, %v992
      %v1357 = vadd.f32 %v1341, %v993
      %v1358 = vadd.f32 %v1342, %v994
      %v1359 = vadd.f32 %v1343, %v995
      %v1360 = vadd.f32 %v1344, %v996
      %v1361 = vadd.f32 %v1345, %v997
      %v1362 = vadd.f32 %v1346, %v998
      %v1363 = vadd.f32 %v1347, %v999
      %v1364 = vadd.f32 %v1348, %v1000
      %vm1365 = vcmask 261120
      %v1366 = vsel %vm1365, %v1349, -inf
      %1367 = vmax.xlane.f32.xlu0 %v1366
      %v1368 = vpop.xlane.xlu0 %1367
      %v1369 = vsel %vm1365, %v1350, -inf
      %1370 = vmax.xlane.f32.xlu0 %v1369
      %v1371 = vpop.xlane.xlu0 %1370
      %v1372 = vsel %vm1365, %v1351, -inf
      %1373 = vmax.xlane.f32.xlu0 %v1372
      %v1374 = vpop.xlane.xlu0 %1373
      %v1375 = vsel %vm1365, %v1352, -inf
      %1376 = vmax.xlane.f32.xlu0 %v1375
      %v1377 = vpop.xlane.xlu0 %1376
      %v1378 = vsel %vm1365, %v1353, -inf
      %1379 = vmax.xlane.f32.xlu0 %v1378
      %v1380 = vpop.xlane.xlu0 %1379
      %v1381 = vsel %vm1365, %v1354, -inf
      %1382 = vmax.xlane.f32.xlu0 %v1381
      %v1383 = vpop.xlane.xlu0 %1382
      %v1384 = vsel %vm1365, %v1355, -inf
      %1385 = vmax.xlane.f32.xlu0 %v1384
      %v1386 = vpop.xlane.xlu0 %1385
      %v1387 = vsel %vm1365, %v1356, -inf
      %1388 = vmax.xlane.f32.xlu0 %v1387
      %v1389 = vpop.xlane.xlu0 %1388
      %v1390 = vsel %vm1365, %v1357, -inf
      %1391 = vmax.xlane.f32.xlu0 %v1390
      %v1392 = vpop.xlane.xlu0 %1391
      %v1393 = vsel %vm1365, %v1358, -inf
      %1394 = vmax.xlane.f32.xlu0 %v1393
      %v1395 = vpop.xlane.xlu0 %1394
      %v1396 = vsel %vm1365, %v1359, -inf
      %1397 = vmax.xlane.f32.xlu0 %v1396
      %v1398 = vpop.xlane.xlu0 %1397
      %v1399 = vsel %vm1365, %v1360, -inf
      %1400 = vmax.xlane.f32.xlu0 %v1399
      %v1401 = vpop.xlane.xlu0 %1400
      %v1402 = vsel %vm1365, %v1361, -inf
      %1403 = vmax.xlane.f32.xlu0 %v1402
      %v1404 = vpop.xlane.xlu0 %1403
      %v1405 = vsel %vm1365, %v1362, -inf
      %1406 = vmax.xlane.f32.xlu0 %v1405
      %v1407 = vpop.xlane.xlu0 %1406
      %v1408 = vsel %vm1365, %v1363, -inf
      %1409 = vmax.xlane.f32.xlu0 %v1408
      %v1410 = vpop.xlane.xlu0 %1409
      %v1411 = vsel %vm1365, %v1364, -inf
      %1412 = vmax.xlane.f32.xlu0 %v1411
      %v1413 = vpop.xlane.xlu0 %1412
      %v1414 = vsub.f32 %v1349, %v1368
      %v1415 = vsub.f32 %v1350, %v1371
      %v1416 = vsub.f32 %v1351, %v1374
      %v1417 = vsub.f32 %v1352, %v1377
      %v1418 = vsub.f32 %v1353, %v1380
      %v1419 = vsub.f32 %v1354, %v1383
      %v1420 = vsub.f32 %v1355, %v1386
      %v1421 = vsub.f32 %v1356, %v1389
      %v1422 = vsub.f32 %v1357, %v1392
      %v1423 = vsub.f32 %v1358, %v1395
      %v1424 = vsub.f32 %v1359, %v1398
      %v1425 = vsub.f32 %v1360, %v1401
      %v1426 = vsub.f32 %v1361, %v1404
      %v1427 = vsub.f32 %v1362, %v1407
      %v1428 = vsub.f32 %v1363, %v1410
      %v1429 = vsub.f32 %v1364, %v1413
      %v1430 = vmul.f32 %v1414, 1.442695
      %v1431 = vpow.pop %v1430
      %v1432 = vmul.f32 %v1415, 1.442695
      %v1433 = vpow.pop %v1432
      %v1434 = vmul.f32 %v1416, 1.442695
      %v1435 = vpow.pop %v1434
      %v1436 = vmul.f32 %v1417, 1.442695
      %v1437 = vpow.pop %v1436
      %v1438 = vmul.f32 %v1418, 1.442695
      %v1439 = vpow.pop %v1438
      %v1440 = vmul.f32 %v1419, 1.442695
      %v1441 = vpow.pop %v1440
      %v1442 = vmul.f32 %v1420, 1.442695
      %v1443 = vpow.pop %v1442
      %v1444 = vmul.f32 %v1421, 1.442695
      %v1445 = vpow.pop %v1444
      %v1446 = vmul.f32 %v1422, 1.442695
      %v1447 = vpow.pop %v1446
      %v1448 = vmul.f32 %v1423, 1.442695
      %v1449 = vpow.pop %v1448
      %v1450 = vmul.f32 %v1424, 1.442695
      %v1451 = vpow.pop %v1450
      %v1452 = vmul.f32 %v1425, 1.442695
      %v1453 = vpow.pop %v1452
      %v1454 = vmul.f32 %v1426, 1.442695
      %v1455 = vpow.pop %v1454
      %v1456 = vmul.f32 %v1427, 1.442695
      %v1457 = vpow.pop %v1456
      %v1458 = vmul.f32 %v1428, 1.442695
      %v1459 = vpow.pop %v1458
      %v1460 = vmul.f32 %v1429, 1.442695
      %v1461 = vpow.pop %v1460
      %v1462 = vsel %vm1365, %v1431, 0.0
      %1463 = vadd.xlane.f32.xlu0 %v1462
      %v1464 = vpop.xlane.xlu0 %1463
      %v1465 = vsel %vm1365, %v1433, 0.0
      %1466 = vadd.xlane.f32.xlu0 %v1465
      %v1467 = vpop.xlane.xlu0 %1466
      %v1468 = vsel %vm1365, %v1435, 0.0
      %1469 = vadd.xlane.f32.xlu0 %v1468
      %v1470 = vpop.xlane.xlu0 %1469
      %v1471 = vsel %vm1365, %v1437, 0.0
      %1472 = vadd.xlane.f32.xlu0 %v1471
      %v1473 = vpop.xlane.xlu0 %1472
      %v1474 = vsel %vm1365, %v1439, 0.0
      %1475 = vadd.xlane.f32.xlu0 %v1474
      %v1476 = vpop.xlane.xlu0 %1475
      %v1477 = vsel %vm1365, %v1441, 0.0
      %1478 = vadd.xlane.f32.xlu0 %v1477
      %v1479 = vpop.xlane.xlu0 %1478
      %v1480 = vsel %vm1365, %v1443, 0.0
      %1481 = vadd.xlane.f32.xlu0 %v1480
      %v1482 = vpop.xlane.xlu0 %1481
      %v1483 = vsel %vm1365, %v1445, 0.0
      %1484 = vadd.xlane.f32.xlu0 %v1483
      %v1485 = vpop.xlane.xlu0 %1484
      %v1486 = vsel %vm1365, %v1447, 0.0
      %1487 = vadd.xlane.f32.xlu0 %v1486
      %v1488 = vpop.xlane.xlu0 %1487
      %v1489 = vsel %vm1365, %v1449, 0.0
      %1490 = vadd.xlane.f32.xlu0 %v1489
      %v1491 = vpop.xlane.xlu0 %1490
      %v1492 = vsel %vm1365, %v1451, 0.0
      %1493 = vadd.xlane.f32.xlu0 %v1492
      %v1494 = vpop.xlane.xlu0 %1493
      %v1495 = vsel %vm1365, %v1453, 0.0
      %1496 = vadd.xlane.f32.xlu0 %v1495
      %v1497 = vpop.xlane.xlu0 %1496
      %v1498 = vsel %vm1365, %v1455, 0.0
      %1499 = vadd.xlane.f32.xlu0 %v1498
      %v1500 = vpop.xlane.xlu0 %1499
      %v1501 = vsel %vm1365, %v1457, 0.0
      %1502 = vadd.xlane.f32.xlu0 %v1501
      %v1503 = vpop.xlane.xlu0 %1502
      %v1504 = vsel %vm1365, %v1459, 0.0
      %1505 = vadd.xlane.f32.xlu0 %v1504
      %v1506 = vpop.xlane.xlu0 %1505
      %v1507 = vsel %vm1365, %v1461, 0.0
      %1508 = vadd.xlane.f32.xlu0 %v1507
      %v1509 = vpop.xlane.xlu0 %1508
      %v1510 = vrcp.pop %v1464
      %v1511 = vmul.f32 %v1431, %v1510
      %v1512 = vrcp.pop %v1467
      %v1513 = vmul.f32 %v1433, %v1512
      %v1514 = vrcp.pop %v1470
      %v1515 = vmul.f32 %v1435, %v1514
      %v1516 = vrcp.pop %v1473
      %v1517 = vmul.f32 %v1437, %v1516
      %v1518 = vrcp.pop %v1476
      %v1519 = vmul.f32 %v1439, %v1518
      %v1520 = vrcp.pop %v1479
      %v1521 = vmul.f32 %v1441, %v1520
      %v1522 = vrcp.pop %v1482
      %v1523 = vmul.f32 %v1443, %v1522
      %v1524 = vrcp.pop %v1485
      %v1525 = vmul.f32 %v1445, %v1524
      %v1526 = vrcp.pop %v1488
      %v1527 = vmul.f32 %v1447, %v1526
      %v1528 = vrcp.pop %v1491
      %v1529 = vmul.f32 %v1449, %v1528
      %v1530 = vrcp.pop %v1494
      %v1531 = vmul.f32 %v1451, %v1530
      %v1532 = vrcp.pop %v1497
      %v1533 = vmul.f32 %v1453, %v1532
      %v1534 = vrcp.pop %v1500
      %v1535 = vmul.f32 %v1455, %v1534
      %v1536 = vrcp.pop %v1503
      %v1537 = vmul.f32 %v1457, %v1536
      %v1538 = vrcp.pop %v1506
      %v1539 = vmul.f32 %v1459, %v1538
      %v1540 = vrcp.pop %v1509
      %v1541 = vmul.f32 %v1461, %v1540
      %v1542 = vpack.c.bf16 %v1513, %v1511
      %v1543 = vpack.c.bf16 %v1517, %v1515
      %v1544 = vpack.c.bf16 %v1521, %v1519
      %v1545 = vpack.c.bf16 %v1525, %v1523
      %v1546 = vpack.c.bf16 %v1529, %v1527
      %v1547 = vpack.c.bf16 %v1533, %v1531
      %v1548 = vpack.c.bf16 %v1537, %v1535
      %v1549 = vpack.c.bf16 %v1541, %v1539
      %v1550 = vpack.c.bf16 %v1169, %v1166
      %v1551 = vpack.c.bf16 %v1177, %v1174
      %v1553 = vsel %vm1365, %v1542, 0
      %v1556 = vsel %vm1365, %v1543, 0
      %v1559 = vsel %vm1365, %v1544, 0
      %v1562 = vsel %vm1365, %v1545, 0
      %v1565 = vsel %vm1365, %v1546, 0
      %v1568 = vsel %vm1365, %v1547, 0
      %v1571 = vsel %vm1365, %v1548, 0
      %v1574 = vsel %vm1365, %v1549, 0
      %1576 = vmatprep.subr.bf16.mxu0 0
      %1577 = vmatpush1.bf16.msra.mxu0 0
      %1578 = vmatprep.subr.bf16.mxu0 0
      %1579 = vmatpush1.bf16.msra.mxu0 0
      %1580 = vmatprep.subr.bf16.mxu0 0
      %1581 = vmatpush1.bf16.msra.mxu0 0
      %1582 = vmatprep.subr.bf16.mxu0 0
      %1583 = vmatpush1.bf16.msra.mxu0 0
      %1584 = vmatprep.subr.bf16.mxu0 0
      %1585 = vmatpush1.bf16.msra.mxu0 0
      %1586 = vmatprep.subr.bf16.mxu0 0
      %1587 = vmatpush1.bf16.msra.mxu0 0
      %1588 = vmatprep.subr.bf16.mxu0 0
      %1589 = vmatpush1.bf16.msra.mxu0 %v1551
      %1590 = vmatprep.subr.bf16.mxu0 0
      %1591 = vmatpush1.bf16.msra.mxu0 %v1550
      %1592 = vmatprep.subr.bf16.mxu0 0
      %1593 = vmatpush2.bf16.msra.mxu0 0
      %1594 = vmatprep.subr.bf16.mxu0 0
      %1595 = vmatpush2.bf16.msra.mxu0 0
      %1596 = vmatprep.subr.bf16.mxu0 0
      %1597 = vmatpush2.bf16.msra.mxu0 0
      %1598 = vmatprep.subr.bf16.mxu0 0
      %1599 = vmatpush2.bf16.msra.mxu0 0
      %1600 = vmatprep.subr.bf16.mxu0 0
      %1601 = vmatpush2.bf16.msra.mxu0 0
      %1602 = vmatprep.subr.bf16.mxu0 0
      %1603 = vmatpush2.bf16.msra.mxu0 0
      %1604 = vmatprep.subr.bf16.mxu0 0
      %1605 = vmatpush2.bf16.msra.mxu0 0
      %1606 = vmatprep.subr.bf16.mxu0 0
      %1607 = vmatpush2.bf16.msra.mxu0 0
      %1608 = vmatprep.mubr.bf16.mxu0 0
      %1609 = vmatmul.mubr.bf16.gmra.mxu0 %v1553
      %v1610 = vpop.f32.mrf.mxu0
      %v1611 = vadd.f32 0.0, %v1610
      %v1612 = vpop.f32.mrf.mxu0
      %v1613 = vpop.f32.mrf.mxu0
      %v1614 = vadd.f32 0.0, %v1613
      %v1615 = vpop.f32.mrf.mxu0
      %1616 = vmatprep.mubr.bf16.mxu0 0
      %1617 = vmatmul.mubr.bf16.gmra.mxu0 %v1556
      %v1618 = vpop.f32.mrf.mxu0
      %v1619 = vadd.f32 0.0, %v1618
      %v1620 = vpop.f32.mrf.mxu0
      %v1621 = vpop.f32.mrf.mxu0
      %v1622 = vadd.f32 0.0, %v1621
      %v1623 = vpop.f32.mrf.mxu0
      %1624 = vmatprep.mubr.bf16.mxu0 0
      %1625 = vmatmul.mubr.bf16.gmra.mxu0 %v1559
      %v1626 = vpop.f32.mrf.mxu0
      %v1627 = vadd.f32 0.0, %v1626
      %v1628 = vpop.f32.mrf.mxu0
      %v1629 = vpop.f32.mrf.mxu0
      %v1630 = vadd.f32 0.0, %v1629
      %v1631 = vpop.f32.mrf.mxu0
      %1632 = vmatprep.mubr.bf16.mxu0 0
      %1633 = vmatmul.mubr.bf16.gmra.mxu0 %v1562
      %v1634 = vpop.f32.mrf.mxu0
      %v1635 = vadd.f32 0.0, %v1634
      %v1636 = vpop.f32.mrf.mxu0
      %v1637 = vpop.f32.mrf.mxu0
      %v1638 = vadd.f32 0.0, %v1637
      %v1639 = vpop.f32.mrf.mxu0
      %1640 = vmatprep.mubr.bf16.mxu0 0
      %1641 = vmatmul.mubr.bf16.gmra.mxu0 %v1565
      %v1642 = vpop.f32.mrf.mxu0
      %v1643 = vadd.f32 0.0, %v1642
      %v1644 = vpop.f32.mrf.mxu0
      %v1645 = vpop.f32.mrf.mxu0
      %v1646 = vadd.f32 0.0, %v1645
      %v1647 = vpop.f32.mrf.mxu0
      %1648 = vmatprep.mubr.bf16.mxu0 0
      %1649 = vmatmul.mubr.bf16.gmra.mxu0 %v1568
      %v1650 = vpop.f32.mrf.mxu0
      %v1651 = vadd.f32 0.0, %v1650
      %v1652 = vpop.f32.mrf.mxu0
      %v1653 = vpop.f32.mrf.mxu0
      %v1654 = vadd.f32 0.0, %v1653
      %v1655 = vpop.f32.mrf.mxu0
      %1656 = vmatprep.mubr.bf16.mxu0 0
      %1657 = vmatmul.mubr.bf16.gmra.mxu0 %v1571
      %v1658 = vpop.f32.mrf.mxu0
      %v1659 = vadd.f32 0.0, %v1658
      %v1660 = vpop.f32.mrf.mxu0
      %v1661 = vpop.f32.mrf.mxu0
      %v1662 = vadd.f32 0.0, %v1661
      %v1663 = vpop.f32.mrf.mxu0
      %1664 = vmatprep.mubr.bf16.mxu0 0
      %1665 = vmatmul.mubr.bf16.gmra.mxu0 %v1574
      %v1666 = vpop.f32.mrf.mxu0
      %v1667 = vadd.f32 0.0, %v1666
      %v1668 = vpop.f32.mrf.mxu0
      %v1669 = vpop.f32.mrf.mxu0
      %v1670 = vadd.f32 0.0, %v1669
      %v1671 = vpop.f32.mrf.mxu0
      %1672 = vdwg.mxu0
      %v1673 = vmul.f32 %v1611, %v969
      %v1674 = vmul.f32 %v1614, %v970
      %v1675 = vmul.f32 %v1619, %v971
      %v1676 = vmul.f32 %v1622, %v972
      %v1677 = vmul.f32 %v1627, %v973
      %v1678 = vmul.f32 %v1630, %v974
      %v1679 = vmul.f32 %v1635, %v975
      %v1680 = vmul.f32 %v1638, %v976
      %v1681 = vmul.f32 %v1643, %v977
      %v1682 = vmul.f32 %v1646, %v978
      %v1683 = vmul.f32 %v1651, %v979
      %v1684 = vmul.f32 %v1654, %v980
      %v1685 = vmul.f32 %v1659, %v981
      %v1686 = vmul.f32 %v1662, %v982
      %v1687 = vmul.f32 %v1667, %v983
      %v1688 = vmul.f32 %v1670, %v984
      %v1689 = vadd.f32 %v1673, %v1677
      %v1690 = vadd.f32 %v1674, %v1678
      %v1691 = vadd.f32 %v1675, %v1679
      %v1692 = vadd.f32 %v1676, %v1680
      %v1693 = vadd.f32 %v1689, %v1681
      %v1694 = vadd.f32 %v1690, %v1682
      %v1695 = vadd.f32 %v1691, %v1683
      %v1696 = vadd.f32 %v1692, %v1684
      %v1697 = vadd.f32 %v1693, %v1685
      %v1698 = vadd.f32 %v1694, %v1686
      %v1699 = vadd.f32 %v1695, %v1687
      %v1700 = vadd.f32 %v1696, %v1688
      %s1701 = scalar_lea.vmem %s5, 48
      %v1702 = vld [vmem:[%s1701] sm:$0xff]
      %v1703 = vld [vmem:[%s1701 + $0x8] sm:$0xff]
      %v1704 = vpack.c.bf16 %v1698, %v1697
      %v1705 = vpack.c.bf16 %v1700, %v1699
      %v1706 = vpack.c.bf16 %v1703, %v1702
      %v1707 = vlaneseq
      %v1708 = vshrl.u32 %v1707, 7
      %v1709 = vsub.s32 3, %v1708
      %v1710 = vrot.slane %v1001, %v1709
      %v1712 = vsel %vm880, %v1704, 0
      %v1715 = vsel %vm880, %v1705, 0
      %1717 = vmatprep.subr.bf16.mxu0 0
      %1718 = vmatpush1.bf16.msra.mxu0 0
      %1719 = vmatprep.subr.bf16.mxu0 0
      %1720 = vmatpush1.bf16.msra.mxu0 0
      %1721 = vmatprep.subr.bf16.mxu0 0
      %1722 = vmatpush1.bf16.msra.mxu0 0
      %1723 = vmatprep.subr.bf16.mxu0 0
      %1724 = vmatpush1.bf16.msra.mxu0 0
      %1725 = vmatprep.subr.bf16.mxu0 0
      %1726 = vmatpush1.bf16.msra.mxu0 0
      %1727 = vmatprep.subr.bf16.mxu0 0
      %1728 = vmatpush1.bf16.msra.mxu0 0
      %1729 = vmatprep.subr.bf16.mxu0 0
      %1730 = vmatpush1.bf16.msra.mxu0 0
      %1731 = vmatprep.subr.bf16.mxu0 0
      %1732 = vmatpush1.bf16.msra.mxu0 %v1706
      %1733 = vmatprep.subr.bf16.mxu0 0
      %1734 = vmatpush2.bf16.msra.mxu0 0
      %1735 = vmatprep.subr.bf16.mxu0 0
      %1736 = vmatpush2.bf16.msra.mxu0 0
      %1737 = vmatprep.subr.bf16.mxu0 0
      %1738 = vmatpush2.bf16.msra.mxu0 0
      %1739 = vmatprep.subr.bf16.mxu0 0
      %1740 = vmatpush2.bf16.msra.mxu0 0
      %1741 = vmatprep.subr.bf16.mxu0 0
      %1742 = vmatpush2.bf16.msra.mxu0 0
      %1743 = vmatprep.subr.bf16.mxu0 0
      %1744 = vmatpush2.bf16.msra.mxu0 0
      %1745 = vmatprep.subr.bf16.mxu0 0
      %1746 = vmatpush2.bf16.msra.mxu0 0
      %1747 = vmatprep.subr.bf16.mxu0 0
      %1748 = vmatpush2.bf16.msra.mxu0 0
      %1749 = vmatprep.mubr.bf16.mxu0 0
      %1750 = vmatmul.mubr.bf16.gmra.mxu0 %v1712
      %v1751 = vpop.f32.mrf.mxu0
      %v1752 = vadd.f32 %v1710, %v1751
      %v1753 = vpop.f32.mrf.mxu0
      %v1754 = vpop.f32.mrf.mxu0
      %v1755 = vadd.f32 %v1710, %v1754
      %v1756 = vpop.f32.mrf.mxu0
      %1757 = vmatprep.mubr.bf16.mxu0 0
      %1758 = vmatmul.mubr.bf16.gmra.mxu0 %v1715
      %v1759 = vpop.f32.mrf.mxu0
      %v1760 = vadd.f32 %v1710, %v1759
      %v1761 = vpop.f32.mrf.mxu0
      %v1762 = vpop.f32.mrf.mxu0
      %v1763 = vadd.f32 %v1710, %v1762
      %v1764 = vpop.f32.mrf.mxu0
      %1765 = vdwg.mxu0
      %v1766 = vld [vmem:[%s7] sm:$0xf]
      %v1767 = vadd.f32 %v953, %v1752
      %v1768 = vadd.f32 %v954, %v1755
      %v1769 = vadd.f32 %v955, %v1760
      %v1770 = vadd.f32 %v956, %v1763
      %v1771 = vsel %vm880, %v1767, 0.0
      %1772 = vadd.xlane.f32.xlu0 %v1771
      %v1773 = vpop.xlane.xlu0 %1772
      %v1774 = vsel %vm880, %v1768, 0.0
      %1775 = vadd.xlane.f32.xlu0 %v1774
      %v1776 = vpop.xlane.xlu0 %1775
      %v1777 = vsel %vm880, %v1769, 0.0
      %1778 = vadd.xlane.f32.xlu0 %v1777
      %v1779 = vpop.xlane.xlu0 %1778
      %v1780 = vsel %vm880, %v1770, 0.0
      %1781 = vadd.xlane.f32.xlu0 %v1780
      %v1782 = vpop.xlane.xlu0 %1781
      %v1783 = vrcp.pop 16.0
      %v1784 = vmul.f32 %v1773, %v1783
      %v1785 = vmul.f32 %v1776, %v1783
      %v1786 = vmul.f32 %v1779, %v1783
      %v1787 = vmul.f32 %v1782, %v1783
      %v1788 = vsub.f32 %v1767, %v1784
      %v1789 = vsub.f32 %v1768, %v1785
      %v1790 = vsub.f32 %v1769, %v1786
      %v1791 = vsub.f32 %v1770, %v1787
      %v1792 = vmul.f32 %v1788, %v1788
      %v1793 = vmul.f32 %v1789, %v1789
      %v1794 = vmul.f32 %v1790, %v1790
      %v1795 = vmul.f32 %v1791, %v1791
      %v1796 = vsel %vm880, %v1792, 0.0
      %1797 = vadd.xlane.f32.xlu0 %v1796
      %v1798 = vpop.xlane.xlu0 %1797
      %v1799 = vsel %vm880, %v1793, 0.0
      %1800 = vadd.xlane.f32.xlu0 %v1799
      %v1801 = vpop.xlane.xlu0 %1800
      %v1802 = vsel %vm880, %v1794, 0.0
      %1803 = vadd.xlane.f32.xlu0 %v1802
      %v1804 = vpop.xlane.xlu0 %1803
      %v1805 = vsel %vm880, %v1795, 0.0
      %1806 = vadd.xlane.f32.xlu0 %v1805
      %v1807 = vpop.xlane.xlu0 %1806
      %v1808 = vmul.f32 %v1798, %v1783
      %v1809 = vmul.f32 %v1801, %v1783
      %v1810 = vmul.f32 %v1804, %v1783
      %v1811 = vmul.f32 %v1807, %v1783
      %v1812 = vadd.f32 %v1808, 1e-05
      %v1813 = vadd.f32 %v1809, 1e-05
      %v1814 = vadd.f32 %v1810, 1e-05
      %v1815 = vadd.f32 %v1811, 1e-05
      %v1816 = vrsqrt.pop %v1812
      %v1817 = vrsqrt.pop %v1813
      %v1818 = vrsqrt.pop %v1814
      %v1819 = vrsqrt.pop %v1815
      %v1820 = vmul.f32 %v1788, %v1816
      %v1821 = vmul.f32 %v1789, %v1817
      %v1822 = vmul.f32 %v1790, %v1818
      %v1823 = vmul.f32 %v1791, %v1819
      %v1824 = vlaneseq
      %v1825 = vshrl.u32 %v1824, 7
      %v1826 = vsub.s32 0, %v1825
      %v1827 = vrot.slane %v1766, %v1826
      %v1828 = vmul.f32 %v1820, %v1827
      %v1829 = vmul.f32 %v1821, %v1827
      %v1830 = vmul.f32 %v1822, %v1827
      %v1831 = vmul.f32 %v1823, %v1827
      %v1832 = vlaneseq
      %v1833 = vshrl.u32 %v1832, 7
      %v1834 = vsub.s32 1, %v1833
      %v1835 = vrot.slane %v1766, %v1834
      %v1836 = vadd.f32 %v1828, %v1835
      %v1837 = vadd.f32 %v1829, %v1835
      %v1838 = vadd.f32 %v1830, %v1835
      %v1839 = vadd.f32 %v1831, %v1835
      %v1840 = vld [vmem:[%s8] sm:$0xff]
      %v1841 = vld [vmem:[%s8 + $0x8] sm:$0xff]
      %v1842 = vpack.c.bf16 %v1837, %v1836
      %v1843 = vpack.c.bf16 %v1839, %v1838
      %v1844 = vpack.c.bf16 %v1841, %v1840
      %v1845 = vld [vmem:[%s9] sm:$0x1]
      %v1847 = vlaneseq
      %v1848 = vshrl.u32 %v1847, 7
      %v1849 = vsub.s32 0, %v1848
      %v1850 = vrot.slane %v1845, %v1849
      %v1853 = vsel %vm880, %v1842, 0
      %v1856 = vsel %vm880, %v1843, 0
      %1858 = vmatprep.subr.bf16.mxu0 0
      %1859 = vmatpush1.bf16.msra.mxu0 0
      %1860 = vmatprep.subr.bf16.mxu0 0
      %1861 = vmatpush1.bf16.msra.mxu0 0
      %1862 = vmatprep.subr.bf16.mxu0 0
      %1863 = vmatpush1.bf16.msra.mxu0 0
      %1864 = vmatprep.subr.bf16.mxu0 0
      %1865 = vmatpush1.bf16.msra.mxu0 0
      %1866 = vmatprep.subr.bf16.mxu0 0
      %1867 = vmatpush1.bf16.msra.mxu0 0
      %1868 = vmatprep.subr.bf16.mxu0 0
      %1869 = vmatpush1.bf16.msra.mxu0 0
      %1870 = vmatprep.subr.bf16.mxu0 0
      %1871 = vmatpush1.bf16.msra.mxu0 0
      %1872 = vmatprep.subr.bf16.mxu0 0
      %1873 = vmatpush1.bf16.msra.mxu0 %v1844
      %1874 = vmatprep.subr.bf16.mxu0 0
      %1875 = vmatpush2.bf16.msra.mxu0 0
      %1876 = vmatprep.subr.bf16.mxu0 0
      %1877 = vmatpush2.bf16.msra.mxu0 0
      %1878 = vmatprep.subr.bf16.mxu0 0
      %1879 = vmatpush2.bf16.msra.mxu0 0
      %1880 = vmatprep.subr.bf16.mxu0 0
      %1881 = vmatpush2.bf16.msra.mxu0 0
      %1882 = vmatprep.subr.bf16.mxu0 0
      %1883 = vmatpush2.bf16.msra.mxu0 0
      %1884 = vmatprep.subr.bf16.mxu0 0
      %1885 = vmatpush2.bf16.msra.mxu0 0
      %1886 = vmatprep.subr.bf16.mxu0 0
      %1887 = vmatpush2.bf16.msra.mxu0 0
      %1888 = vmatprep.subr.bf16.mxu0 0
      %1889 = vmatpush2.bf16.msra.mxu0 0
      %1890 = vmatprep.mubr.bf16.mxu0 0
      %1891 = vmatmul.mubr.bf16.gmra.mxu0 %v1853
      %v1892 = vpop.f32.mrf.mxu0
      %v1893 = vadd.f32 %v1850, %v1892
      %v1894 = vpop.f32.mrf.mxu0
      %v1895 = vpop.f32.mrf.mxu0
      %v1896 = vadd.f32 %v1850, %v1895
      %v1897 = vpop.f32.mrf.mxu0
      %1898 = vmatprep.mubr.bf16.mxu0 0
      %1899 = vmatmul.mubr.bf16.gmra.mxu0 %v1856
      %v1900 = vpop.f32.mrf.mxu0
      %v1901 = vadd.f32 %v1850, %v1900
      %v1902 = vpop.f32.mrf.mxu0
      %v1903 = vpop.f32.mrf.mxu0
      %v1904 = vadd.f32 %v1850, %v1903
      %v1905 = vpop.f32.mrf.mxu0
      %1906 = vdwg.mxu0
      %v1907 = vmul.f32 %v1893, 0.5
      %v1908 = vmul.f32 %v1896, 0.5
      %v1909 = vmul.f32 %v1901, 0.5
      %v1910 = vmul.f32 %v1904, 0.5
      %v1911 = vmul.f32 %v1893, 0.044715
      %v1912 = vmul.f32 %v1896, 0.044715
      %v1913 = vmul.f32 %v1901, 0.044715
      %v1914 = vmul.f32 %v1904, 0.044715
      %v1915 = vmul.f32 %v1911, %v1893
      %v1916 = vmul.f32 %v1912, %v1896
      %v1917 = vmul.f32 %v1913, %v1901
      %v1918 = vmul.f32 %v1914, %v1904
      %v1919 = vmul.f32 %v1915, %v1893
      %v1920 = vmul.f32 %v1916, %v1896
      %v1921 = vmul.f32 %v1917, %v1901
      %v1922 = vmul.f32 %v1918, %v1904
      %v1923 = vadd.f32 %v1893, %v1919
      %v1924 = vadd.f32 %v1896, %v1920
      %v1925 = vadd.f32 %v1901, %v1921
      %v1926 = vadd.f32 %v1904, %v1922
      %v1927 = vmul.f32 %v1923, 0.7978846
      %v1928 = vmul.f32 %v1924, 0.7978846
      %v1929 = vmul.f32 %v1925, 0.7978846
      %v1930 = vmul.f32 %v1926, 0.7978846
      %v1931 = vtanh.pop %v1927
      %v1932 = vtanh.pop %v1928
      %v1933 = vtanh.pop %v1929
      %v1934 = vtanh.pop %v1930
      %v1935 = vadd.f32 %v1931, 1.0
      %v1936 = vadd.f32 %v1932, 1.0
      %v1937 = vadd.f32 %v1933, 1.0
      %v1938 = vadd.f32 %v1934, 1.0
      %v1939 = vmul.f32 %v1907, %v1935
      %v1940 = vmul.f32 %v1908, %v1936
      %v1941 = vmul.f32 %v1909, %v1937
      %v1942 = vmul.f32 %v1910, %v1938
      %v1943 = vld [vmem:[%s10] sm:$0xff]
      %v1944 = vld [vmem:[%s10 + $0x8] sm:$0xff]
      %v1945 = vld [vmem:[%s10 + $0x10] sm:$0xff]
      %v1946 = vld [vmem:[%s10 + $0x18] sm:$0xff]
      %v1947 = vld [vmem:[%s10 + $0x20] sm:$0xff]
      %v1948 = vld [vmem:[%s10 + $0x28] sm:$0xff]
      %v1949 = vld [vmem:[%s10 + $0x30] sm:$0xff]
      %v1950 = vld [vmem:[%s10 + $0x38] sm:$0xff]
      %v1951 = vpack.c.bf16 %v1940, %v1939
      %v1952 = vpack.c.bf16 %v1942, %v1941
      %v1953 = vpack.c.bf16 %v1944, %v1943
      %v1954 = vpack.c.bf16 %v1946, %v1945
      %v1955 = vpack.c.bf16 %v1948, %v1947
      %v1956 = vpack.c.bf16 %v1950, %v1949
      %v1957 = vld [vmem:[%s11] sm:$0x1]
      %v1959 = vlaneseq
      %v1960 = vshrl.u32 %v1959, 7
      %v1961 = vsub.s32 0, %v1960
      %v1962 = vrot.slane %v1957, %v1961
      %vm1964 = vcmask 523264
      %v1966 = vsel %vm1964, %v1951, 0
      %v1969 = vsel %vm1964, %v1952, 0
      %1971 = vmatprep.subr.bf16.mxu0 0
      %1972 = vmatpush1.bf16.msra.mxu0 0
      %1973 = vmatprep.subr.bf16.mxu0 0
      %1974 = vmatpush1.bf16.msra.mxu0 0
      %1975 = vmatprep.subr.bf16.mxu0 0
      %1976 = vmatpush1.bf16.msra.mxu0 0
      %1977 = vmatprep.subr.bf16.mxu0 0
      %1978 = vmatpush1.bf16.msra.mxu0 0
      %1979 = vmatprep.subr.bf16.mxu0 0
      %1980 = vmatpush1.bf16.msra.mxu0 %v1956
      %1981 = vmatprep.subr.bf16.mxu0 0
      %1982 = vmatpush1.bf16.msra.mxu0 %v1955
      %1983 = vmatprep.subr.bf16.mxu0 0
      %1984 = vmatpush1.bf16.msra.mxu0 %v1954
      %1985 = vmatprep.subr.bf16.mxu0 0
      %1986 = vmatpush1.bf16.msra.mxu0 %v1953
      %1987 = vmatprep.subr.bf16.mxu0 0
      %1988 = vmatpush2.bf16.msra.mxu0 0
      %1989 = vmatprep.subr.bf16.mxu0 0
      %1990 = vmatpush2.bf16.msra.mxu0 0
      %1991 = vmatprep.subr.bf16.mxu0 0
      %1992 = vmatpush2.bf16.msra.mxu0 0
      %1993 = vmatprep.subr.bf16.mxu0 0
      %1994 = vmatpush2.bf16.msra.mxu0 0
      %1995 = vmatprep.subr.bf16.mxu0 0
      %1996 = vmatpush2.bf16.msra.mxu0 0
      %1997 = vmatprep.subr.bf16.mxu0 0
      %1998 = vmatpush2.bf16.msra.mxu0 0
      %1999 = vmatprep.subr.bf16.mxu0 0
      %2000 = vmatpush2.bf16.msra.mxu0 0
      %2001 = vmatprep.subr.bf16.mxu0 0
      %2002 = vmatpush2.bf16.msra.mxu0 0
      %2003 = vmatprep.mubr.bf16.mxu0 0
      %2004 = vmatmul.mubr.bf16.gmra.mxu0 %v1966
      %v2005 = vpop.f32.mrf.mxu0
      %v2006 = vadd.f32 %v1962, %v2005
      %v2007 = vpop.f32.mrf.mxu0
      %v2008 = vpop.f32.mrf.mxu0
      %v2009 = vadd.f32 %v1962, %v2008
      %v2010 = vpop.f32.mrf.mxu0
      %2011 = vmatprep.mubr.bf16.mxu0 0
      %2012 = vmatmul.mubr.bf16.gmra.mxu0 %v1969
      %v2013 = vpop.f32.mrf.mxu0
      %v2014 = vadd.f32 %v1962, %v2013
      %v2015 = vpop.f32.mrf.mxu0
      %v2016 = vpop.f32.mrf.mxu0
      %v2017 = vadd.f32 %v1962, %v2016
      %v2018 = vpop.f32.mrf.mxu0
      %2019 = vdwg.mxu0
      %v2020 = vadd.f32 %v1836, %v2006
      %v2021 = vadd.f32 %v1837, %v2009
      %v2022 = vadd.f32 %v1838, %v2014
      %v2023 = vadd.f32 %v1839, %v2017
      %v2024 = vsel %vm880, %v2020, 0.0
      %2025 = vadd.xlane.f32.xlu0 %v2024
      %v2026 = vpop.xlane.xlu0 %2025
      %v2027 = vsel %vm880, %v2021, 0.0
      %2028 = vadd.xlane.f32.xlu0 %v2027
      %v2029 = vpop.xlane.xlu0 %2028
      %v2030 = vsel %vm880, %v2022, 0.0
      %2031 = vadd.xlane.f32.xlu0 %v2030
      %v2032 = vpop.xlane.xlu0 %2031
      %v2033 = vsel %vm880, %v2023, 0.0
      %2034 = vadd.xlane.f32.xlu0 %v2033
      %v2035 = vpop.xlane.xlu0 %2034
      %v2036 = vmul.f32 %v2026, %v1783
      %v2037 = vmul.f32 %v2029, %v1783
      %v2038 = vmul.f32 %v2032, %v1783
      %v2039 = vmul.f32 %v2035, %v1783
      %v2040 = vsub.f32 %v2020, %v2036
      %v2041 = vsub.f32 %v2021, %v2037
      %v2042 = vsub.f32 %v2022, %v2038
      %v2043 = vsub.f32 %v2023, %v2039
      %v2044 = vmul.f32 %v2040, %v2040
      %v2045 = vmul.f32 %v2041, %v2041
      %v2046 = vmul.f32 %v2042, %v2042
      %v2047 = vmul.f32 %v2043, %v2043
      %v2048 = vsel %vm880, %v2044, 0.0
      %2049 = vadd.xlane.f32.xlu0 %v2048
      %v2050 = vpop.xlane.xlu0 %2049
      %v2051 = vsel %vm880, %v2045, 0.0
      %2052 = vadd.xlane.f32.xlu0 %v2051
      %v2053 = vpop.xlane.xlu0 %2052
      %v2054 = vsel %vm880, %v2046, 0.0
      %2055 = vadd.xlane.f32.xlu0 %v2054
      %v2056 = vpop.xlane.xlu0 %2055
      %v2057 = vsel %vm880, %v2047, 0.0
      %2058 = vadd.xlane.f32.xlu0 %v2057
      %v2059 = vpop.xlane.xlu0 %2058
      %v2060 = vmul.f32 %v2050, %v1783
      %v2061 = vmul.f32 %v2053, %v1783
      %v2062 = vmul.f32 %v2056, %v1783
      %v2063 = vmul.f32 %v2059, %v1783
      %v2064 = vadd.f32 %v2060, 1e-05
      %v2065 = vadd.f32 %v2061, 1e-05
      %v2066 = vadd.f32 %v2062, 1e-05
      %v2067 = vadd.f32 %v2063, 1e-05
      %v2068 = vrsqrt.pop %v2064
      %v2069 = vrsqrt.pop %v2065
      %v2070 = vrsqrt.pop %v2066
      %v2071 = vrsqrt.pop %v2067
      %v2072 = vmul.f32 %v2040, %v2068
      %v2073 = vmul.f32 %v2041, %v2069
      %v2074 = vmul.f32 %v2042, %v2070
      %v2075 = vmul.f32 %v2043, %v2071
      %v2076 = vlaneseq
      %v2077 = vshrl.u32 %v2076, 7
      %v2078 = vsub.s32 2, %v2077
      %v2079 = vrot.slane %v1766, %v2078
      %v2080 = vmul.f32 %v2072, %v2079
      %v2081 = vmul.f32 %v2073, %v2079
      %v2082 = vmul.f32 %v2074, %v2079
      %v2083 = vmul.f32 %v2075, %v2079
      %v2084 = vlaneseq
      %v2085 = vshrl.u32 %v2084, 7
      %v2086 = vsub.s32 3, %v2085
      %v2087 = vrot.slane %v1766, %v2086
      %v2088 = vadd.f32 %v2080, %v2087
      %v2089 = vadd.f32 %v2081, %v2087
      %v2090 = vadd.f32 %v2082, %v2087
      %v2091 = vadd.f32 %v2083, %v2087
      %v2092 = vld [vmem:[%s21] sm:$0xff]
      %v2093 = vld [vmem:[%s21 + $0x8] sm:$0xff]
      %v2094 = vld [vmem:[%s21 + $0x10] sm:$0xff]
      %v2095 = vld [vmem:[%s21 + $0x18] sm:$0xff]
      %v2096 = vld [vmem:[%s21 + $0x20] sm:$0xff]
      %v2097 = vld [vmem:[%s21 + $0x28] sm:$0xff]
      %v2098 = vld [vmem:[%s21 + $0x30] sm:$0xff]
      %v2099 = vld [vmem:[%s21 + $0x38] sm:$0xff]
      %v2100 = vld [vmem:[%s21 + $0x40] sm:$0xff]
      %v2101 = vld [vmem:[%s21 + $0x48] sm:$0xff]
      %v2102 = vld [vmem:[%s21 + $0x50] sm:$0xff]
      %v2103 = vld [vmem:[%s21 + $0x58] sm:$0xff]
      %v2104 = vld [vmem:[%s21 + $0x60] sm:$0xff]
      %v2105 = vld [vmem:[%s21 + $0x68] sm:$0xff]
      %v2106 = vld [vmem:[%s21 + $0x70] sm:$0xff]
      %v2107 = vld [vmem:[%s21 + $0x78] sm:$0xff]
      %v2108 = vld [vmem:[%s13] sm:$0xf]
      %v2109 = vld [vmem:[%s12] sm:$0xff]
      %v2110 = vld [vmem:[%s12 + $0x8] sm:$0xff]
      %v2111 = vpack.c.bf16 %v2089, %v2088
      %v2112 = vpack.c.bf16 %v2091, %v2090
      %v2113 = vpack.c.bf16 %v2110, %v2109
      %v2114 = vlaneseq
      %v2115 = vshrl.u32 %v2114, 7
      %v2116 = vsub.s32 0, %v2115
      %v2117 = vrot.slane %v2108, %v2116
      %v2119 = vsel %vm880, %v2111, 0
      %v2122 = vsel %vm880, %v2112, 0
      %2124 = vmatprep.subr.bf16.mxu0 0
      %2125 = vmatpush1.bf16.msra.mxu0 0
      %2126 = vmatprep.subr.bf16.mxu0 0
      %2127 = vmatpush1.bf16.msra.mxu0 0
      %2128 = vmatprep.subr.bf16.mxu0 0
      %2129 = vmatpush1.bf16.msra.mxu0 0
      %2130 = vmatprep.subr.bf16.mxu0 0
      %2131 = vmatpush1.bf16.msra.mxu0 0
      %2132 = vmatprep.subr.bf16.mxu0 0
      %2133 = vmatpush1.bf16.msra.mxu0 0
      %2134 = vmatprep.subr.bf16.mxu0 0
      %2135 = vmatpush1.bf16.msra.mxu0 0
      %2136 = vmatprep.subr.bf16.mxu0 0
      %2137 = vmatpush1.bf16.msra.mxu0 0
      %2138 = vmatprep.subr.bf16.mxu0 0
      %2139 = vmatpush1.bf16.msra.mxu0 %v2113
      %2140 = vmatprep.subr.bf16.mxu0 0
      %2141 = vmatpush2.bf16.msra.mxu0 0
      %2142 = vmatprep.subr.bf16.mxu0 0
      %2143 = vmatpush2.bf16.msra.mxu0 0
      %2144 = vmatprep.subr.bf16.mxu0 0
      %2145 = vmatpush2.bf16.msra.mxu0 0
      %2146 = vmatprep.subr.bf16.mxu0 0
      %2147 = vmatpush2.bf16.msra.mxu0 0
      %2148 = vmatprep.subr.bf16.mxu0 0
      %2149 = vmatpush2.bf16.msra.mxu0 0
      %2150 = vmatprep.subr.bf16.mxu0 0
      %2151 = vmatpush2.bf16.msra.mxu0 0
      %2152 = vmatprep.subr.bf16.mxu0 0
      %2153 = vmatpush2.bf16.msra.mxu0 0
      %2154 = vmatprep.subr.bf16.mxu0 0
      %2155 = vmatpush2.bf16.msra.mxu0 0
      %2156 = vmatprep.mubr.bf16.mxu0 0
      %2157 = vmatmul.mubr.bf16.gmra.mxu0 %v2119
      %v2158 = vpop.f32.mrf.mxu0
      %v2159 = vadd.f32 %v2117, %v2158
      %v2160 = vpop.f32.mrf.mxu0
      %v2161 = vpop.f32.mrf.mxu0
      %v2162 = vadd.f32 %v2117, %v2161
      %v2163 = vpop.f32.mrf.mxu0
      %2164 = vmatprep.mubr.bf16.mxu0 0
      %2165 = vmatmul.mubr.bf16.gmra.mxu0 %v2122
      %v2166 = vpop.f32.mrf.mxu0
      %v2167 = vadd.f32 %v2117, %v2166
      %v2168 = vpop.f32.mrf.mxu0
      %v2169 = vpop.f32.mrf.mxu0
      %v2170 = vadd.f32 %v2117, %v2169
      %v2171 = vpop.f32.mrf.mxu0
      %2172 = vdwg.mxu0
      %s2173 = scalar_lea.vmem %s12, 16
      %v2174 = vld [vmem:[%s2173] sm:$0xff]
      %v2175 = vld [vmem:[%s2173 + $0x8] sm:$0xff]
      %v2176 = vpack.c.bf16 %v2175, %v2174
      %v2177 = vlaneseq
      %v2178 = vshrl.u32 %v2177, 7
      %v2179 = vsub.s32 1, %v2178
      %v2180 = vrot.slane %v2108, %v2179
      %2181 = vmatprep.subr.bf16.mxu0 0
      %2182 = vmatpush1.bf16.msra.mxu0 0
      %2183 = vmatprep.subr.bf16.mxu0 0
      %2184 = vmatpush1.bf16.msra.mxu0 0
      %2185 = vmatprep.subr.bf16.mxu0 0
      %2186 = vmatpush1.bf16.msra.mxu0 0
      %2187 = vmatprep.subr.bf16.mxu0 0
      %2188 = vmatpush1.bf16.msra.mxu0 0
      %2189 = vmatprep.subr.bf16.mxu0 0
      %2190 = vmatpush1.bf16.msra.mxu0 0
      %2191 = vmatprep.subr.bf16.mxu0 0
      %2192 = vmatpush1.bf16.msra.mxu0 0
      %2193 = vmatprep.subr.bf16.mxu0 0
      %2194 = vmatpush1.bf16.msra.mxu0 0
      %2195 = vmatprep.subr.bf16.mxu0 0
      %2196 = vmatpush1.bf16.msra.mxu0 %v2176
      %2197 = vmatprep.subr.bf16.mxu0 0
      %2198 = vmatpush2.bf16.msra.mxu0 0
      %2199 = vmatprep.subr.bf16.mxu0 0
      %2200 = vmatpush2.bf16.msra.mxu0 0
      %2201 = vmatprep.subr.bf16.mxu0 0
      %2202 = vmatpush2.bf16.msra.mxu0 0
      %2203 = vmatprep.subr.bf16.mxu0 0
      %2204 = vmatpush2.bf16.msra.mxu0 0
      %2205 = vmatprep.subr.bf16.mxu0 0
      %2206 = vmatpush2.bf16.msra.mxu0 0
      %2207 = vmatprep.subr.bf16.mxu0 0
      %2208 = vmatpush2.bf16.msra.mxu0 0
      %2209 = vmatprep.subr.bf16.mxu0 0
      %2210 = vmatpush2.bf16.msra.mxu0 0
      %2211 = vmatprep.subr.bf16.mxu0 0
      %2212 = vmatpush2.bf16.msra.mxu0 0
      %2213 = vmatprep.mubr.bf16.mxu0 0
      %2214 = vmatmul.mubr.bf16.gmra.mxu0 %v2119
      %v2215 = vpop.f32.mrf.mxu0
      %v2216 = vadd.f32 %v2180, %v2215
      %v2217 = vpop.f32.mrf.mxu0
      %v2218 = vpop.f32.mrf.mxu0
      %v2219 = vadd.f32 %v2180, %v2218
      %v2220 = vpop.f32.mrf.mxu0
      %2221 = vmatprep.mubr.bf16.mxu0 0
      %2222 = vmatmul.mubr.bf16.gmra.mxu0 %v2122
      %v2223 = vpop.f32.mrf.mxu0
      %v2224 = vadd.f32 %v2180, %v2223
      %v2225 = vpop.f32.mrf.mxu0
      %v2226 = vpop.f32.mrf.mxu0
      %v2227 = vadd.f32 %v2180, %v2226
      %v2228 = vpop.f32.mrf.mxu0
      %2229 = vdwg.mxu0
      %s2230 = scalar_lea.vmem %s12, 32
      %v2231 = vld [vmem:[%s2230] sm:$0xff]
      %v2232 = vld [vmem:[%s2230 + $0x8] sm:$0xff]
      %v2233 = vpack.c.bf16 %v2232, %v2231
      %v2234 = vlaneseq
      %v2235 = vshrl.u32 %v2234, 7
      %v2236 = vsub.s32 2, %v2235
      %v2237 = vrot.slane %v2108, %v2236
      %2238 = vmatprep.subr.bf16.mxu0 0
      %2239 = vmatpush1.bf16.msra.mxu0 0
      %2240 = vmatprep.subr.bf16.mxu0 0
      %2241 = vmatpush1.bf16.msra.mxu0 0
      %2242 = vmatprep.subr.bf16.mxu0 0
      %2243 = vmatpush1.bf16.msra.mxu0 0
      %2244 = vmatprep.subr.bf16.mxu0 0
      %2245 = vmatpush1.bf16.msra.mxu0 0
      %2246 = vmatprep.subr.bf16.mxu0 0
      %2247 = vmatpush1.bf16.msra.mxu0 0
      %2248 = vmatprep.subr.bf16.mxu0 0
      %2249 = vmatpush1.bf16.msra.mxu0 0
      %2250 = vmatprep.subr.bf16.mxu0 0
      %2251 = vmatpush1.bf16.msra.mxu0 0
      %2252 = vmatprep.subr.bf16.mxu0 0
      %2253 = vmatpush1.bf16.msra.mxu0 %v2233
      %2254 = vmatprep.subr.bf16.mxu0 0
      %2255 = vmatpush2.bf16.msra.mxu0 0
      %2256 = vmatprep.subr.bf16.mxu0 0
      %2257 = vmatpush2.bf16.msra.mxu0 0
      %2258 = vmatprep.subr.bf16.mxu0 0
      %2259 = vmatpush2.bf16.msra.mxu0 0
      %2260 = vmatprep.subr.bf16.mxu0 0
      %2261 = vmatpush2.bf16.msra.mxu0 0
      %2262 = vmatprep.subr.bf16.mxu0 0
      %2263 = vmatpush2.bf16.msra.mxu0 0
      %2264 = vmatprep.subr.bf16.mxu0 0
      %2265 = vmatpush2.bf16.msra.mxu0 0
      %2266 = vmatprep.subr.bf16.mxu0 0
      %2267 = vmatpush2.bf16.msra.mxu0 0
      %2268 = vmatprep.subr.bf16.mxu0 0
      %2269 = vmatpush2.bf16.msra.mxu0 0
      %2270 = vmatprep.mubr.bf16.mxu0 0
      %2271 = vmatmul.mubr.bf16.gmra.mxu0 %v2119
      %v2272 = vpop.f32.mrf.mxu0
      %v2273 = vadd.f32 %v2237, %v2272
      %v2274 = vpop.f32.mrf.mxu0
      %v2275 = vpop.f32.mrf.mxu0
      %v2276 = vadd.f32 %v2237, %v2275
      %v2277 = vpop.f32.mrf.mxu0
      %2278 = vmatprep.mubr.bf16.mxu0 0
      %2279 = vmatmul.mubr.bf16.gmra.mxu0 %v2122
      %v2280 = vpop.f32.mrf.mxu0
      %v2281 = vadd.f32 %v2237, %v2280
      %v2282 = vpop.f32.mrf.mxu0
      %v2283 = vpop.f32.mrf.mxu0
      %v2284 = vadd.f32 %v2237, %v2283
      %v2285 = vpop.f32.mrf.mxu0
      %2286 = vdwg.mxu0
      %v2287 = vmul.f32 %v2159, %v969
      %v2288 = vmul.f32 %v2162, %v970
      %v2289 = vmul.f32 %v2167, %v971
      %v2290 = vmul.f32 %v2170, %v972
      %v2291 = vmul.f32 %v2159, %v973
      %v2292 = vmul.f32 %v2162, %v974
      %v2293 = vmul.f32 %v2167, %v975
      %v2294 = vmul.f32 %v2170, %v976
      %v2295 = vmul.f32 %v2159, %v977
      %v2296 = vmul.f32 %v2162, %v978
      %v2297 = vmul.f32 %v2167, %v979
      %v2298 = vmul.f32 %v2170, %v980
      %v2299 = vmul.f32 %v2159, %v981
      %v2300 = vmul.f32 %v2162, %v982
      %v2301 = vmul.f32 %v2167, %v983
      %v2302 = vmul.f32 %v2170, %v984
      %v2303 = vpack.c.bf16 %v2288, %v2287
      %v2304 = vpack.c.bf16 %v2290, %v2289
      %v2305 = vpack.c.bf16 %v2292, %v2291
      %v2306 = vpack.c.bf16 %v2294, %v2293
      %v2307 = vpack.c.bf16 %v2296, %v2295
      %v2308 = vpack.c.bf16 %v2298, %v2297
      %v2309 = vpack.c.bf16 %v2300, %v2299
      %v2310 = vpack.c.bf16 %v2302, %v2301
      %v2311 = vpack.c.bf16 %v2219, %v2216
      %v2312 = vpack.c.bf16 %v2227, %v2224
      %v2314 = vsel %vm880, %v2303, 0
      %v2317 = vsel %vm880, %v2304, 0
      %v2320 = vsel %vm880, %v2305, 0
      %v2323 = vsel %vm880, %v2306, 0
      %v2326 = vsel %vm880, %v2307, 0
      %v2329 = vsel %vm880, %v2308, 0
      %v2332 = vsel %vm880, %v2309, 0
      %v2335 = vsel %vm880, %v2310, 0
      %v2338 = vsel %vm880, %v2311, 0
      %v2341 = vsel %vm880, %v2312, 0
      %2343 = vmatprep.subr.bf16.mxu0 0
      %2344 = vmatpush1.bf16.xpose.msra.mxu0 0
      %2345 = vmatprep.subr.bf16.mxu0 0
      %2346 = vmatpush1.bf16.xpose.msra.mxu0 0
      %2347 = vmatprep.subr.bf16.mxu0 0
      %2348 = vmatpush1.bf16.xpose.msra.mxu0 0
      %2349 = vmatprep.subr.bf16.mxu0 0
      %2350 = vmatpush1.bf16.xpose.msra.mxu0 0
      %2351 = vmatprep.subr.bf16.mxu0 0
      %2352 = vmatpush1.bf16.xpose.msra.mxu0 0
      %2353 = vmatprep.subr.bf16.mxu0 0
      %2354 = vmatpush1.bf16.xpose.msra.mxu0 0
      %2355 = vmatprep.subr.bf16.mxu0 0
      %2356 = vmatpush1.bf16.xpose.msra.mxu0 %v2341
      %2357 = vmatprep.subr.bf16.mxu0 0
      %2358 = vmatpush1.bf16.xpose.msra.mxu0 %v2338
      %2359 = vmatprep.subr.bf16.mxu0 0
      %2360 = vmatpush2.bf16.xpose.msra.mxu0 0
      %2361 = vmatprep.subr.bf16.mxu0 0
      %2362 = vmatpush2.bf16.xpose.msra.mxu0 0
      %2363 = vmatprep.subr.bf16.mxu0 0
      %2364 = vmatpush2.bf16.xpose.msra.mxu0 0
      %2365 = vmatprep.subr.bf16.mxu0 0
      %2366 = vmatpush2.bf16.xpose.msra.mxu0 0
      %2367 = vmatprep.subr.bf16.mxu0 0
      %2368 = vmatpush2.bf16.xpose.msra.mxu0 0
      %2369 = vmatprep.subr.bf16.mxu0 0
      %2370 = vmatpush2.bf16.xpose.msra.mxu0 0
      %2371 = vmatprep.subr.bf16.mxu0 0
      %2372 = vmatpush2.bf16.xpose.msra.mxu0 0
      %2373 = vmatprep.subr.bf16.mxu0 0
      %2374 = vmatpush2.bf16.xpose.msra.mxu0 0
      %2375 = vmatprep.mubr.bf16.mxu0 0
      %2376 = vmatmul.mubr.bf16.gmra.mxu0 %v2314
      %v2377 = vpop.f32.mrf.mxu0
      %v2378 = vadd.f32 0.0, %v2377
      %v2379 = vpop.f32.mrf.mxu0
      %v2380 = vpop.f32.mrf.mxu0
      %v2381 = vadd.f32 0.0, %v2380
      %v2382 = vpop.f32.mrf.mxu0
      %2383 = vmatprep.mubr.bf16.mxu0 0
      %2384 = vmatmul.mubr.bf16.gmra.mxu0 %v2317
      %v2385 = vpop.f32.mrf.mxu0
      %v2386 = vadd.f32 0.0, %v2385
      %v2387 = vpop.f32.mrf.mxu0
      %v2388 = vpop.f32.mrf.mxu0
      %v2389 = vadd.f32 0.0, %v2388
      %v2390 = vpop.f32.mrf.mxu0
      %2391 = vmatprep.mubr.bf16.mxu0 0
      %2392 = vmatmul.mubr.bf16.gmra.mxu0 %v2320
      %v2393 = vpop.f32.mrf.mxu0
      %v2394 = vadd.f32 0.0, %v2393
      %v2395 = vpop.f32.mrf.mxu0
      %v2396 = vpop.f32.mrf.mxu0
      %v2397 = vadd.f32 0.0, %v2396
      %v2398 = vpop.f32.mrf.mxu0
      %2399 = vmatprep.mubr.bf16.mxu0 0
      %2400 = vmatmul.mubr.bf16.gmra.mxu0 %v2323
      %v2401 = vpop.f32.mrf.mxu0
      %v2402 = vadd.f32 0.0, %v2401
      %v2403 = vpop.f32.mrf.mxu0
      %v2404 = vpop.f32.mrf.mxu0
      %v2405 = vadd.f32 0.0, %v2404
      %v2406 = vpop.f32.mrf.mxu0
      %2407 = vmatprep.mubr.bf16.mxu0 0
      %2408 = vmatmul.mubr.bf16.gmra.mxu0 %v2326
      %v2409 = vpop.f32.mrf.mxu0
      %v2410 = vadd.f32 0.0, %v2409
      %v2411 = vpop.f32.mrf.mxu0
      %v2412 = vpop.f32.mrf.mxu0
      %v2413 = vadd.f32 0.0, %v2412
      %v2414 = vpop.f32.mrf.mxu0
      %2415 = vmatprep.mubr.bf16.mxu0 0
      %2416 = vmatmul.mubr.bf16.gmra.mxu0 %v2329
      %v2417 = vpop.f32.mrf.mxu0
      %v2418 = vadd.f32 0.0, %v2417
      %v2419 = vpop.f32.mrf.mxu0
      %v2420 = vpop.f32.mrf.mxu0
      %v2421 = vadd.f32 0.0, %v2420
      %v2422 = vpop.f32.mrf.mxu0
      %2423 = vmatprep.mubr.bf16.mxu0 0
      %2424 = vmatmul.mubr.bf16.gmra.mxu0 %v2332
      %v2425 = vpop.f32.mrf.mxu0
      %v2426 = vadd.f32 0.0, %v2425
      %v2427 = vpop.f32.mrf.mxu0
      %v2428 = vpop.f32.mrf.mxu0
      %v2429 = vadd.f32 0.0, %v2428
      %v2430 = vpop.f32.mrf.mxu0
      %2431 = vmatprep.mubr.bf16.mxu0 0
      %2432 = vmatmul.mubr.bf16.gmra.mxu0 %v2335
      %v2433 = vpop.f32.mrf.mxu0
      %v2434 = vadd.f32 0.0, %v2433
      %v2435 = vpop.f32.mrf.mxu0
      %v2436 = vpop.f32.mrf.mxu0
      %v2437 = vadd.f32 0.0, %v2436
      %v2438 = vpop.f32.mrf.mxu0
      %2439 = vdwg.mxu0
      %v2440 = vmul.f32 %v2378, 0.5
      %v2441 = vmul.f32 %v2381, 0.5
      %v2442 = vmul.f32 %v2386, 0.5
      %v2443 = vmul.f32 %v2389, 0.5
      %v2444 = vmul.f32 %v2394, 0.5
      %v2445 = vmul.f32 %v2397, 0.5
      %v2446 = vmul.f32 %v2402, 0.5
      %v2447 = vmul.f32 %v2405, 0.5
      %v2448 = vmul.f32 %v2410, 0.5
      %v2449 = vmul.f32 %v2413, 0.5
      %v2450 = vmul.f32 %v2418, 0.5
      %v2451 = vmul.f32 %v2421, 0.5
      %v2452 = vmul.f32 %v2426, 0.5
      %v2453 = vmul.f32 %v2429, 0.5
      %v2454 = vmul.f32 %v2434, 0.5
      %v2455 = vmul.f32 %v2437, 0.5
      %v2456 = vadd.f32 %v2440, %v2092
      %v2457 = vadd.f32 %v2441, %v2093
      %v2458 = vadd.f32 %v2442, %v2094
      %v2459 = vadd.f32 %v2443, %v2095
      %v2460 = vadd.f32 %v2444, %v2096
      %v2461 = vadd.f32 %v2445, %v2097
      %v2462 = vadd.f32 %v2446, %v2098
      %v2463 = vadd.f32 %v2447, %v2099
      %v2464 = vadd.f32 %v2448, %v2100
      %v2465 = vadd.f32 %v2449, %v2101
      %v2466 = vadd.f32 %v2450, %v2102
      %v2467 = vadd.f32 %v2451, %v2103
      %v2468 = vadd.f32 %v2452, %v2104
      %v2469 = vadd.f32 %v2453, %v2105
      %v2470 = vadd.f32 %v2454, %v2106
      %v2471 = vadd.f32 %v2455, %v2107
      %v2472 = vsel %vm1365, %v2456, -inf
      %2473 = vmax.xlane.f32.xlu0 %v2472
      %v2474 = vpop.xlane.xlu0 %2473
      %v2475 = vsel %vm1365, %v2457, -inf
      %2476 = vmax.xlane.f32.xlu0 %v2475
      %v2477 = vpop.xlane.xlu0 %2476
      %v2478 = vsel %vm1365, %v2458, -inf
      %2479 = vmax.xlane.f32.xlu0 %v2478
      %v2480 = vpop.xlane.xlu0 %2479
      %v2481 = vsel %vm1365, %v2459, -inf
      %2482 = vmax.xlane.f32.xlu0 %v2481
      %v2483 = vpop.xlane.xlu0 %2482
      %v2484 = vsel %vm1365, %v2460, -inf
      %2485 = vmax.xlane.f32.xlu0 %v2484
      %v2486 = vpop.xlane.xlu0 %2485
      %v2487 = vsel %vm1365, %v2461, -inf
      %2488 = vmax.xlane.f32.xlu0 %v2487
      %v2489 = vpop.xlane.xlu0 %2488
      %v2490 = vsel %vm1365, %v2462, -inf
      %2491 = vmax.xlane.f32.xlu0 %v2490
      %v2492 = vpop.xlane.xlu0 %2491
      %v2493 = vsel %vm1365, %v2463, -inf
      %2494 = vmax.xlane.f32.xlu0 %v2493
      %v2495 = vpop.xlane.xlu0 %2494
      %v2496 = vsel %vm1365, %v2464, -inf
      %2497 = vmax.xlane.f32.xlu0 %v2496
      %v2498 = vpop.xlane.xlu0 %2497
      %v2499 = vsel %vm1365, %v2465, -inf
      %2500 = vmax.xlane.f32.xlu0 %v2499
      %v2501 = vpop.xlane.xlu0 %2500
      %v2502 = vsel %vm1365, %v2466, -inf
      %2503 = vmax.xlane.f32.xlu0 %v2502
      %v2504 = vpop.xlane.xlu0 %2503
      %v2505 = vsel %vm1365, %v2467, -inf
      %2506 = vmax.xlane.f32.xlu0 %v2505
      %v2507 = vpop.xlane.xlu0 %2506
      %v2508 = vsel %vm1365, %v2468, -inf
      %2509 = vmax.xlane.f32.xlu0 %v2508
      %v2510 = vpop.xlane.xlu0 %2509
      %v2511 = vsel %vm1365, %v2469, -inf
      %2512 = vmax.xlane.f32.xlu0 %v2511
      %v2513 = vpop.xlane.xlu0 %2512
      %v2514 = vsel %vm1365, %v2470, -inf
      %2515 = vmax.xlane.f32.xlu0 %v2514
      %v2516 = vpop.xlane.xlu0 %2515
      %v2517 = vsel %vm1365, %v2471, -inf
      %2518 = vmax.xlane.f32.xlu0 %v2517
      %v2519 = vpop.xlane.xlu0 %2518
      %v2520 = vsub.f32 %v2456, %v2474
      %v2521 = vsub.f32 %v2457, %v2477
      %v2522 = vsub.f32 %v2458, %v2480
      %v2523 = vsub.f32 %v2459, %v2483
      %v2524 = vsub.f32 %v2460, %v2486
      %v2525 = vsub.f32 %v2461, %v2489
      %v2526 = vsub.f32 %v2462, %v2492
      %v2527 = vsub.f32 %v2463, %v2495
      %v2528 = vsub.f32 %v2464, %v2498
      %v2529 = vsub.f32 %v2465, %v2501
      %v2530 = vsub.f32 %v2466, %v2504
      %v2531 = vsub.f32 %v2467, %v2507
      %v2532 = vsub.f32 %v2468, %v2510
      %v2533 = vsub.f32 %v2469, %v2513
      %v2534 = vsub.f32 %v2470, %v2516
      %v2535 = vsub.f32 %v2471, %v2519
      %v2536 = vmul.f32 %v2520, 1.442695
      %v2537 = vpow.pop %v2536
      %v2538 = vmul.f32 %v2521, 1.442695
      %v2539 = vpow.pop %v2538
      %v2540 = vmul.f32 %v2522, 1.442695
      %v2541 = vpow.pop %v2540
      %v2542 = vmul.f32 %v2523, 1.442695
      %v2543 = vpow.pop %v2542
      %v2544 = vmul.f32 %v2524, 1.442695
      %v2545 = vpow.pop %v2544
      %v2546 = vmul.f32 %v2525, 1.442695
      %v2547 = vpow.pop %v2546
      %v2548 = vmul.f32 %v2526, 1.442695
      %v2549 = vpow.pop %v2548
      %v2550 = vmul.f32 %v2527, 1.442695
      %v2551 = vpow.pop %v2550
      %v2552 = vmul.f32 %v2528, 1.442695
      %v2553 = vpow.pop %v2552
      %v2554 = vmul.f32 %v2529, 1.442695
      %v2555 = vpow.pop %v2554
      %v2556 = vmul.f32 %v2530, 1.442695
      %v2557 = vpow.pop %v2556
      %v2558 = vmul.f32 %v2531, 1.442695
      %v2559 = vpow.pop %v2558
      %v2560 = vmul.f32 %v2532, 1.442695
      %v2561 = vpow.pop %v2560
      %v2562 = vmul.f32 %v2533, 1.442695
      %v2563 = vpow.pop %v2562
      %v2564 = vmul.f32 %v2534, 1.442695
      %v2565 = vpow.pop %v2564
      %v2566 = vmul.f32 %v2535, 1.442695
      %v2567 = vpow.pop %v2566
      %v2568 = vsel %vm1365, %v2537, 0.0
      %2569 = vadd.xlane.f32.xlu0 %v2568
      %v2570 = vpop.xlane.xlu0 %2569
      %v2571 = vsel %vm1365, %v2539, 0.0
      %2572 = vadd.xlane.f32.xlu0 %v2571
      %v2573 = vpop.xlane.xlu0 %2572
      %v2574 = vsel %vm1365, %v2541, 0.0
      %2575 = vadd.xlane.f32.xlu0 %v2574
      %v2576 = vpop.xlane.xlu0 %2575
      %v2577 = vsel %vm1365, %v2543, 0.0
      %2578 = vadd.xlane.f32.xlu0 %v2577
      %v2579 = vpop.xlane.xlu0 %2578
      %v2580 = vsel %vm1365, %v2545, 0.0
      %2581 = vadd.xlane.f32.xlu0 %v2580
      %v2582 = vpop.xlane.xlu0 %2581
      %v2583 = vsel %vm1365, %v2547, 0.0
      %2584 = vadd.xlane.f32.xlu0 %v2583
      %v2585 = vpop.xlane.xlu0 %2584
      %v2586 = vsel %vm1365, %v2549, 0.0
      %2587 = vadd.xlane.f32.xlu0 %v2586
      %v2588 = vpop.xlane.xlu0 %2587
      %v2589 = vsel %vm1365, %v2551, 0.0
      %2590 = vadd.xlane.f32.xlu0 %v2589
      %v2591 = vpop.xlane.xlu0 %2590
      %v2592 = vsel %vm1365, %v2553, 0.0
      %2593 = vadd.xlane.f32.xlu0 %v2592
      %v2594 = vpop.xlane.xlu0 %2593
      %v2595 = vsel %vm1365, %v2555, 0.0
      %2596 = vadd.xlane.f32.xlu0 %v2595
      %v2597 = vpop.xlane.xlu0 %2596
      %v2598 = vsel %vm1365, %v2557, 0.0
      %2599 = vadd.xlane.f32.xlu0 %v2598
      %v2600 = vpop.xlane.xlu0 %2599
      %v2601 = vsel %vm1365, %v2559, 0.0
      %2602 = vadd.xlane.f32.xlu0 %v2601
      %v2603 = vpop.xlane.xlu0 %2602
      %v2604 = vsel %vm1365, %v2561, 0.0
      %2605 = vadd.xlane.f32.xlu0 %v2604
      %v2606 = vpop.xlane.xlu0 %2605
      %v2607 = vsel %vm1365, %v2563, 0.0
      %2608 = vadd.xlane.f32.xlu0 %v2607
      %v2609 = vpop.xlane.xlu0 %2608
      %v2610 = vsel %vm1365, %v2565, 0.0
      %2611 = vadd.xlane.f32.xlu0 %v2610
      %v2612 = vpop.xlane.xlu0 %2611
      %v2613 = vsel %vm1365, %v2567, 0.0
      %2614 = vadd.xlane.f32.xlu0 %v2613
      %v2615 = vpop.xlane.xlu0 %2614
      %v2616 = vrcp.pop %v2570
      %v2617 = vmul.f32 %v2537, %v2616
      %v2618 = vrcp.pop %v2573
      %v2619 = vmul.f32 %v2539, %v2618
      %v2620 = vrcp.pop %v2576
      %v2621 = vmul.f32 %v2541, %v2620
      %v2622 = vrcp.pop %v2579
      %v2623 = vmul.f32 %v2543, %v2622
      %v2624 = vrcp.pop %v2582
      %v2625 = vmul.f32 %v2545, %v2624
      %v2626 = vrcp.pop %v2585
      %v2627 = vmul.f32 %v2547, %v2626
      %v2628 = vrcp.pop %v2588
      %v2629 = vmul.f32 %v2549, %v2628
      %v2630 = vrcp.pop %v2591
      %v2631 = vmul.f32 %v2551, %v2630
      %v2632 = vrcp.pop %v2594
      %v2633 = vmul.f32 %v2553, %v2632
      %v2634 = vrcp.pop %v2597
      %v2635 = vmul.f32 %v2555, %v2634
      %v2636 = vrcp.pop %v2600
      %v2637 = vmul.f32 %v2557, %v2636
      %v2638 = vrcp.pop %v2603
      %v2639 = vmul.f32 %v2559, %v2638
      %v2640 = vrcp.pop %v2606
      %v2641 = vmul.f32 %v2561, %v2640
      %v2642 = vrcp.pop %v2609
      %v2643 = vmul.f32 %v2563, %v2642
      %v2644 = vrcp.pop %v2612
      %v2645 = vmul.f32 %v2565, %v2644
      %v2646 = vrcp.pop %v2615
      %v2647 = vmul.f32 %v2567, %v2646
      %v2648 = vpack.c.bf16 %v2619, %v2617
      %v2649 = vpack.c.bf16 %v2623, %v2621
      %v2650 = vpack.c.bf16 %v2627, %v2625
      %v2651 = vpack.c.bf16 %v2631, %v2629
      %v2652 = vpack.c.bf16 %v2635, %v2633
      %v2653 = vpack.c.bf16 %v2639, %v2637
      %v2654 = vpack.c.bf16 %v2643, %v2641
      %v2655 = vpack.c.bf16 %v2647, %v2645
      %v2656 = vpack.c.bf16 %v2276, %v2273
      %v2657 = vpack.c.bf16 %v2284, %v2281
      %v2659 = vsel %vm1365, %v2648, 0
      %v2662 = vsel %vm1365, %v2649, 0
      %v2665 = vsel %vm1365, %v2650, 0
      %v2668 = vsel %vm1365, %v2651, 0
      %v2671 = vsel %vm1365, %v2652, 0
      %v2674 = vsel %vm1365, %v2653, 0
      %v2677 = vsel %vm1365, %v2654, 0
      %v2680 = vsel %vm1365, %v2655, 0
      %2682 = vmatprep.subr.bf16.mxu0 0
      %2683 = vmatpush1.bf16.msra.mxu0 0
      %2684 = vmatprep.subr.bf16.mxu0 0
      %2685 = vmatpush1.bf16.msra.mxu0 0
      %2686 = vmatprep.subr.bf16.mxu0 0
      %2687 = vmatpush1.bf16.msra.mxu0 0
      %2688 = vmatprep.subr.bf16.mxu0 0
      %2689 = vmatpush1.bf16.msra.mxu0 0
      %2690 = vmatprep.subr.bf16.mxu0 0
      %2691 = vmatpush1.bf16.msra.mxu0 0
      %2692 = vmatprep.subr.bf16.mxu0 0
      %2693 = vmatpush1.bf16.msra.mxu0 0
      %2694 = vmatprep.subr.bf16.mxu0 0
      %2695 = vmatpush1.bf16.msra.mxu0 %v2657
      %2696 = vmatprep.subr.bf16.mxu0 0
      %2697 = vmatpush1.bf16.msra.mxu0 %v2656
      %2698 = vmatprep.subr.bf16.mxu0 0
      %2699 = vmatpush2.bf16.msra.mxu0 0
      %2700 = vmatprep.subr.bf16.mxu0 0
      %2701 = vmatpush2.bf16.msra.mxu0 0
      %2702 = vmatprep.subr.bf16.mxu0 0
      %2703 = vmatpush2.bf16.msra.mxu0 0
      %2704 = vmatprep.subr.bf16.mxu0 0
      %2705 = vmatpush2.bf16.msra.mxu0 0
      %2706 = vmatprep.subr.bf16.mxu0 0
      %2707 = vmatpush2.bf16.msra.mxu0 0
      %2708 = vmatprep.subr.bf16.mxu0 0
      %2709 = vmatpush2.bf16.msra.mxu0 0
      %2710 = vmatprep.subr.bf16.mxu0 0
      %2711 = vmatpush2.bf16.msra.mxu0 0
      %2712 = vmatprep.subr.bf16.mxu0 0
      %2713 = vmatpush2.bf16.msra.mxu0 0
      %2714 = vmatprep.mubr.bf16.mxu0 0
      %2715 = vmatmul.mubr.bf16.gmra.mxu0 %v2659
      %v2716 = vpop.f32.mrf.mxu0
      %v2717 = vadd.f32 0.0, %v2716
      %v2718 = vpop.f32.mrf.mxu0
      %v2719 = vpop.f32.mrf.mxu0
      %v2720 = vadd.f32 0.0, %v2719
      %v2721 = vpop.f32.mrf.mxu0
      %2722 = vmatprep.mubr.bf16.mxu0 0
      %2723 = vmatmul.mubr.bf16.gmra.mxu0 %v2662
      %v2724 = vpop.f32.mrf.mxu0
      %v2725 = vadd.f32 0.0, %v2724
      %v2726 = vpop.f32.mrf.mxu0
      %v2727 = vpop.f32.mrf.mxu0
      %v2728 = vadd.f32 0.0, %v2727
      %v2729 = vpop.f32.mrf.mxu0
      %2730 = vmatprep.mubr.bf16.mxu0 0
      %2731 = vmatmul.mubr.bf16.gmra.mxu0 %v2665
      %v2732 = vpop.f32.mrf.mxu0
      %v2733 = vadd.f32 0.0, %v2732
      %v2734 = vpop.f32.mrf.mxu0
      %v2735 = vpop.f32.mrf.mxu0
      %v2736 = vadd.f32 0.0, %v2735
      %v2737 = vpop.f32.mrf.mxu0
      %2738 = vmatprep.mubr.bf16.mxu0 0
      %2739 = vmatmul.mubr.bf16.gmra.mxu0 %v2668
      %v2740 = vpop.f32.mrf.mxu0
      %v2741 = vadd.f32 0.0, %v2740
      %v2742 = vpop.f32.mrf.mxu0
      %v2743 = vpop.f32.mrf.mxu0
      %v2744 = vadd.f32 0.0, %v2743
      %v2745 = vpop.f32.mrf.mxu0
      %2746 = vmatprep.mubr.bf16.mxu0 0
      %2747 = vmatmul.mubr.bf16.gmra.mxu0 %v2671
      %v2748 = vpop.f32.mrf.mxu0
      %v2749 = vadd.f32 0.0, %v2748
      %v2750 = vpop.f32.mrf.mxu0
      %v2751 = vpop.f32.mrf.mxu0
      %v2752 = vadd.f32 0.0, %v2751
      %v2753 = vpop.f32.mrf.mxu0
      %2754 = vmatprep.mubr.bf16.mxu0 0
      %2755 = vmatmul.mubr.bf16.gmra.mxu0 %v2674
      %v2756 = vpop.f32.mrf.mxu0
      %v2757 = vadd.f32 0.0, %v2756
      %v2758 = vpop.f32.mrf.mxu0
      %v2759 = vpop.f32.mrf.mxu0
      %v2760 = vadd.f32 0.0, %v2759
      %v2761 = vpop.f32.mrf.mxu0
      %2762 = vmatprep.mubr.bf16.mxu0 0
      %2763 = vmatmul.mubr.bf16.gmra.mxu0 %v2677
      %v2764 = vpop.f32.mrf.mxu0
      %v2765 = vadd.f32 0.0, %v2764
      %v2766 = vpop.f32.mrf.mxu0
      %v2767 = vpop.f32.mrf.mxu0
      %v2768 = vadd.f32 0.0, %v2767
      %v2769 = vpop.f32.mrf.mxu0
      %2770 = vmatprep.mubr.bf16.mxu0 0
      %2771 = vmatmul.mubr.bf16.gmra.mxu0 %v2680
      %v2772 = vpop.f32.mrf.mxu0
      %v2773 = vadd.f32 0.0, %v2772
      %v2774 = vpop.f32.mrf.mxu0
      %v2775 = vpop.f32.mrf.mxu0
      %v2776 = vadd.f32 0.0, %v2775
      %v2777 = vpop.f32.mrf.mxu0
      %2778 = vdwg.mxu0
      %v2779 = vmul.f32 %v2717, %v969
      %v2780 = vmul.f32 %v2720, %v970
      %v2781 = vmul.f32 %v2725, %v971
      %v2782 = vmul.f32 %v2728, %v972
      %v2783 = vmul.f32 %v2733, %v973
      %v2784 = vmul.f32 %v2736, %v974
      %v2785 = vmul.f32 %v2741, %v975
      %v2786 = vmul.f32 %v2744, %v976
      %v2787 = vmul.f32 %v2749, %v977
      %v2788 = vmul.f32 %v2752, %v978
      %v2789 = vmul.f32 %v2757, %v979
      %v2790 = vmul.f32 %v2760, %v980
      %v2791 = vmul.f32 %v2765, %v981
      %v2792 = vmul.f32 %v2768, %v982
      %v2793 = vmul.f32 %v2773, %v983
      %v2794 = vmul.f32 %v2776, %v984
      %v2795 = vadd.f32 %v2779, %v2783
      %v2796 = vadd.f32 %v2780, %v2784
      %v2797 = vadd.f32 %v2781, %v2785
      %v2798 = vadd.f32 %v2782, %v2786
      %v2799 = vadd.f32 %v2795, %v2787
      %v2800 = vadd.f32 %v2796, %v2788
      %v2801 = vadd.f32 %v2797, %v2789
      %v2802 = vadd.f32 %v2798, %v2790
      %v2803 = vadd.f32 %v2799, %v2791
      %v2804 = vadd.f32 %v2800, %v2792
      %v2805 = vadd.f32 %v2801, %v2793
      %v2806 = vadd.f32 %v2802, %v2794
      %s2807 = scalar_lea.vmem %s12, 48
      %v2808 = vld [vmem:[%s2807] sm:$0xff]
      %v2809 = vld [vmem:[%s2807 + $0x8] sm:$0xff]
      %v2810 = vpack.c.bf16 %v2804, %v2803
      %v2811 = vpack.c.bf16 %v2806, %v2805
      %v2812 = vpack.c.bf16 %v2809, %v2808
      %v2813 = vlaneseq
      %v2814 = vshrl.u32 %v2813, 7
      %v2815 = vsub.s32 3, %v2814
      %v2816 = vrot.slane %v2108, %v2815
      %v2818 = vsel %vm880, %v2810, 0
      %v2821 = vsel %vm880, %v2811, 0
      %2823 = vmatprep.subr.bf16.mxu0 0
      %2824 = vmatpush1.bf16.msra.mxu0 0
      %2825 = vmatprep.subr.bf16.mxu0 0
      %2826 = vmatpush1.bf16.msra.mxu0 0
      %2827 = vmatprep.subr.bf16.mxu0 0
      %2828 = vmatpush1.bf16.msra.mxu0 0
      %2829 = vmatprep.subr.bf16.mxu0 0
      %2830 = vmatpush1.bf16.msra.mxu0 0
      %2831 = vmatprep.subr.bf16.mxu0 0
      %2832 = vmatpush1.bf16.msra.mxu0 0
      %2833 = vmatprep.subr.bf16.mxu0 0
      %2834 = vmatpush1.bf16.msra.mxu0 0
      %2835 = vmatprep.subr.bf16.mxu0 0
      %2836 = vmatpush1.bf16.msra.mxu0 0
      %2837 = vmatprep.subr.bf16.mxu0 0
      %2838 = vmatpush1.bf16.msra.mxu0 %v2812
      %2839 = vmatprep.subr.bf16.mxu0 0
      %2840 = vmatpush2.bf16.msra.mxu0 0
      %2841 = vmatprep.subr.bf16.mxu0 0
      %2842 = vmatpush2.bf16.msra.mxu0 0
      %2843 = vmatprep.subr.bf16.mxu0 0
      %2844 = vmatpush2.bf16.msra.mxu0 0
      %2845 = vmatprep.subr.bf16.mxu0 0
      %2846 = vmatpush2.bf16.msra.mxu0 0
      %2847 = vmatprep.subr.bf16.mxu0 0
      %2848 = vmatpush2.bf16.msra.mxu0 0
      %2849 = vmatprep.subr.bf16.mxu0 0
      %2850 = vmatpush2.bf16.msra.mxu0 0
      %2851 = vmatprep.subr.bf16.mxu0 0
      %2852 = vmatpush2.bf16.msra.mxu0 0
      %2853 = vmatprep.subr.bf16.mxu0 0
      %2854 = vmatpush2.bf16.msra.mxu0 0
      %2855 = vmatprep.mubr.bf16.mxu0 0
      %2856 = vmatmul.mubr.bf16.gmra.mxu0 %v2818
      %v2857 = vpop.f32.mrf.mxu0
      %v2858 = vadd.f32 %v2816, %v2857
      %v2859 = vpop.f32.mrf.mxu0
      %v2860 = vpop.f32.mrf.mxu0
      %v2861 = vadd.f32 %v2816, %v2860
      %v2862 = vpop.f32.mrf.mxu0
      %2863 = vmatprep.mubr.bf16.mxu0 0
      %2864 = vmatmul.mubr.bf16.gmra.mxu0 %v2821
      %v2865 = vpop.f32.mrf.mxu0
      %v2866 = vadd.f32 %v2816, %v2865
      %v2867 = vpop.f32.mrf.mxu0
      %v2868 = vpop.f32.mrf.mxu0
      %v2869 = vadd.f32 %v2816, %v2868
      %v2870 = vpop.f32.mrf.mxu0
      %2871 = vdwg.mxu0
      %v2872 = vld [vmem:[%s14] sm:$0xf]
      %v2873 = vadd.f32 %v2088, %v2858
      %v2874 = vadd.f32 %v2089, %v2861
      %v2875 = vadd.f32 %v2090, %v2866
      %v2876 = vadd.f32 %v2091, %v2869
      %v2877 = vsel %vm880, %v2873, 0.0
      %2878 = vadd.xlane.f32.xlu0 %v2877
      %v2879 = vpop.xlane.xlu0 %2878
      %v2880 = vsel %vm880, %v2874, 0.0
      %2881 = vadd.xlane.f32.xlu0 %v2880
      %v2882 = vpop.xlane.xlu0 %2881
      %v2883 = vsel %vm880, %v2875, 0.0
      %2884 = vadd.xlane.f32.xlu0 %v2883
      %v2885 = vpop.xlane.xlu0 %2884
      %v2886 = vsel %vm880, %v2876, 0.0
      %2887 = vadd.xlane.f32.xlu0 %v2886
      %v2888 = vpop.xlane.xlu0 %2887
      %v2889 = vmul.f32 %v2879, %v1783
      %v2890 = vmul.f32 %v2882, %v1783
      %v2891 = vmul.f32 %v2885, %v1783
      %v2892 = vmul.f32 %v2888, %v1783
      %v2893 = vsub.f32 %v2873, %v2889
      %v2894 = vsub.f32 %v2874, %v2890
      %v2895 = vsub.f32 %v2875, %v2891
      %v2896 = vsub.f32 %v2876, %v2892
      %v2897 = vmul.f32 %v2893, %v2893
      %v2898 = vmul.f32 %v2894, %v2894
      %v2899 = vmul.f32 %v2895, %v2895
      %v2900 = vmul.f32 %v2896, %v2896
      %v2901 = vsel %vm880, %v2897, 0.0
      %2902 = vadd.xlane.f32.xlu0 %v2901
      %v2903 = vpop.xlane.xlu0 %2902
      %v2904 = vsel %vm880, %v2898, 0.0
      %2905 = vadd.xlane.f32.xlu0 %v2904
      %v2906 = vpop.xlane.xlu0 %2905
      %v2907 = vsel %vm880, %v2899, 0.0
      %2908 = vadd.xlane.f32.xlu0 %v2907
      %v2909 = vpop.xlane.xlu0 %2908
      %v2910 = vsel %vm880, %v2900, 0.0
      %2911 = vadd.xlane.f32.xlu0 %v2910
      %v2912 = vpop.xlane.xlu0 %2911
      %v2913 = vmul.f32 %v2903, %v1783
      %v2914 = vmul.f32 %v2906, %v1783
      %v2915 = vmul.f32 %v2909, %v1783
      %v2916 = vmul.f32 %v2912, %v1783
      %v2917 = vadd.f32 %v2913, 1e-05
      %v2918 = vadd.f32 %v2914, 1e-05
      %v2919 = vadd.f32 %v2915, 1e-05
      %v2920 = vadd.f32 %v2916, 1e-05
      %v2921 = vrsqrt.pop %v2917
      %v2922 = vrsqrt.pop %v2918
      %v2923 = vrsqrt.pop %v2919
      %v2924 = vrsqrt.pop %v2920
      %v2925 = vmul.f32 %v2893, %v2921
      %v2926 = vmul.f32 %v2894, %v2922
      %v2927 = vmul.f32 %v2895, %v2923
      %v2928 = vmul.f32 %v2896, %v2924
      %v2929 = vlaneseq
      %v2930 = vshrl.u32 %v2929, 7
      %v2931 = vsub.s32 0, %v2930
      %v2932 = vrot.slane %v2872, %v2931
      %v2933 = vmul.f32 %v2925, %v2932
      %v2934 = vmul.f32 %v2926, %v2932
      %v2935 = vmul.f32 %v2927, %v2932
      %v2936 = vmul.f32 %v2928, %v2932
      %v2937 = vlaneseq
      %v2938 = vshrl.u32 %v2937, 7
      %v2939 = vsub.s32 1, %v2938
      %v2940 = vrot.slane %v2872, %v2939
      %v2941 = vadd.f32 %v2933, %v2940
      %v2942 = vadd.f32 %v2934, %v2940
      %v2943 = vadd.f32 %v2935, %v2940
      %v2944 = vadd.f32 %v2936, %v2940
      %v2945 = vld [vmem:[%s15] sm:$0xff]
      %v2946 = vld [vmem:[%s15 + $0x8] sm:$0xff]
      %v2947 = vpack.c.bf16 %v2942, %v2941
      %v2948 = vpack.c.bf16 %v2944, %v2943
      %v2949 = vpack.c.bf16 %v2946, %v2945
      %v2950 = vld [vmem:[%s16] sm:$0x1]
      %v2952 = vlaneseq
      %v2953 = vshrl.u32 %v2952, 7
      %v2954 = vsub.s32 0, %v2953
      %v2955 = vrot.slane %v2950, %v2954
      %v2958 = vsel %vm880, %v2947, 0
      %v2961 = vsel %vm880, %v2948, 0
      %2963 = vmatprep.subr.bf16.mxu0 0
      %2964 = vmatpush1.bf16.msra.mxu0 0
      %2965 = vmatprep.subr.bf16.mxu0 0
      %2966 = vmatpush1.bf16.msra.mxu0 0
      %2967 = vmatprep.subr.bf16.mxu0 0
      %2968 = vmatpush1.bf16.msra.mxu0 0
      %2969 = vmatprep.subr.bf16.mxu0 0
      %2970 = vmatpush1.bf16.msra.mxu0 0
      %2971 = vmatprep.subr.bf16.mxu0 0
      %2972 = vmatpush1.bf16.msra.mxu0 0
      %2973 = vmatprep.subr.bf16.mxu0 0
      %2974 = vmatpush1.bf16.msra.mxu0 0
      %2975 = vmatprep.subr.bf16.mxu0 0
      %2976 = vmatpush1.bf16.msra.mxu0 0
      %2977 = vmatprep.subr.bf16.mxu0 0
      %2978 = vmatpush1.bf16.msra.mxu0 %v2949
      %2979 = vmatprep.subr.bf16.mxu0 0
      %2980 = vmatpush2.bf16.msra.mxu0 0
      %2981 = vmatprep.subr.bf16.mxu0 0
      %2982 = vmatpush2.bf16.msra.mxu0 0
      %2983 = vmatprep.subr.bf16.mxu0 0
      %2984 = vmatpush2.bf16.msra.mxu0 0
      %2985 = vmatprep.subr.bf16.mxu0 0
      %2986 = vmatpush2.bf16.msra.mxu0 0
      %2987 = vmatprep.subr.bf16.mxu0 0
      %2988 = vmatpush2.bf16.msra.mxu0 0
      %2989 = vmatprep.subr.bf16.mxu0 0
      %2990 = vmatpush2.bf16.msra.mxu0 0
      %2991 = vmatprep.subr.bf16.mxu0 0
      %2992 = vmatpush2.bf16.msra.mxu0 0
      %2993 = vmatprep.subr.bf16.mxu0 0
      %2994 = vmatpush2.bf16.msra.mxu0 0
      %2995 = vmatprep.mubr.bf16.mxu0 0
      %2996 = vmatmul.mubr.bf16.gmra.mxu0 %v2958
      %v2997 = vpop.f32.mrf.mxu0
      %v2998 = vadd.f32 %v2955, %v2997
      %v2999 = vpop.f32.mrf.mxu0
      %v3000 = vpop.f32.mrf.mxu0
      %v3001 = vadd.f32 %v2955, %v3000
      %v3002 = vpop.f32.mrf.mxu0
      %3003 = vmatprep.mubr.bf16.mxu0 0
      %3004 = vmatmul.mubr.bf16.gmra.mxu0 %v2961
      %v3005 = vpop.f32.mrf.mxu0
      %v3006 = vadd.f32 %v2955, %v3005
      %v3007 = vpop.f32.mrf.mxu0
      %v3008 = vpop.f32.mrf.mxu0
      %v3009 = vadd.f32 %v2955, %v3008
      %v3010 = vpop.f32.mrf.mxu0
      %3011 = vdwg.mxu0
      %v3012 = vmul.f32 %v2998, 0.5
      %v3013 = vmul.f32 %v3001, 0.5
      %v3014 = vmul.f32 %v3006, 0.5
      %v3015 = vmul.f32 %v3009, 0.5
      %v3016 = vmul.f32 %v2998, 0.044715
      %v3017 = vmul.f32 %v3001, 0.044715
      %v3018 = vmul.f32 %v3006, 0.044715
      %v3019 = vmul.f32 %v3009, 0.044715
      %v3020 = vmul.f32 %v3016, %v2998
      %v3021 = vmul.f32 %v3017, %v3001
      %v3022 = vmul.f32 %v3018, %v3006
      %v3023 = vmul.f32 %v3019, %v3009
      %v3024 = vmul.f32 %v3020, %v2998
      %v3025 = vmul.f32 %v3021, %v3001
      %v3026 = vmul.f32 %v3022, %v3006
      %v3027 = vmul.f32 %v3023, %v3009
      %v3028 = vadd.f32 %v2998, %v3024
      %v3029 = vadd.f32 %v3001, %v3025
      %v3030 = vadd.f32 %v3006, %v3026
      %v3031 = vadd.f32 %v3009, %v3027
      %v3032 = vmul.f32 %v3028, 0.7978846
      %v3033 = vmul.f32 %v3029, 0.7978846
      %v3034 = vmul.f32 %v3030, 0.7978846
      %v3035 = vmul.f32 %v3031, 0.7978846
      %v3036 = vtanh.pop %v3032
      %v3037 = vtanh.pop %v3033
      %v3038 = vtanh.pop %v3034
      %v3039 = vtanh.pop %v3035
      %v3040 = vadd.f32 %v3036, 1.0
      %v3041 = vadd.f32 %v3037, 1.0
      %v3042 = vadd.f32 %v3038, 1.0
      %v3043 = vadd.f32 %v3039, 1.0
      %v3044 = vmul.f32 %v3012, %v3040
      %v3045 = vmul.f32 %v3013, %v3041
      %v3046 = vmul.f32 %v3014, %v3042
      %v3047 = vmul.f32 %v3015, %v3043
      %v3048 = vld [vmem:[%s17] sm:$0xff]
      %v3049 = vld [vmem:[%s17 + $0x8] sm:$0xff]
      %v3050 = vld [vmem:[%s17 + $0x10] sm:$0xff]
      %v3051 = vld [vmem:[%s17 + $0x18] sm:$0xff]
      %v3052 = vld [vmem:[%s17 + $0x20] sm:$0xff]
      %v3053 = vld [vmem:[%s17 + $0x28] sm:$0xff]
      %v3054 = vld [vmem:[%s17 + $0x30] sm:$0xff]
      %v3055 = vld [vmem:[%s17 + $0x38] sm:$0xff]
      %v3056 = vpack.c.bf16 %v3045, %v3044
      %v3057 = vpack.c.bf16 %v3047, %v3046
      %v3058 = vpack.c.bf16 %v3049, %v3048
      %v3059 = vpack.c.bf16 %v3051, %v3050
      %v3060 = vpack.c.bf16 %v3053, %v3052
      %v3061 = vpack.c.bf16 %v3055, %v3054
      %v3062 = vld [vmem:[%s18] sm:$0x1]
      %v3064 = vlaneseq
      %v3065 = vshrl.u32 %v3064, 7
      %v3066 = vsub.s32 0, %v3065
      %v3067 = vrot.slane %v3062, %v3066
      %v3070 = vsel %vm1964, %v3056, 0
      %v3073 = vsel %vm1964, %v3057, 0
      %3075 = vmatprep.subr.bf16.mxu0 0
      %3076 = vmatpush1.bf16.msra.mxu0 0
      %3077 = vmatprep.subr.bf16.mxu0 0
      %3078 = vmatpush1.bf16.msra.mxu0 0
      %3079 = vmatprep.subr.bf16.mxu0 0
      %3080 = vmatpush1.bf16.msra.mxu0 0
      %3081 = vmatprep.subr.bf16.mxu0 0
      %3082 = vmatpush1.bf16.msra.mxu0 0
      %3083 = vmatprep.subr.bf16.mxu0 0
      %3084 = vmatpush1.bf16.msra.mxu0 %v3061
      %3085 = vmatprep.subr.bf16.mxu0 0
      %3086 = vmatpush1.bf16.msra.mxu0 %v3060
      %3087 = vmatprep.subr.bf16.mxu0 0
      %3088 = vmatpush1.bf16.msra.mxu0 %v3059
      %3089 = vmatprep.subr.bf16.mxu0 0
      %3090 = vmatpush1.bf16.msra.mxu0 %v3058
      %3091 = vmatprep.subr.bf16.mxu0 0
      %3092 = vmatpush2.bf16.msra.mxu0 0
      %3093 = vmatprep.subr.bf16.mxu0 0
      %3094 = vmatpush2.bf16.msra.mxu0 0
      %3095 = vmatprep.subr.bf16.mxu0 0
      %3096 = vmatpush2.bf16.msra.mxu0 0
      %3097 = vmatprep.subr.bf16.mxu0 0
      %3098 = vmatpush2.bf16.msra.mxu0 0
      %3099 = vmatprep.subr.bf16.mxu0 0
      %3100 = vmatpush2.bf16.msra.mxu0 0
      %3101 = vmatprep.subr.bf16.mxu0 0
      %3102 = vmatpush2.bf16.msra.mxu0 0
      %3103 = vmatprep.subr.bf16.mxu0 0
      %3104 = vmatpush2.bf16.msra.mxu0 0
      %3105 = vmatprep.subr.bf16.mxu0 0
      %3106 = vmatpush2.bf16.msra.mxu0 0
      %3107 = vmatprep.mubr.bf16.mxu0 0
      %3108 = vmatmul.mubr.bf16.gmra.mxu0 %v3070
      %v3109 = vpop.f32.mrf.mxu0
      %v3110 = vadd.f32 %v3067, %v3109
      %v3111 = vpop.f32.mrf.mxu0
      %v3112 = vpop.f32.mrf.mxu0
      %v3113 = vadd.f32 %v3067, %v3112
      %v3114 = vpop.f32.mrf.mxu0
      %3115 = vmatprep.mubr.bf16.mxu0 0
      %3116 = vmatmul.mubr.bf16.gmra.mxu0 %v3073
      %v3117 = vpop.f32.mrf.mxu0
      %v3118 = vadd.f32 %v3067, %v3117
      %v3119 = vpop.f32.mrf.mxu0
      %v3120 = vpop.f32.mrf.mxu0
      %v3121 = vadd.f32 %v3067, %v3120
      %v3122 = vpop.f32.mrf.mxu0
      %3123 = vdwg.mxu0
      %v3124 = vadd.f32 %v2941, %v3110
      %v3125 = vadd.f32 %v2942, %v3113
      %v3126 = vadd.f32 %v2943, %v3118
      %v3127 = vadd.f32 %v2944, %v3121
      %v3128 = vsel %vm880, %v3124, 0.0
      %3129 = vadd.xlane.f32.xlu0 %v3128
      %v3130 = vpop.xlane.xlu0 %3129
      %v3131 = vsel %vm880, %v3125, 0.0
      %3132 = vadd.xlane.f32.xlu0 %v3131
      %v3133 = vpop.xlane.xlu0 %3132
      %v3134 = vsel %vm880, %v3126, 0.0
      %3135 = vadd.xlane.f32.xlu0 %v3134
      %v3136 = vpop.xlane.xlu0 %3135
      %v3137 = vsel %vm880, %v3127, 0.0
      %3138 = vadd.xlane.f32.xlu0 %v3137
      %v3139 = vpop.xlane.xlu0 %3138
      %v3140 = vmul.f32 %v3130, %v1783
      %v3141 = vmul.f32 %v3133, %v1783
      %v3142 = vmul.f32 %v3136, %v1783
      %v3143 = vmul.f32 %v3139, %v1783
      %v3144 = vsub.f32 %v3124, %v3140
      %v3145 = vsub.f32 %v3125, %v3141
      %v3146 = vsub.f32 %v3126, %v3142
      %v3147 = vsub.f32 %v3127, %v3143
      %v3148 = vmul.f32 %v3144, %v3144
      %v3149 = vmul.f32 %v3145, %v3145
      %v3150 = vmul.f32 %v3146, %v3146
      %v3151 = vmul.f32 %v3147, %v3147
      %v3152 = vsel %vm880, %v3148, 0.0
      %3153 = vadd.xlane.f32.xlu0 %v3152
      %v3154 = vpop.xlane.xlu0 %3153
      %v3155 = vsel %vm880, %v3149, 0.0
      %3156 = vadd.xlane.f32.xlu0 %v3155
      %v3157 = vpop.xlane.xlu0 %3156
      %v3158 = vsel %vm880, %v3150, 0.0
      %3159 = vadd.xlane.f32.xlu0 %v3158
      %v3160 = vpop.xlane.xlu0 %3159
      %v3161 = vsel %vm880, %v3151, 0.0
      %3162 = vadd.xlane.f32.xlu0 %v3161
      %v3163 = vpop.xlane.xlu0 %3162
      %v3164 = vmul.f32 %v3154, %v1783
      %v3165 = vmul.f32 %v3157, %v1783
      %v3166 = vmul.f32 %v3160, %v1783
      %v3167 = vmul.f32 %v3163, %v1783
      %v3168 = vadd.f32 %v3164, 1e-05
      %v3169 = vadd.f32 %v3165, 1e-05
      %v3170 = vadd.f32 %v3166, 1e-05
      %v3171 = vadd.f32 %v3167, 1e-05
      %v3172 = vrsqrt.pop %v3168
      %v3173 = vrsqrt.pop %v3169
      %v3174 = vrsqrt.pop %v3170
      %v3175 = vrsqrt.pop %v3171
      %v3176 = vmul.f32 %v3144, %v3172
      %v3177 = vmul.f32 %v3145, %v3173
      %v3178 = vmul.f32 %v3146, %v3174
      %v3179 = vmul.f32 %v3147, %v3175
      %v3180 = vlaneseq
      %v3181 = vshrl.u32 %v3180, 7
      %v3182 = vsub.s32 2, %v3181
      %v3183 = vrot.slane %v2872, %v3182
      %v3184 = vmul.f32 %v3176, %v3183
      %v3185 = vmul.f32 %v3177, %v3183
      %v3186 = vmul.f32 %v3178, %v3183
      %v3187 = vmul.f32 %v3179, %v3183
      %v3188 = vlaneseq
      %v3189 = vshrl.u32 %v3188, 7
      %v3190 = vsub.s32 3, %v3189
      %v3191 = vrot.slane %v2872, %v3190
      %v3192 = vadd.f32 %v3184, %v3191
      %v3193 = vadd.f32 %v3185, %v3191
      %v3194 = vadd.f32 %v3186, %v3191
      %v3195 = vadd.f32 %v3187, %v3191
      %3196 = vxpose.xlu0.b32.start [1/16] %v3192, 128
      %3197 = vxpose.xlu0.b32.cont [2/16] %v3193, 128
      %3198 = vxpose.xlu0.b32.cont [3/16] %v3194, 128
      %3199 = vxpose.xlu0.b32.cont [4/16] %v3195, 128
      %3200 = vxpose.xlu0.b32.cont [5/16] 0.0, 128
      %3201 = vxpose.xlu0.b32.cont [6/16] 0.0, 128
      %3202 = vxpose.xlu0.b32.cont [7/16] 0.0, 128
      %3203 = vxpose.xlu0.b32.cont [8/16] 0.0, 128
      %3204 = vxpose.xlu0.b32.cont [9/16] 0.0, 128
      %3205 = vxpose.xlu0.b32.cont [10/16] 0.0, 128
      %3206 = vxpose.xlu0.b32.cont [11/16] 0.0, 128
      %3207 = vxpose.xlu0.b32.cont [12/16] 0.0, 128
      %3208 = vxpose.xlu0.b32.cont [13/16] 0.0, 128
      %3209 = vxpose.xlu0.b32.cont [14/16] 0.0, 128
      %3210 = vxpose.xlu0.b32.cont [15/16] 0.0, 128
      %3211 = vxpose.xlu0.b32.end [16/16] 0.0, 128
      %v3212 = vpop.trf.xlu0
      %v3213 = vpop.trf.xlu0
      %v3214 = vpop.trf.xlu0
      %v3215 = vpop.trf.xlu0
      %v3216 = vpop.trf.xlu0
      %v3217 = vpop.trf.xlu0
      %v3218 = vpop.trf.xlu0
      %v3219 = vpop.trf.xlu0
      %v3220 = vpop.trf.xlu0
      %v3221 = vpop.trf.xlu0
      %v3222 = vpop.trf.xlu0
      %v3223 = vpop.trf.xlu0
      %v3224 = vpop.trf.xlu0
      %v3225 = vpop.trf.xlu0
      %v3226 = vpop.trf.xlu0
      %v3227 = vpop.trf.xlu0
      %v3228 = vld [vmem:[%s858] sm:$0xff]
      %v3229 = vld [vmem:[%s22] sm:$0xff]
      %v3230 = vld [vmem:[%s22 + $0x8] sm:$0xff]
      %v3231 = vld [vmem:[%s22 + $0x10] sm:$0xff]
      %v3232 = vld [vmem:[%s22 + $0x18] sm:$0xff]
      %v3233 = vpack.c.bf16 %v3230, %v3229
      %v3234 = vpack.c.bf16 %v3232, %v3231
      %v3235 = vpack.c.bf16 %v3213, %v3212
      %v3236 = vpack.c.bf16 %v3228, %v3228
      %v3237 = vld [vmem:[%s23] sm:$0xff]
      %v3238 = vld [vmem:[%s23 + $0x8] sm:$0xff]
      %v3239 = vld [vmem:[%s23 + $0x10] sm:$0xff]
      %v3240 = vld [vmem:[%s23 + $0x18] sm:$0xff]
      %3242 = vset.pattern.permute.xlu0 0
      %3243 = vperm.xlu0 %3242, %v3237
      %v3244 = vpop.permute.xlu0 %3243
      %3247 = vset.pattern.permute.xlu0 0
      %3248 = vperm.xlu0 %3247, %v3238
      %v3249 = vpop.permute.xlu0 %3248
      %3252 = vset.pattern.permute.xlu0 0
      %3253 = vperm.xlu0 %3252, %v3239
      %v3254 = vpop.permute.xlu0 %3253
      %3257 = vset.pattern.permute.xlu0 0
      %3258 = vperm.xlu0 %3257, %v3240
      %v3259 = vpop.permute.xlu0 %3258
      %vm3261 = vcmask 195584
      %v3263 = vsel %vm3261, %v3233, 0
      %v3266 = vsel %vm3261, %v3234, 0
      %vm3268 = vcmask 1043456
      %v3270 = vsel %vm3268, %v3236, 0
      %3272 = vmatprep.subr.bf16.mxu0 0
      %3273 = vmatpush1.bf16.msra.mxu0 0
      %3274 = vmatprep.subr.bf16.mxu0 0
      %3275 = vmatpush1.bf16.msra.mxu0 0
      %3276 = vmatprep.subr.bf16.mxu0 0
      %3277 = vmatpush1.bf16.msra.mxu0 0
      %3278 = vmatprep.subr.bf16.mxu0 0
      %3279 = vmatpush1.bf16.msra.mxu0 0
      %3280 = vmatprep.subr.bf16.mxu0 0
      %3281 = vmatpush1.bf16.msra.mxu0 0
      %3282 = vmatprep.subr.bf16.mxu0 0
      %3283 = vmatpush1.bf16.msra.mxu0 0
      %3284 = vmatprep.subr.bf16.mxu0 0
      %3285 = vmatpush1.bf16.msra.mxu0 %v3270
      %3286 = vmatprep.subr.bf16.mxu0 0
      %3287 = vmatpush1.bf16.msra.mxu0 %v3235
      %3288 = vmatprep.subr.bf16.mxu0 0
      %3289 = vmatpush2.bf16.msra.mxu0 0
      %3290 = vmatprep.subr.bf16.mxu0 0
      %3291 = vmatpush2.bf16.msra.mxu0 0
      %3292 = vmatprep.subr.bf16.mxu0 0
      %3293 = vmatpush2.bf16.msra.mxu0 0
      %3294 = vmatprep.subr.bf16.mxu0 0
      %3295 = vmatpush2.bf16.msra.mxu0 0
      %3296 = vmatprep.subr.bf16.mxu0 0
      %3297 = vmatpush2.bf16.msra.mxu0 0
      %3298 = vmatprep.subr.bf16.mxu0 0
      %3299 = vmatpush2.bf16.msra.mxu0 0
      %3300 = vmatprep.subr.bf16.mxu0 0
      %3301 = vmatpush2.bf16.msra.mxu0 0
      %3302 = vmatprep.subr.bf16.mxu0 0
      %3303 = vmatpush2.bf16.msra.mxu0 0
      %3304 = vmatprep.mubr.bf16.mxu0 0
      %3305 = vmatmul.mubr.bf16.gmra.mxu0 %v3263
      %v3306 = vpop.f32.mrf.mxu0
      %v3307 = vadd.f32 %v3244, %v3306
      %v3308 = vpop.f32.mrf.mxu0
      %v3309 = vpop.f32.mrf.mxu0
      %v3310 = vadd.f32 %v3249, %v3309
      %v3311 = vpop.f32.mrf.mxu0
      %3312 = vmatprep.mubr.bf16.mxu0 0
      %3313 = vmatmul.mubr.bf16.gmra.mxu0 %v3266
      %v3314 = vpop.f32.mrf.mxu0
      %v3315 = vadd.f32 %v3254, %v3314
      %v3316 = vpop.f32.mrf.mxu0
      %v3317 = vpop.f32.mrf.mxu0
      %v3318 = vadd.f32 %v3259, %v3317
      %v3319 = vpop.f32.mrf.mxu0
      %3320 = vdwg.mxu0
      %v3321 = vxor.u32 %v3307, 2147483648
      %v3322 = vxor.u32 %v3310, 2147483648
      %v3323 = vmul.f32 %v3321, 1.442695
      %v3324 = vpow.pop %v3323
      %v3325 = vmul.f32 %v3322, 1.442695
      %v3326 = vpow.pop %v3325
      %v3327 = vadd.f32 %v3324, 1.0
      %v3328 = vadd.f32 %v3326, 1.0
      %v3329 = vrcp.pop %v3327
      %v3330 = vmul.f32 1.0, %v3329
      %v3331 = vrcp.pop %v3328
      %v3332 = vmul.f32 1.0, %v3331
      %v3333 = vtanh.pop %v3315
      %v3334 = vtanh.pop %v3318
      %v3335 = vmul.f32 %v3330, %v3333
      %v3336 = vmul.f32 %v3332, %v3334
      %v3337 = vld [vmem:[%s24] sm:$0xff]
      %v3338 = vld [vmem:[%s24 + $0x8] sm:$0xff]
      %v3339 = vld [vmem:[%s24 + $0x10] sm:$0xff]
      %v3340 = vld [vmem:[%s24 + $0x18] sm:$0xff]
      %v3341 = vpack.c.bf16 %v3338, %v3337
      %v3342 = vpack.c.bf16 %v3340, %v3339
      %v3343 = vpack.c.bf16 %v3336, %v3335
      %v3344 = vld [vmem:[%s25] sm:$0xff]
      %v3345 = vld [vmem:[%s25 + $0x8] sm:$0xff]
      %v3346 = vld [vmem:[%s25 + $0x10] sm:$0xff]
      %v3347 = vld [vmem:[%s25 + $0x18] sm:$0xff]
      %3349 = vset.pattern.permute.xlu0 0
      %3350 = vperm.xlu0 %3349, %v3344
      %v3351 = vpop.permute.xlu0 %3350
      %3354 = vset.pattern.permute.xlu0 0
      %3355 = vperm.xlu0 %3354, %v3345
      %v3356 = vpop.permute.xlu0 %3355
      %3359 = vset.pattern.permute.xlu0 0
      %3360 = vperm.xlu0 %3359, %v3346
      %v3361 = vpop.permute.xlu0 %3360
      %3364 = vset.pattern.permute.xlu0 0
      %3365 = vperm.xlu0 %3364, %v3347
      %v3366 = vpop.permute.xlu0 %3365
      %v3369 = vsel %vm880, %v3341, 0
      %v3372 = vsel %vm880, %v3342, 0
      %3374 = vmatprep.subr.bf16.mxu0 0
      %3375 = vmatpush1.bf16.msra.mxu0 0
      %3376 = vmatprep.subr.bf16.mxu0 0
      %3377 = vmatpush1.bf16.msra.mxu0 0
      %3378 = vmatprep.subr.bf16.mxu0 0
      %3379 = vmatpush1.bf16.msra.mxu0 0
      %3380 = vmatprep.subr.bf16.mxu0 0
      %3381 = vmatpush1.bf16.msra.mxu0 0
      %3382 = vmatprep.subr.bf16.mxu0 0
      %3383 = vmatpush1.bf16.msra.mxu0 0
      %3384 = vmatprep.subr.bf16.mxu0 0
      %3385 = vmatpush1.bf16.msra.mxu0 0
      %3386 = vmatprep.subr.bf16.mxu0 0
      %3387 = vmatpush1.bf16.msra.mxu0 0
      %3388 = vmatprep.subr.bf16.mxu0 0
      %3389 = vmatpush1.bf16.msra.mxu0 %v3343
      %3390 = vmatprep.subr.bf16.mxu0 0
      %3391 = vmatpush2.bf16.msra.mxu0 0
      %3392 = vmatprep.subr.bf16.mxu0 0
      %3393 = vmatpush2.bf16.msra.mxu0 0
      %3394 = vmatprep.subr.bf16.mxu0 0
      %3395 = vmatpush2.bf16.msra.mxu0 0
      %3396 = vmatprep.subr.bf16.mxu0 0
      %3397 = vmatpush2.bf16.msra.mxu0 0
      %3398 = vmatprep.subr.bf16.mxu0 0
      %3399 = vmatpush2.bf16.msra.mxu0 0
      %3400 = vmatprep.subr.bf16.mxu0 0
      %3401 = vmatpush2.bf16.msra.mxu0 0
      %3402 = vmatprep.subr.bf16.mxu0 0
      %3403 = vmatpush2.bf16.msra.mxu0 0
      %3404 = vmatprep.subr.bf16.mxu0 0
      %3405 = vmatpush2.bf16.msra.mxu0 0
      %3406 = vmatprep.mubr.bf16.mxu0 0
      %3407 = vmatmul.mubr.bf16.gmra.mxu0 %v3369
      %v3408 = vpop.f32.mrf.mxu0
      %v3409 = vadd.f32 %v3351, %v3408
      %v3410 = vpop.f32.mrf.mxu0
      %v3411 = vpop.f32.mrf.mxu0
      %v3412 = vadd.f32 %v3356, %v3411
      %v3413 = vpop.f32.mrf.mxu0
      %3414 = vmatprep.mubr.bf16.mxu0 0
      %3415 = vmatmul.mubr.bf16.gmra.mxu0 %v3372
      %v3416 = vpop.f32.mrf.mxu0
      %v3417 = vadd.f32 %v3361, %v3416
      %v3418 = vpop.f32.mrf.mxu0
      %v3419 = vpop.f32.mrf.mxu0
      %v3420 = vadd.f32 %v3366, %v3419
      %v3421 = vpop.f32.mrf.mxu0
      %3422 = vdwg.mxu0
      %v3423 = vadd.f32 %v870, %v3409
      %v3424 = vadd.f32 %v871, %v3412
      %v3425 = vmul.f32 %v3423, 0.70710677
      %v3426 = vmul.f32 %v3424, 0.70710677
      %3427 = vst.msk [vmem:[%s863] sm:$0xff] %vm1365, %v3425
      %3428 = vst.msk [vmem:[%s863 + $0x8] sm:$0xff] %vm1365, %v3426
      %3429 = vst.msk [vmem:[%s868] sm:$0xff] %vm1365, %v3417
      %3430 = vst.msk [vmem:[%s868 + $0x8] sm:$0xff] %vm1365, %v3420
      %p3431 = scmp.lt.s32.totalorder %s39, 1
      %s3432 = scalar_select %p3431, %s39, 1
      %s3433 = smul.addr %s3432, 2
      %s3434 = smul.addr %s3433, 8
      %s3435 = scalar_lea.vmem %s26, %s3434
      %p3436 = scmp.lt.s32.totalorder %s39, 1
      %s3437 = scalar_select %p3436, %s39, 1
      %s3438 = smul.addr %s3437, 2
      %s3439 = smul.addr %s3438, 8
      %s3440 = scalar_lea.vmem %s27, %s3439
      // Predicated region
      $region125: #{residual_block_forward.1} parent=123 // pred_check
        %p3441 = pneg %p618
      $region126: #{residual_block_forward.1} parent=123 // pred_check_branch
        %3443 = sbr.rel (%p3441) target = $region128
      $region127: #{residual_block_forward.1} parent=123 // pred_region
        _
      $region128: #{residual_block_forward.1} parent=123 // pred_fallthru
        _
      // Predicated region
      $region129: #{residual_block_forward.1} parent=123 // pred_check
        %p3444 = pneg %p644
      $region130: #{residual_block_forward.1} parent=123 // pred_check_branch
        %3446 = sbr.rel (%p3444) target = $region132
      $region131: #{residual_block_forward.1} parent=123 // pred_region
        _
      $region132: #{residual_block_forward.1} parent=123 // pred_fallthru
        _
    $region124: #{residual_block_forward.1} parent=5 // pred_fallthru
      _
    %p3447 = scmp.le.s32.totalorder 2, %s34
    // Predicated region
    $region133: #{residual_block_forward.1} parent=5 // pred_check
      %p3448 = pneg %p3447
    $region134: #{residual_block_forward.1} parent=5 // pred_check_branch
      %3450 = sbr.rel (%p3448) target = $region136
    $region135: #{residual_block_forward.1} parent=5 // pred_region
      %s3451 = ssub.s32 %s34, 2
      // Predicated region
      $region137: #{residual_block_forward.1} parent=135 // pred_check
        %p3452 = pneg %p624
      $region138: #{residual_block_forward.1} parent=135 // pred_check_branch
        %3454 = sbr.rel (%p3452) target = $region140
      $region139: #{residual_block_forward.1} parent=135 // pred_region
        %p3455 = scmp.lt.s32.totalorder %s40, 1
        %s3456 = scalar_select %p3455, %s40, 1
        %s3457 = smul.addr %s3456, 2
        %s3458 = smul.addr %s3457, 8
        %s3459 = scalar_lea.vmem %s26, %s3458
      $region140: #{residual_block_forward.1} parent=135 // pred_fallthru
        _
      // Predicated region
      $region141: #{residual_block_forward.1} parent=135 // pred_check
        %p3460 = pneg %p650
      $region142: #{residual_block_forward.1} parent=135 // pred_check_branch
        %3462 = sbr.rel (%p3460) target = $region144
      $region143: #{residual_block_forward.1} parent=135 // pred_region
        %p3463 = scmp.lt.s32.totalorder %s40, 1
        %s3464 = scalar_select %p3463, %s40, 1
        %s3465 = smul.addr %s3464, 2
        %s3466 = smul.addr %s3465, 8
        %s3467 = scalar_lea.vmem %s27, %s3466
      $region144: #{residual_block_forward.1} parent=135 // pred_fallthru
        _
    $region136: #{residual_block_forward.1} parent=5 // pred_fallthru
      _
  $region6: #{residual_block_forward.1} parent=0 // loop_footer
    %s38 = sadd.s32 1, %s34
  $region7: #{residual_block_forward.1} parent=0 // loop_footer_branch
    %33 = sbr.rel target = $region3
  $region8: #{residual_block_forward.1} parent=0 // loop_exit
    _

</llo_original>
